<compile_context>
chip_gen: v5e
topology: v5e:2x2
jax: 0.10.0
libtpu: 0.0.40
codegen_flags: <defaults>
</compile_context>

<pallas_src>
import functools

import jax
import jax.numpy as jnp
from jax.experimental import pallas as pl
from jax.experimental.pallas import tpu as pltpu


# -----------------------------------------------------------------------------
# Fused kernel: all ABCNN-1 layers + masked mean pooling + 3-layer MLP for one
# batch chunk of Bt sentence pairs.
# -----------------------------------------------------------------------------
def abcnn_fused_kernel(x0_ref, x1_ref, mm01_ref, mm10_ref, m0c_ref, m1c_ref,
                       w0s_ref, w1s_ref, wconv_ref, bconv_ref,
                       wa0_ref, wa1_ref, ba_ref, wb_ref, bb_ref,
                       wc_ref, bco_ref, y_ref):
    Bt, L, Dp = x0_ref.shape
    NB = 2 * Bt                                    # both sentence streams
    num_layers = w0s_ref.shape[0]
    WD = wconv_ref.shape[-1]
    width = WD // Dp
    l_out_pad = ((L + width - 1 + 7) // 8) * 8     # padded wide-conv length
    lead_pad = ((width - 1 + 7) // 8) * 8 if width > 1 else 0
    trail_pad = l_out_pad - L

    x0 = x0_ref[...]                               # (Bt, L, Dp) f32
    x1 = x1_ref[...]
    mm01 = mm01_ref[...]                           # (Bt, L, L) pair mask matrices
    mm10 = mm10_ref[...]

    for layer in range(num_layers):                # static unroll (small)
        # --- attention match scores: A[i,j] = 1 / (1 + ||x0_i - x1_j||) ------
        # Pure VPU broadcast/reduce (no MXU pushes, no transposes).  Padded
        # lanes of x0/x1 are zero so they do not affect the distance.
        d01 = jnp.sum(jnp.square(x0[:, :, None, :] - x1[:, None, :, :]), axis=-1)
        d10 = jnp.sum(jnp.square(x1[:, :, None, :] - x0[:, None, :, :]), axis=-1)
        a01 = mm01 / (1.0 + jnp.sqrt(d01))         # (Bt, L, L), exact divide
        a10 = mm10 / (1.0 + jnp.sqrt(d10))

        # --- attention feature maps (batch folded into M). W0/W1 are padded
        # host-side so the result lands directly in lanes [D:2D].
        w0 = w0s_ref[layer]                        # (L, Dp) bf16
        w1 = w1s_ref[layer]
        attn0 = jnp.dot(a01.reshape(Bt * L, L).astype(jnp.bfloat16), w0,
                        preferred_element_type=jnp.float32).reshape(Bt, L, Dp)
        attn1 = jnp.dot(a10.reshape(Bt * L, L).astype(jnp.bfloat16), w1,
                        preferred_element_type=jnp.float32).reshape(Bt, L, Dp)

        # --- shared wide conv: both channels packed into one Dp lane block ---
        z = jnp.concatenate([x0 + attn0, x1 + attn1], axis=0)   # (NB, L, Dp)
        z = z.reshape(NB * L, Dp).astype(jnp.bfloat16)
        yall = jnp.dot(z, wconv_ref[layer],
                       preferred_element_type=jnp.float32)      # (NB*L, width*Dp)
        yall = yall.reshape(NB, L, WD)

        # zero-pad the sequence axis once (sublane-aligned concat), then build
        # the wide-conv output with per-tap static sublane slices + adds.
        pieces = []
        if lead_pad > 0:
            pieces.append(jnp.zeros((NB, lead_pad, WD), jnp.float32))
        pieces.append(yall)
        if trail_pad > 0:
            pieces.append(jnp.zeros((NB, trail_pad, WD), jnp.float32))
        padded = jnp.concatenate(pieces, axis=1) if len(pieces) > 1 else yall

        conv = jnp.zeros((NB, l_out_pad, Dp), jnp.float32)
        for k in range(width):
            r0 = lead_pad - (width - 1) + k
            conv = conv + padded[:, r0:r0 + l_out_pad, k * Dp:(k + 1) * Dp]
        conv = jnp.tanh(conv + bconv_ref[layer])   # (NB, l_out_pad, Dp)

        # w-ap average pooling back to length L (window sum via slices).
        pooled = jnp.zeros((NB, L, Dp), jnp.float32)
        for w in range(width):
            pooled = pooled + conv[:, w:w + L, :]
        pooled = pooled * (1.0 / width)
        x0 = pooled[:Bt]
        x1 = pooled[Bt:]

    # --- masked mean pooling + 3-layer MLP ------------------------------------
    # TODO(synk): nn.Dropout layers are identity here (inference mode).
    m0c = m0c_ref[...]                             # (Bt, L, 1)
    m1c = m1c_ref[...]
    len0 = jnp.maximum(jnp.sum(m0c, axis=1), 1.0)  # (Bt, 1); clamp guards the
    len1 = jnp.maximum(jnp.sum(m1c, axis=1), 1.0)  # zero-padded batch rows
    avg0 = jnp.sum(x0 * m0c, axis=1) / len0        # (Bt, Dp), exact divide
    avg1 = jnp.sum(x1 * m1c, axis=1) / len1

    # Linear([avg0|avg1]) expressed as two Dp x Dp halves (no lane concat).
    h = (jnp.dot(avg0.astype(jnp.bfloat16), wa0_ref[...],
                 preferred_element_type=jnp.float32)
         + jnp.dot(avg1.astype(jnp.bfloat16), wa1_ref[...],
                   preferred_element_type=jnp.float32)
         + ba_ref[...])
    h = jnp.maximum(h, 0.0)
    h = jnp.maximum(jnp.dot(h.astype(jnp.bfloat16), wb_ref[...],
                            preferred_element_type=jnp.float32) + bb_ref[...],
                    0.0)
    y = jnp.dot(h.astype(jnp.bfloat16), wc_ref[...],
                preferred_element_type=jnp.float32) + bco_ref[...]
    y_ref[...] = y[None]                           # (1, Bt, OutP)


# -----------------------------------------------------------------------------
# Host-side packing: pad D to 128, stack per-layer weights, cast MXU weight
# operands to bf16.  The attention-feature weights are placed at columns
# [D:2D] so the attention channel lands in its own lane range.
# -----------------------------------------------------------------------------
def _place(a, rows, cols, r0=0, c0=0):
    out = jnp.zeros((rows, cols), jnp.float32)
    return out.at[r0:r0 + a.shape[0], c0:c0 + a.shape[1]].set(a)


def pack_params(params, *, seq_len, width, d_pad, out_pad):
    D = params["embed"].shape[1]
    Dp = d_pad

    w0s, w1s, wconv, bconv = [], [], [], []
    for lp in params["layers"]:
        # attention-feature weights -> lanes [D:2D]
        w0s.append(_place(lp["W0"], seq_len, Dp, 0, D))
        w1s.append(_place(lp["W1"], seq_len, Dp, 0, D))
        # conv slab: rows [0:D] act on the feature map (lanes [0:D]), rows
        # [D:2D] on the attention map (lanes [D:2D]); column block k is tap k.
        wall = jnp.zeros((Dp, width * Dp), jnp.float32)
        for k in range(width):
            wall = wall.at[0:D, k * Dp:k * Dp + D].set(lp["Wcx"][k])
            wall = wall.at[D:2 * D, k * Dp:k * Dp + D].set(lp["Wca"][k])
        wconv.append(wall)
        bconv.append(_place(lp["bc"], 1, Dp))

    proj = params["proj"]
    return dict(
        w0s=jnp.stack(w0s).astype(jnp.bfloat16),
        w1s=jnp.stack(w1s).astype(jnp.bfloat16),
        wconv=jnp.stack(wconv).astype(jnp.bfloat16),
        bconv=jnp.stack(bconv),                                   # f32
        wa0=_place(proj["Wa"][:D], Dp, Dp).astype(jnp.bfloat16),  # avg0 half
        wa1=_place(proj["Wa"][D:], Dp, Dp).astype(jnp.bfloat16),  # avg1 half
        ba=_place(proj["ba"], 1, Dp),
        wb=_place(proj["Wb"], Dp, Dp).astype(jnp.bfloat16),
        bb=_place(proj["bb"], 1, Dp),
        wc=_place(proj["Wc"], Dp, out_pad).astype(jnp.bfloat16),
        bco=_place(proj["bc"], 1, out_pad),
    )


# -----------------------------------------------------------------------------
# Full forward pass.
# -----------------------------------------------------------------------------
def abcnn_forward(sent0, sent1, params, *, padding_idx, width, num_layers,
                  out_dim, block_b=16):
    B, L = sent0.shape
    D = params["embed"].shape[1]
    Dp = max(128, ((D + 127) // 128) * 128)
    OutP = max(128, ((out_dim + 127) // 128) * 128)
    # TODO(synk): lane packing of the two conv channels assumes 2*D <= Dp;
    # larger embeddings would fall back to a 2*Dp concat.
    assert 2 * D <= Dp, "channel packing requires 2*embed_size <= padded lanes"

    # Batch-chunk selection: Bt*2*L is the conv-matmul M.  If the grid would be
    # a single step, split into two chunks so both v7x TensorCores get work.
    Bt = max(1, min(block_b, B))
    num_blocks = -(-B // Bt)
    if num_blocks == 1 and B >= 2:
        Bt = -(-B // 2)
        num_blocks = -(-B // Bt)
    Bp = num_blocks * Bt

    mask0 = (sent0 != padding_idx).astype(jnp.float32)            # (B, L)
    mask1 = (sent1 != padding_idx).astype(jnp.float32)

    # Embedding lookup (gather) stays in XLA; dropout is identity at inference.
    embed_p = jnp.pad(params["embed"], ((0, 0), (0, Dp - D)))
    x0 = jnp.take(embed_p, sent0, axis=0)                         # (B, L, Dp)
    x1 = jnp.take(embed_p, sent1, axis=0)

    if Bp != B:                                                   # pad batch
        pb = Bp - B
        x0 = jnp.pad(x0, ((0, pb), (0, 0), (0, 0)))
        x1 = jnp.pad(x1, ((0, pb), (0, 0), (0, 0)))
        mask0 = jnp.pad(mask0, ((0, pb), (0, 0)))
        mask1 = jnp.pad(mask1, ((0, pb), (0, 0)))

    # Broadcast-ready masks: pair mask matrices + column masks (no in-kernel
    # lane<->sublane relayouts).
    mm01 = mask0[:, :, None] * mask1[:, None, :]                  # (Bp, L, L)
    mm10 = mask1[:, :, None] * mask0[:, None, :]
    m0c = mask0[:, :, None]                                       # (Bp, L, 1)
    m1c = mask1[:, :, None]

    packed = pack_params(params, seq_len=L, width=width, d_pad=Dp, out_pad=OutP)

    batch3 = lambda b: (b, 0, 0)
    const2 = lambda b: (0, 0)
    const3 = lambda b: (0, 0, 0)

    y_pad = pl.pallas_call(
        abcnn_fused_kernel,
        grid=(num_blocks,),
        in_specs=[
            pl.BlockSpec((Bt, L, Dp), batch3),                    # x0
            pl.BlockSpec((Bt, L, Dp), batch3),                    # x1
            pl.BlockSpec((Bt, L, L), batch3),                     # mm01
            pl.BlockSpec((Bt, L, L), batch3),                     # mm10
            pl.BlockSpec((Bt, L, 1), batch3),                     # m0 column
            pl.BlockSpec((Bt, L, 1), batch3),                     # m1 column
            pl.BlockSpec((num_layers, L, Dp), const3),            # W0 (stacked)
            pl.BlockSpec((num_layers, L, Dp), const3),            # W1 (stacked)
            pl.BlockSpec((num_layers, Dp, width * Dp), const3),   # conv slab
            pl.BlockSpec((num_layers, 1, Dp), const3),            # conv bias
            pl.BlockSpec((Dp, Dp), const2),                       # Wa (avg0)
            pl.BlockSpec((Dp, Dp), const2),                       # Wa (avg1)
            pl.BlockSpec((1, Dp), const2),                        # ba
            pl.BlockSpec((Dp, Dp), const2),                       # Wb
            pl.BlockSpec((1, Dp), const2),                        # bb
            pl.BlockSpec((Dp, OutP), const2),                     # Wc
            pl.BlockSpec((1, OutP), const2),                      # bc (out)
        ],
        out_specs=pl.BlockSpec((1, Bt, OutP), lambda b: (b, 0, 0)),
        out_shape=jax.ShapeDtypeStruct((num_blocks, Bt, OutP), jnp.float32),
        compiler_params=pltpu.CompilerParams(
            dimension_semantics=("parallel",),
            vmem_limit_bytes=48 * 1024 * 1024),                   # <= v7x 64MiB
    )(x0, x1, mm01, mm10, m0c, m1c,
      packed["w0s"], packed["w1s"], packed["wconv"], packed["bconv"],
      packed["wa0"], packed["wa1"], packed["ba"],
      packed["wb"], packed["bb"], packed["wc"], packed["bco"])

    return y_pad.reshape(Bp, OutP)[:B, :out_dim]


# -----------------------------------------------------------------------------
# Deterministic parameter construction (same logical shapes as the PyTorch
# module; ABCNN_1 internals use the canonical ABCNN-1 parameterization).
# -----------------------------------------------------------------------------
def make_params(key, *, vocab, embed_size, seq_len, width, num_layers,
                out_dim, padding_idx):
    D = embed_size
    keys = iter(jax.random.split(key, 8 + 5 * num_layers + 6))

    def nrm(shape, scale=0.1):
        return scale * jax.random.normal(next(keys), shape, dtype=jnp.float32)

    embed = nrm((vocab, D), 1.0)
    embed = embed.at[padding_idx].set(0.0)

    layers = []
    for _ in range(num_layers):
        layers.append(dict(
            W0=nrm((seq_len, D)),
            W1=nrm((seq_len, D)),
            Wcx=nrm((width, D, D)),
            Wca=nrm((width, D, D)),
            bc=nrm((1, D)),
        ))

    proj = dict(
        Wa=nrm((2 * D, D)), ba=nrm((1, D)),
        Wb=nrm((D, D // 2)), bb=nrm((1, D // 2)),
        Wc=nrm((D // 2, out_dim)), bc=nrm((1, out_dim)),
    )
    return dict(embed=embed, layers=layers, proj=proj)


if __name__ == "__main__":
    BATCH = 2
    SEQ_LEN = 8
    EMBED = 32
    WIDTH = 3
    NUM_LAYERS = 2
    VOCAB = 16
    OUT_DIM = 4
    PAD_IDX = 0

    root = jax.random.PRNGKey(0)
    k_tok0, k_tok1, k_params = jax.random.split(root, 3)

    sent0 = jax.random.randint(k_tok0, (BATCH, SEQ_LEN), 1, VOCAB,
                               dtype=jnp.int32)
    sent1 = jax.random.randint(k_tok1, (BATCH, SEQ_LEN), 1, VOCAB,
                               dtype=jnp.int32)
    # Introduce some padding tokens (but keep every row non-empty).
    sent0 = sent0.at[0, SEQ_LEN - 2:].set(PAD_IDX)
    sent1 = sent1.at[1, SEQ_LEN - 3:].set(PAD_IDX)

    params = make_params(k_params, vocab=VOCAB, embed_size=EMBED,
                         seq_len=SEQ_LEN, width=WIDTH, num_layers=NUM_LAYERS,
                         out_dim=OUT_DIM, padding_idx=PAD_IDX)

    fwd = jax.jit(functools.partial(abcnn_forward, padding_idx=PAD_IDX,
                                    width=WIDTH, num_layers=NUM_LAYERS,
                                    out_dim=OUT_DIM))
    y = fwd(sent0, sent1, params)
    jax.block_until_ready(y)
    assert y.shape == (BATCH, OUT_DIM)
    assert bool(jnp.all(jnp.isfinite(y)))
    print("KERNEL_OK")
</pallas_src>

<mosaic_0001>
module attributes {stable_mosaic.version = 11 : i64} {
  func.func @abcnn_fused_kernel(%arg0: i32, %arg1: memref<1x8x128xf32, #tpu.memory_space<vmem>>, %arg2: memref<1x8x128xf32, #tpu.memory_space<vmem>>, %arg3: memref<1x8x8xf32, #tpu.memory_space<vmem>>, %arg4: memref<1x8x8xf32, #tpu.memory_space<vmem>>, %arg5: memref<1x8x1xf32, #tpu.memory_space<vmem>>, %arg6: memref<1x8x1xf32, #tpu.memory_space<vmem>>, %arg7: memref<2x8x128xbf16, #tpu.memory_space<vmem>>, %arg8: memref<2x8x128xbf16, #tpu.memory_space<vmem>>, %arg9: memref<2x128x384xbf16, #tpu.memory_space<vmem>>, %arg10: memref<2x1x128xf32, #tpu.memory_space<vmem>>, %arg11: memref<128x128xbf16, #tpu.memory_space<vmem>>, %arg12: memref<128x128xbf16, #tpu.memory_space<vmem>>, %arg13: memref<1x128xf32, #tpu.memory_space<vmem>>, %arg14: memref<128x128xbf16, #tpu.memory_space<vmem>>, %arg15: memref<1x128xf32, #tpu.memory_space<vmem>>, %arg16: memref<128x128xbf16, #tpu.memory_space<vmem>>, %arg17: memref<1x128xf32, #tpu.memory_space<vmem>>, %arg18: memref<1x1x128xf32, #tpu.memory_space<vmem>>) attributes {dimension_semantics = [#tpu.dimension_semantics<parallel>], iteration_bounds = array<i64: 2>, scalar_prefetch = 0 : i64, scratch_operands = 0 : i64, tpu.core_type = #tpu.core_type<tc>, window_params = [{transform_indices = @transform_0, window_bounds = array<i64: 1, 8, 128>}, {transform_indices = @transform_1, window_bounds = array<i64: 1, 8, 128>}, {transform_indices = @transform_2, window_bounds = array<i64: 1, 8, 8>}, {transform_indices = @transform_3, window_bounds = array<i64: 1, 8, 8>}, {transform_indices = @transform_4, window_bounds = array<i64: 1, 8, 1>}, {transform_indices = @transform_5, window_bounds = array<i64: 1, 8, 1>}, {pipeline_mode = #tpu.pipeline_mode<synchronous>, transform_indices = @transform_6, window_bounds = array<i64: 2, 8, 128>}, {pipeline_mode = #tpu.pipeline_mode<synchronous>, transform_indices = @transform_7, window_bounds = array<i64: 2, 8, 128>}, {pipeline_mode = #tpu.pipeline_mode<synchronous>, transform_indices = @transform_8, window_bounds = array<i64: 2, 128, 384>}, {pipeline_mode = #tpu.pipeline_mode<synchronous>, transform_indices = @transform_9, window_bounds = array<i64: 2, 1, 128>}, {pipeline_mode = #tpu.pipeline_mode<synchronous>, transform_indices = @transform_10, window_bounds = array<i64: 128, 128>}, {pipeline_mode = #tpu.pipeline_mode<synchronous>, transform_indices = @transform_11, window_bounds = array<i64: 128, 128>}, {pipeline_mode = #tpu.pipeline_mode<synchronous>, transform_indices = @transform_12, window_bounds = array<i64: 1, 128>}, {pipeline_mode = #tpu.pipeline_mode<synchronous>, transform_indices = @transform_13, window_bounds = array<i64: 128, 128>}, {pipeline_mode = #tpu.pipeline_mode<synchronous>, transform_indices = @transform_14, window_bounds = array<i64: 1, 128>}, {pipeline_mode = #tpu.pipeline_mode<synchronous>, transform_indices = @transform_15, window_bounds = array<i64: 128, 128>}, {pipeline_mode = #tpu.pipeline_mode<synchronous>, transform_indices = @transform_16, window_bounds = array<i64: 1, 128>}, {transform_indices = @transform_17, window_bounds = array<i64: 1, 1, 128>}]} {
    %c0 = arith.constant 0 : index
    %c0_0 = arith.constant 0 : index
    %c0_1 = arith.constant 0 : index
    %0 = vector.load %arg1[%c0, %c0_0, %c0_1] : memref<1x8x128xf32, #tpu.memory_space<vmem>>, vector<1x8x128xf32>
    %c0_2 = arith.constant 0 : index
    %c0_3 = arith.constant 0 : index
    %c0_4 = arith.constant 0 : index
    %1 = vector.load %arg2[%c0_2, %c0_3, %c0_4] : memref<1x8x128xf32, #tpu.memory_space<vmem>>, vector<1x8x128xf32>
    %c0_5 = arith.constant 0 : index
    %c0_6 = arith.constant 0 : index
    %c0_7 = arith.constant 0 : index
    %2 = vector.load %arg3[%c0_5, %c0_6, %c0_7] : memref<1x8x8xf32, #tpu.memory_space<vmem>>, vector<1x8x8xf32>
    %c0_8 = arith.constant 0 : index
    %c0_9 = arith.constant 0 : index
    %c0_10 = arith.constant 0 : index
    %3 = vector.load %arg4[%c0_8, %c0_9, %c0_10] : memref<1x8x8xf32, #tpu.memory_space<vmem>>, vector<1x8x8xf32>
    %4 = vector.shape_cast %0 : vector<1x8x128xf32> to vector<1x8x1x128xf32>
    %5 = vector.shape_cast %1 : vector<1x8x128xf32> to vector<1x1x8x128xf32>
    %6 = vector.broadcast %4 : vector<1x8x1x128xf32> to vector<1x8x8x128xf32>
    %7 = vector.broadcast %5 : vector<1x1x8x128xf32> to vector<1x8x8x128xf32>
    %8 = arith.subf %6, %7 : vector<1x8x8x128xf32>
    %9 = arith.mulf %8, %8 : vector<1x8x8x128xf32>
    %cst = arith.constant dense<0.000000e+00> : vector<1x8x8xf32>
    %10 = vector.multi_reduction <add>, %9, %cst [3] : vector<1x8x8x128xf32> to vector<1x8x8xf32>
    %11 = vector.shape_cast %1 : vector<1x8x128xf32> to vector<1x8x1x128xf32>
    %12 = vector.shape_cast %0 : vector<1x8x128xf32> to vector<1x1x8x128xf32>
    %13 = vector.broadcast %11 : vector<1x8x1x128xf32> to vector<1x8x8x128xf32>
    %14 = vector.broadcast %12 : vector<1x1x8x128xf32> to vector<1x8x8x128xf32>
    %15 = arith.subf %13, %14 : vector<1x8x8x128xf32>
    %16 = arith.mulf %15, %15 : vector<1x8x8x128xf32>
    %cst_11 = arith.constant dense<0.000000e+00> : vector<1x8x8xf32>
    %17 = vector.multi_reduction <add>, %16, %cst_11 [3] : vector<1x8x8x128xf32> to vector<1x8x8xf32>
    %18 = math.sqrt %10 : vector<1x8x8xf32>
    %cst_12 = arith.constant 1.000000e+00 : f32
    %19 = vector.broadcast %cst_12 : f32 to vector<1x8x8xf32>
    %20 = arith.addf %19, %18 : vector<1x8x8xf32>
    %21 = arith.divf %2, %20 : vector<1x8x8xf32>
    %22 = math.sqrt %17 : vector<1x8x8xf32>
    %cst_13 = arith.constant 1.000000e+00 : f32
    %23 = vector.broadcast %cst_13 : f32 to vector<1x8x8xf32>
    %24 = arith.addf %23, %22 : vector<1x8x8xf32>
    %25 = arith.divf %3, %24 : vector<1x8x8xf32>
    %c0_14 = arith.constant 0 : index
    %c0_15 = arith.constant 0 : index
    %c0_16 = arith.constant 0 : index
    %26 = vector.load %arg7[%c0_14, %c0_15, %c0_16] : memref<2x8x128xbf16, #tpu.memory_space<vmem>>, vector<1x8x128xbf16>
    %27 = vector.shape_cast %26 : vector<1x8x128xbf16> to vector<8x128xbf16>
    %c0_17 = arith.constant 0 : index
    %c0_18 = arith.constant 0 : index
    %c0_19 = arith.constant 0 : index
    %28 = vector.load %arg8[%c0_17, %c0_18, %c0_19] : memref<2x8x128xbf16, #tpu.memory_space<vmem>>, vector<1x8x128xbf16>
    %29 = vector.shape_cast %28 : vector<1x8x128xbf16> to vector<8x128xbf16>
    %30 = vector.shape_cast %21 : vector<1x8x8xf32> to vector<8x8xf32>
    %31 = arith.truncf %30 : vector<8x8xf32> to vector<8x8xbf16>
    %cst_20 = arith.constant dense<0.000000e+00> : vector<8x128xf32>
    %32 = tpu.matmul %31, %27, %cst_20 {dimension_numbers = #tpu.dot_dimension_numbers<[1], [0], [0], [1], [0, 0, 1, 1], [], []>} : vector<8x8xbf16>, vector<8x128xbf16>, vector<8x128xf32> -> vector<8x128xf32>
    %33 = vector.shape_cast %32 : vector<8x128xf32> to vector<1x8x128xf32>
    %34 = vector.shape_cast %25 : vector<1x8x8xf32> to vector<8x8xf32>
    %35 = arith.truncf %34 : vector<8x8xf32> to vector<8x8xbf16>
    %cst_21 = arith.constant dense<0.000000e+00> : vector<8x128xf32>
    %36 = tpu.matmul %35, %29, %cst_21 {dimension_numbers = #tpu.dot_dimension_numbers<[1], [0], [0], [1], [0, 0, 1, 1], [], []>} : vector<8x8xbf16>, vector<8x128xbf16>, vector<8x128xf32> -> vector<8x128xf32>
    %37 = vector.shape_cast %36 : vector<8x128xf32> to vector<1x8x128xf32>
    %38 = arith.addf %0, %33 : vector<1x8x128xf32>
    %39 = arith.addf %1, %37 : vector<1x8x128xf32>
    %40 = tpu.concatenate %38, %39 in 0 : vector<1x8x128xf32>, vector<1x8x128xf32> -> vector<2x8x128xf32>
    %41 = vector.shape_cast %40 : vector<2x8x128xf32> to vector<16x128xf32>
    %42 = arith.truncf %41 : vector<16x128xf32> to vector<16x128xbf16>
    %c0_22 = arith.constant 0 : index
    %c0_23 = arith.constant 0 : index
    %c0_24 = arith.constant 0 : index
    %43 = vector.load %arg9[%c0_22, %c0_23, %c0_24] : memref<2x128x384xbf16, #tpu.memory_space<vmem>>, vector<1x128x384xbf16>
    %44 = vector.shape_cast %43 : vector<1x128x384xbf16> to vector<128x384xbf16>
    %cst_25 = arith.constant dense<0.000000e+00> : vector<16x384xf32>
    %45 = tpu.matmul %42, %44, %cst_25 {dimension_numbers = #tpu.dot_dimension_numbers<[1], [0], [0], [1], [0, 0, 1, 1], [], []>} : vector<16x128xbf16>, vector<128x384xbf16>, vector<16x384xf32> -> vector<16x384xf32>
    %46 = vector.shape_cast %45 : vector<16x384xf32> to vector<2x8x384xf32>
    %cst_26 = arith.constant 0.000000e+00 : f32
    %47 = vector.broadcast %cst_26 : f32 to vector<2x8x384xf32>
    %cst_27 = arith.constant 0.000000e+00 : f32
    %48 = vector.broadcast %cst_27 : f32 to vector<2x8x384xf32>
    %49 = tpu.concatenate %47, %46, %48 in 1 : vector<2x8x384xf32>, vector<2x8x384xf32>, vector<2x8x384xf32> -> vector<2x24x384xf32>
    %cst_28 = arith.constant 0.000000e+00 : f32
    %50 = vector.broadcast %cst_28 : f32 to vector<2x16x128xf32>
    %51 = vector.extract_strided_slice %49 {offsets = [0, 6, 0], sizes = [2, 16, 128], strides = [1, 1, 1]} : vector<2x24x384xf32> to vector<2x16x128xf32>
    %52 = arith.addf %50, %51 : vector<2x16x128xf32>
    %53 = vector.extract_strided_slice %49 {offsets = [0, 7, 128], sizes = [2, 16, 128], strides = [1, 1, 1]} : vector<2x24x384xf32> to vector<2x16x128xf32>
    %54 = arith.addf %52, %53 : vector<2x16x128xf32>
    %55 = vector.extract_strided_slice %49 {offsets = [0, 8, 256], sizes = [2, 16, 128], strides = [1, 1, 1]} : vector<2x24x384xf32> to vector<2x16x128xf32>
    %56 = arith.addf %54, %55 : vector<2x16x128xf32>
    %c0_29 = arith.constant 0 : index
    %c0_30 = arith.constant 0 : index
    %c0_31 = arith.constant 0 : index
    %57 = vector.load %arg10[%c0_29, %c0_30, %c0_31] : memref<2x1x128xf32, #tpu.memory_space<vmem>>, vector<1x1x128xf32>
    %58 = vector.shape_cast %57 : vector<1x1x128xf32> to vector<1x128xf32>
    %59 = vector.shape_cast %58 : vector<1x128xf32> to vector<1x1x128xf32>
    %60 = vector.broadcast %59 : vector<1x1x128xf32> to vector<2x16x128xf32>
    %61 = arith.addf %56, %60 : vector<2x16x128xf32>
    %62 = math.tanh %61 : vector<2x16x128xf32>
    %cst_32 = arith.constant 0.000000e+00 : f32
    %63 = vector.broadcast %cst_32 : f32 to vector<2x8x128xf32>
    %64 = vector.extract_strided_slice %62 {offsets = [0, 0, 0], sizes = [2, 8, 128], strides = [1, 1, 1]} : vector<2x16x128xf32> to vector<2x8x128xf32>
    %65 = arith.addf %63, %64 : vector<2x8x128xf32>
    %66 = vector.extract_strided_slice %62 {offsets = [0, 1, 0], sizes = [2, 8, 128], strides = [1, 1, 1]} : vector<2x16x128xf32> to vector<2x8x128xf32>
    %67 = arith.addf %65, %66 : vector<2x8x128xf32>
    %68 = vector.extract_strided_slice %62 {offsets = [0, 2, 0], sizes = [2, 8, 128], strides = [1, 1, 1]} : vector<2x16x128xf32> to vector<2x8x128xf32>
    %69 = arith.addf %67, %68 : vector<2x8x128xf32>
    %cst_33 = arith.constant 0.333333343 : f32
    %70 = vector.broadcast %cst_33 : f32 to vector<2x8x128xf32>
    %71 = arith.mulf %69, %70 : vector<2x8x128xf32>
    %72 = vector.extract_strided_slice %71 {offsets = [0, 0, 0], sizes = [1, 8, 128], strides = [1, 1, 1]} : vector<2x8x128xf32> to vector<1x8x128xf32>
    %73 = vector.extract_strided_slice %71 {offsets = [1, 0, 0], sizes = [1, 8, 128], strides = [1, 1, 1]} : vector<2x8x128xf32> to vector<1x8x128xf32>
    %74 = vector.shape_cast %72 : vector<1x8x128xf32> to vector<1x8x1x128xf32>
    %75 = vector.shape_cast %73 : vector<1x8x128xf32> to vector<1x1x8x128xf32>
    %76 = vector.broadcast %74 : vector<1x8x1x128xf32> to vector<1x8x8x128xf32>
    %77 = vector.broadcast %75 : vector<1x1x8x128xf32> to vector<1x8x8x128xf32>
    %78 = arith.subf %76, %77 : vector<1x8x8x128xf32>
    %79 = arith.mulf %78, %78 : vector<1x8x8x128xf32>
    %cst_34 = arith.constant dense<0.000000e+00> : vector<1x8x8xf32>
    %80 = vector.multi_reduction <add>, %79, %cst_34 [3] : vector<1x8x8x128xf32> to vector<1x8x8xf32>
    %81 = vector.shape_cast %73 : vector<1x8x128xf32> to vector<1x8x1x128xf32>
    %82 = vector.shape_cast %72 : vector<1x8x128xf32> to vector<1x1x8x128xf32>
    %83 = vector.broadcast %81 : vector<1x8x1x128xf32> to vector<1x8x8x128xf32>
    %84 = vector.broadcast %82 : vector<1x1x8x128xf32> to vector<1x8x8x128xf32>
    %85 = arith.subf %83, %84 : vector<1x8x8x128xf32>
    %86 = arith.mulf %85, %85 : vector<1x8x8x128xf32>
    %cst_35 = arith.constant dense<0.000000e+00> : vector<1x8x8xf32>
    %87 = vector.multi_reduction <add>, %86, %cst_35 [3] : vector<1x8x8x128xf32> to vector<1x8x8xf32>
    %88 = math.sqrt %80 : vector<1x8x8xf32>
    %cst_36 = arith.constant 1.000000e+00 : f32
    %89 = vector.broadcast %cst_36 : f32 to vector<1x8x8xf32>
    %90 = arith.addf %89, %88 : vector<1x8x8xf32>
    %91 = arith.divf %2, %90 : vector<1x8x8xf32>
    %92 = math.sqrt %87 : vector<1x8x8xf32>
    %cst_37 = arith.constant 1.000000e+00 : f32
    %93 = vector.broadcast %cst_37 : f32 to vector<1x8x8xf32>
    %94 = arith.addf %93, %92 : vector<1x8x8xf32>
    %95 = arith.divf %3, %94 : vector<1x8x8xf32>
    %c1 = arith.constant 1 : index
    %c0_38 = arith.constant 0 : index
    %c0_39 = arith.constant 0 : index
    %96 = vector.load %arg7[%c1, %c0_38, %c0_39] : memref<2x8x128xbf16, #tpu.memory_space<vmem>>, vector<1x8x128xbf16>
    %97 = vector.shape_cast %96 : vector<1x8x128xbf16> to vector<8x128xbf16>
    %c1_40 = arith.constant 1 : index
    %c0_41 = arith.constant 0 : index
    %c0_42 = arith.constant 0 : index
    %98 = vector.load %arg8[%c1_40, %c0_41, %c0_42] : memref<2x8x128xbf16, #tpu.memory_space<vmem>>, vector<1x8x128xbf16>
    %99 = vector.shape_cast %98 : vector<1x8x128xbf16> to vector<8x128xbf16>
    %100 = vector.shape_cast %91 : vector<1x8x8xf32> to vector<8x8xf32>
    %101 = arith.truncf %100 : vector<8x8xf32> to vector<8x8xbf16>
    %cst_43 = arith.constant dense<0.000000e+00> : vector<8x128xf32>
    %102 = tpu.matmul %101, %97, %cst_43 {dimension_numbers = #tpu.dot_dimension_numbers<[1], [0], [0], [1], [0, 0, 1, 1], [], []>} : vector<8x8xbf16>, vector<8x128xbf16>, vector<8x128xf32> -> vector<8x128xf32>
    %103 = vector.shape_cast %102 : vector<8x128xf32> to vector<1x8x128xf32>
    %104 = vector.shape_cast %95 : vector<1x8x8xf32> to vector<8x8xf32>
    %105 = arith.truncf %104 : vector<8x8xf32> to vector<8x8xbf16>
    %cst_44 = arith.constant dense<0.000000e+00> : vector<8x128xf32>
    %106 = tpu.matmul %105, %99, %cst_44 {dimension_numbers = #tpu.dot_dimension_numbers<[1], [0], [0], [1], [0, 0, 1, 1], [], []>} : vector<8x8xbf16>, vector<8x128xbf16>, vector<8x128xf32> -> vector<8x128xf32>
    %107 = vector.shape_cast %106 : vector<8x128xf32> to vector<1x8x128xf32>
    %108 = arith.addf %72, %103 : vector<1x8x128xf32>
    %109 = arith.addf %73, %107 : vector<1x8x128xf32>
    %110 = tpu.concatenate %108, %109 in 0 : vector<1x8x128xf32>, vector<1x8x128xf32> -> vector<2x8x128xf32>
    %111 = vector.shape_cast %110 : vector<2x8x128xf32> to vector<16x128xf32>
    %112 = arith.truncf %111 : vector<16x128xf32> to vector<16x128xbf16>
    %c1_45 = arith.constant 1 : index
    %c0_46 = arith.constant 0 : index
    %c0_47 = arith.constant 0 : index
    %113 = vector.load %arg9[%c1_45, %c0_46, %c0_47] : memref<2x128x384xbf16, #tpu.memory_space<vmem>>, vector<1x128x384xbf16>
    %114 = vector.shape_cast %113 : vector<1x128x384xbf16> to vector<128x384xbf16>
    %cst_48 = arith.constant dense<0.000000e+00> : vector<16x384xf32>
    %115 = tpu.matmul %112, %114, %cst_48 {dimension_numbers = #tpu.dot_dimension_numbers<[1], [0], [0], [1], [0, 0, 1, 1], [], []>} : vector<16x128xbf16>, vector<128x384xbf16>, vector<16x384xf32> -> vector<16x384xf32>
    %116 = vector.shape_cast %115 : vector<16x384xf32> to vector<2x8x384xf32>
    %cst_49 = arith.constant 0.000000e+00 : f32
    %117 = vector.broadcast %cst_49 : f32 to vector<2x8x384xf32>
    %cst_50 = arith.constant 0.000000e+00 : f32
    %118 = vector.broadcast %cst_50 : f32 to vector<2x8x384xf32>
    %119 = tpu.concatenate %117, %116, %118 in 1 : vector<2x8x384xf32>, vector<2x8x384xf32>, vector<2x8x384xf32> -> vector<2x24x384xf32>
    %cst_51 = arith.constant 0.000000e+00 : f32
    %120 = vector.broadcast %cst_51 : f32 to vector<2x16x128xf32>
    %121 = vector.extract_strided_slice %119 {offsets = [0, 6, 0], sizes = [2, 16, 128], strides = [1, 1, 1]} : vector<2x24x384xf32> to vector<2x16x128xf32>
    %122 = arith.addf %120, %121 : vector<2x16x128xf32>
    %123 = vector.extract_strided_slice %119 {offsets = [0, 7, 128], sizes = [2, 16, 128], strides = [1, 1, 1]} : vector<2x24x384xf32> to vector<2x16x128xf32>
    %124 = arith.addf %122, %123 : vector<2x16x128xf32>
    %125 = vector.extract_strided_slice %119 {offsets = [0, 8, 256], sizes = [2, 16, 128], strides = [1, 1, 1]} : vector<2x24x384xf32> to vector<2x16x128xf32>
    %126 = arith.addf %124, %125 : vector<2x16x128xf32>
    %c1_52 = arith.constant 1 : index
    %c0_53 = arith.constant 0 : index
    %c0_54 = arith.constant 0 : index
    %127 = vector.load %arg10[%c1_52, %c0_53, %c0_54] : memref<2x1x128xf32, #tpu.memory_space<vmem>>, vector<1x1x128xf32>
    %128 = vector.shape_cast %127 : vector<1x1x128xf32> to vector<1x128xf32>
    %129 = vector.shape_cast %128 : vector<1x128xf32> to vector<1x1x128xf32>
    %130 = vector.broadcast %129 : vector<1x1x128xf32> to vector<2x16x128xf32>
    %131 = arith.addf %126, %130 : vector<2x16x128xf32>
    %132 = math.tanh %131 : vector<2x16x128xf32>
    %cst_55 = arith.constant 0.000000e+00 : f32
    %133 = vector.broadcast %cst_55 : f32 to vector<2x8x128xf32>
    %134 = vector.extract_strided_slice %132 {offsets = [0, 0, 0], sizes = [2, 8, 128], strides = [1, 1, 1]} : vector<2x16x128xf32> to vector<2x8x128xf32>
    %135 = arith.addf %133, %134 : vector<2x8x128xf32>
    %136 = vector.extract_strided_slice %132 {offsets = [0, 1, 0], sizes = [2, 8, 128], strides = [1, 1, 1]} : vector<2x16x128xf32> to vector<2x8x128xf32>
    %137 = arith.addf %135, %136 : vector<2x8x128xf32>
    %138 = vector.extract_strided_slice %132 {offsets = [0, 2, 0], sizes = [2, 8, 128], strides = [1, 1, 1]} : vector<2x16x128xf32> to vector<2x8x128xf32>
    %139 = arith.addf %137, %138 : vector<2x8x128xf32>
    %cst_56 = arith.constant 0.333333343 : f32
    %140 = vector.broadcast %cst_56 : f32 to vector<2x8x128xf32>
    %141 = arith.mulf %139, %140 : vector<2x8x128xf32>
    %142 = vector.extract_strided_slice %141 {offsets = [0, 0, 0], sizes = [1, 8, 128], strides = [1, 1, 1]} : vector<2x8x128xf32> to vector<1x8x128xf32>
    %143 = vector.extract_strided_slice %141 {offsets = [1, 0, 0], sizes = [1, 8, 128], strides = [1, 1, 1]} : vector<2x8x128xf32> to vector<1x8x128xf32>
    %c0_57 = arith.constant 0 : index
    %c0_58 = arith.constant 0 : index
    %c0_59 = arith.constant 0 : index
    %144 = vector.load %arg5[%c0_57, %c0_58, %c0_59] : memref<1x8x1xf32, #tpu.memory_space<vmem>>, vector<1x8x1xf32>
    %c0_60 = arith.constant 0 : index
    %c0_61 = arith.constant 0 : index
    %c0_62 = arith.constant 0 : index
    %145 = vector.load %arg6[%c0_60, %c0_61, %c0_62] : memref<1x8x1xf32, #tpu.memory_space<vmem>>, vector<1x8x1xf32>
    %cst_63 = arith.constant dense<0.000000e+00> : vector<1x1xf32>
    %146 = vector.multi_reduction <add>, %144, %cst_63 [1] : vector<1x8x1xf32> to vector<1x1xf32>
    %cst_64 = arith.constant 1.000000e+00 : f32
    %147 = vector.broadcast %cst_64 : f32 to vector<1x1xf32>
    %148 = arith.maximumf %146, %147 : vector<1x1xf32>
    %cst_65 = arith.constant dense<0.000000e+00> : vector<1x1xf32>
    %149 = vector.multi_reduction <add>, %145, %cst_65 [1] : vector<1x8x1xf32> to vector<1x1xf32>
    %cst_66 = arith.constant 1.000000e+00 : f32
    %150 = vector.broadcast %cst_66 : f32 to vector<1x1xf32>
    %151 = arith.maximumf %149, %150 : vector<1x1xf32>
    %152 = vector.broadcast %144 : vector<1x8x1xf32> to vector<1x8x128xf32>
    %153 = arith.mulf %142, %152 : vector<1x8x128xf32>
    %cst_67 = arith.constant dense<0.000000e+00> : vector<1x128xf32>
    %154 = vector.multi_reduction <add>, %153, %cst_67 [1] : vector<1x8x128xf32> to vector<1x128xf32>
    %155 = vector.broadcast %148 : vector<1x1xf32> to vector<1x128xf32>
    %156 = arith.divf %154, %155 : vector<1x128xf32>
    %157 = vector.broadcast %145 : vector<1x8x1xf32> to vector<1x8x128xf32>
    %158 = arith.mulf %143, %157 : vector<1x8x128xf32>
    %cst_68 = arith.constant dense<0.000000e+00> : vector<1x128xf32>
    %159 = vector.multi_reduction <add>, %158, %cst_68 [1] : vector<1x8x128xf32> to vector<1x128xf32>
    %160 = vector.broadcast %151 : vector<1x1xf32> to vector<1x128xf32>
    %161 = arith.divf %159, %160 : vector<1x128xf32>
    %162 = arith.truncf %156 : vector<1x128xf32> to vector<1x128xbf16>
    %c0_69 = arith.constant 0 : index
    %c0_70 = arith.constant 0 : index
    %163 = vector.load %arg11[%c0_69, %c0_70] : memref<128x128xbf16, #tpu.memory_space<vmem>>, vector<128x128xbf16>
    %cst_71 = arith.constant dense<0.000000e+00> : vector<1x128xf32>
    %164 = tpu.matmul %162, %163, %cst_71 {dimension_numbers = #tpu.dot_dimension_numbers<[1], [0], [0], [1], [0, 0, 1, 1], [], []>} : vector<1x128xbf16>, vector<128x128xbf16>, vector<1x128xf32> -> vector<1x128xf32>
    %165 = arith.truncf %161 : vector<1x128xf32> to vector<1x128xbf16>
    %c0_72 = arith.constant 0 : index
    %c0_73 = arith.constant 0 : index
    %166 = vector.load %arg12[%c0_72, %c0_73] : memref<128x128xbf16, #tpu.memory_space<vmem>>, vector<128x128xbf16>
    %cst_74 = arith.constant dense<0.000000e+00> : vector<1x128xf32>
    %167 = tpu.matmul %165, %166, %cst_74 {dimension_numbers = #tpu.dot_dimension_numbers<[1], [0], [0], [1], [0, 0, 1, 1], [], []>} : vector<1x128xbf16>, vector<128x128xbf16>, vector<1x128xf32> -> vector<1x128xf32>
    %168 = arith.addf %164, %167 : vector<1x128xf32>
    %c0_75 = arith.constant 0 : index
    %c0_76 = arith.constant 0 : index
    %169 = vector.load %arg13[%c0_75, %c0_76] : memref<1x128xf32, #tpu.memory_space<vmem>>, vector<1x128xf32>
    %170 = arith.addf %168, %169 : vector<1x128xf32>
    %cst_77 = arith.constant 0.000000e+00 : f32
    %171 = vector.broadcast %cst_77 : f32 to vector<1x128xf32>
    %172 = arith.maximumf %170, %171 : vector<1x128xf32>
    %173 = arith.truncf %172 : vector<1x128xf32> to vector<1x128xbf16>
    %c0_78 = arith.constant 0 : index
    %c0_79 = arith.constant 0 : index
    %174 = vector.load %arg14[%c0_78, %c0_79] : memref<128x128xbf16, #tpu.memory_space<vmem>>, vector<128x128xbf16>
    %cst_80 = arith.constant dense<0.000000e+00> : vector<1x128xf32>
    %175 = tpu.matmul %173, %174, %cst_80 {dimension_numbers = #tpu.dot_dimension_numbers<[1], [0], [0], [1], [0, 0, 1, 1], [], []>} : vector<1x128xbf16>, vector<128x128xbf16>, vector<1x128xf32> -> vector<1x128xf32>
    %c0_81 = arith.constant 0 : index
    %c0_82 = arith.constant 0 : index
    %176 = vector.load %arg15[%c0_81, %c0_82] : memref<1x128xf32, #tpu.memory_space<vmem>>, vector<1x128xf32>
    %177 = arith.addf %175, %176 : vector<1x128xf32>
    %cst_83 = arith.constant 0.000000e+00 : f32
    %178 = vector.broadcast %cst_83 : f32 to vector<1x128xf32>
    %179 = arith.maximumf %177, %178 : vector<1x128xf32>
    %180 = arith.truncf %179 : vector<1x128xf32> to vector<1x128xbf16>
    %c0_84 = arith.constant 0 : index
    %c0_85 = arith.constant 0 : index
    %181 = vector.load %arg16[%c0_84, %c0_85] : memref<128x128xbf16, #tpu.memory_space<vmem>>, vector<128x128xbf16>
    %cst_86 = arith.constant dense<0.000000e+00> : vector<1x128xf32>
    %182 = tpu.matmul %180, %181, %cst_86 {dimension_numbers = #tpu.dot_dimension_numbers<[1], [0], [0], [1], [0, 0, 1, 1], [], []>} : vector<1x128xbf16>, vector<128x128xbf16>, vector<1x128xf32> -> vector<1x128xf32>
    %c0_87 = arith.constant 0 : index
    %c0_88 = arith.constant 0 : index
    %183 = vector.load %arg17[%c0_87, %c0_88] : memref<1x128xf32, #tpu.memory_space<vmem>>, vector<1x128xf32>
    %184 = arith.addf %182, %183 : vector<1x128xf32>
    %185 = vector.shape_cast %184 : vector<1x128xf32> to vector<1x1x128xf32>
    %c0_89 = arith.constant 0 : index
    %c0_90 = arith.constant 0 : index
    %c0_91 = arith.constant 0 : index
    %186 = vector.load %arg18[%c0_89, %c0_90, %c0_91] : memref<1x1x128xf32, #tpu.memory_space<vmem>>, vector<1x1x128xf32>
    tpu.vector_store %arg18[%c0_89, %c0_90, %c0_91], %185 {strides = array<i32>} : memref<1x1x128xf32, #tpu.memory_space<vmem>>, vector<1x1x128xf32>,
    return
  }
  func.func @transform_0(%arg0: i32) -> (i32, i32, i32) {
    %c0_i32 = arith.constant 0 : i32
    %c0_i32_0 = arith.constant 0 : i32
    %c0_i32_1 = arith.constant 0 : i32
    return %arg0, %c0_i32, %c0_i32_0 : i32, i32, i32
  }
  func.func @transform_1(%arg0: i32) -> (i32, i32, i32) {
    %c0_i32 = arith.constant 0 : i32
    %c0_i32_0 = arith.constant 0 : i32
    %c0_i32_1 = arith.constant 0 : i32
    return %arg0, %c0_i32, %c0_i32_0 : i32, i32, i32
  }
  func.func @transform_2(%arg0: i32) -> (i32, i32, i32) {
    %c0_i32 = arith.constant 0 : i32
    %c0_i32_0 = arith.constant 0 : i32
    %c0_i32_1 = arith.constant 0 : i32
    return %arg0, %c0_i32, %c0_i32_0 : i32, i32, i32
  }
  func.func @transform_3(%arg0: i32) -> (i32, i32, i32) {
    %c0_i32 = arith.constant 0 : i32
    %c0_i32_0 = arith.constant 0 : i32
    %c0_i32_1 = arith.constant 0 : i32
    return %arg0, %c0_i32, %c0_i32_0 : i32, i32, i32
  }
  func.func @transform_4(%arg0: i32) -> (i32, i32, i32) {
    %c0_i32 = arith.constant 0 : i32
    %c0_i32_0 = arith.constant 0 : i32
    %c0_i32_1 = arith.constant 0 : i32
    return %arg0, %c0_i32, %c0_i32_0 : i32, i32, i32
  }
  func.func @transform_5(%arg0: i32) -> (i32, i32, i32) {
    %c0_i32 = arith.constant 0 : i32
    %c0_i32_0 = arith.constant 0 : i32
    %c0_i32_1 = arith.constant 0 : i32
    return %arg0, %c0_i32, %c0_i32_0 : i32, i32, i32
  }
  func.func @transform_6(%arg0: i32) -> (i32, i32, i32) {
    %c0_i32 = arith.constant 0 : i32
    %c0_i32_0 = arith.constant 0 : i32
    %c0_i32_1 = arith.constant 0 : i32
    %c0_i32_2 = arith.constant 0 : i32
    return %c0_i32, %c0_i32_0, %c0_i32_1 : i32, i32, i32
  }
  func.func @transform_7(%arg0: i32) -> (i32, i32, i32) {
    %c0_i32 = arith.constant 0 : i32
    %c0_i32_0 = arith.constant 0 : i32
    %c0_i32_1 = arith.constant 0 : i32
    %c0_i32_2 = arith.constant 0 : i32
    return %c0_i32, %c0_i32_0, %c0_i32_1 : i32, i32, i32
  }
  func.func @transform_8(%arg0: i32) -> (i32, i32, i32) {
    %c0_i32 = arith.constant 0 : i32
    %c0_i32_0 = arith.constant 0 : i32
    %c0_i32_1 = arith.constant 0 : i32
    %c0_i32_2 = arith.constant 0 : i32
    return %c0_i32, %c0_i32_0, %c0_i32_1 : i32, i32, i32
  }
  func.func @transform_9(%arg0: i32) -> (i32, i32, i32) {
    %c0_i32 = arith.constant 0 : i32
    %c0_i32_0 = arith.constant 0 : i32
    %c0_i32_1 = arith.constant 0 : i32
    %c0_i32_2 = arith.constant 0 : i32
    return %c0_i32, %c0_i32_0, %c0_i32_1 : i32, i32, i32
  }
  func.func @transform_10(%arg0: i32) -> (i32, i32) {
    %c0_i32 = arith.constant 0 : i32
    %c0_i32_0 = arith.constant 0 : i32
    %c0_i32_1 = arith.constant 0 : i32
    return %c0_i32, %c0_i32_0 : i32, i32
  }
  func.func @transform_11(%arg0: i32) -> (i32, i32) {
    %c0_i32 = arith.constant 0 : i32
    %c0_i32_0 = arith.constant 0 : i32
    %c0_i32_1 = arith.constant 0 : i32
    return %c0_i32, %c0_i32_0 : i32, i32
  }
  func.func @transform_12(%arg0: i32) -> (i32, i32) {
    %c0_i32 = arith.constant 0 : i32
    %c0_i32_0 = arith.constant 0 : i32
    %c0_i32_1 = arith.constant 0 : i32
    return %c0_i32, %c0_i32_0 : i32, i32
  }
  func.func @transform_13(%arg0: i32) -> (i32, i32) {
    %c0_i32 = arith.constant 0 : i32
    %c0_i32_0 = arith.constant 0 : i32
    %c0_i32_1 = arith.constant 0 : i32
    return %c0_i32, %c0_i32_0 : i32, i32
  }
  func.func @transform_14(%arg0: i32) -> (i32, i32) {
    %c0_i32 = arith.constant 0 : i32
    %c0_i32_0 = arith.constant 0 : i32
    %c0_i32_1 = arith.constant 0 : i32
    return %c0_i32, %c0_i32_0 : i32, i32
  }
  func.func @transform_15(%arg0: i32) -> (i32, i32) {
    %c0_i32 = arith.constant 0 : i32
    %c0_i32_0 = arith.constant 0 : i32
    %c0_i32_1 = arith.constant 0 : i32
    return %c0_i32, %c0_i32_0 : i32, i32
  }
  func.func @transform_16(%arg0: i32) -> (i32, i32) {
    %c0_i32 = arith.constant 0 : i32
    %c0_i32_0 = arith.constant 0 : i32
    %c0_i32_1 = arith.constant 0 : i32
    return %c0_i32, %c0_i32_0 : i32, i32
  }
  func.func @transform_17(%arg0: i32) -> (i32, i32, i32) {
    %c0_i32 = arith.constant 0 : i32
    %c0_i32_0 = arith.constant 0 : i32
    %c0_i32_1 = arith.constant 0 : i32
    return %arg0, %c0_i32, %c0_i32_0 : i32, i32, i32
  }
}

</mosaic_0001>

<llo_original>
// kernel: abcnn_forward.1
$region0: #{abcnn_forward.1}
  #allocation0 [shape = 'u32[]', space=smem, size = 0x4, offset = 0x4, fixed_abs, tag = 'smem constant byte address 0x4 - core index']
  #allocation1 [shape = 'u32[72,128]{1,0:T(1,128)}', space=vmem, size = 0x9000, scoped, tag = 'internal scratch']
  %s0 = inlined_call_operand.vmem [shape: f32[2,8,128], index: 0, kind: input, shape index: {}]
  %s1 = inlined_call_operand.vmem [shape: f32[2,8,128], index: 1, kind: input, shape index: {}]
  %s2 = inlined_call_operand.vmem [shape: f32[2,8,8], index: 2, kind: input, shape index: {}]
  %s3 = inlined_call_operand.vmem [shape: f32[2,8,8], index: 3, kind: input, shape index: {}]
  %s4 = inlined_call_operand.vmem [shape: f32[2,8,1], index: 4, kind: input, shape index: {}]
  %s5 = inlined_call_operand.vmem [shape: f32[2,8,1], index: 5, kind: input, shape index: {}]
  %s6 = inlined_call_operand.vmem [shape: bf16[2,8,128], index: 6, kind: input, shape index: {}]
  %s7 = inlined_call_operand.vmem [shape: bf16[2,8,128], index: 7, kind: input, shape index: {}]
  %s8 = inlined_call_operand.vmem [shape: bf16[2,128,384], index: 8, kind: input, shape index: {}]
  %s9 = inlined_call_operand.vmem [shape: f32[2,1,128], index: 9, kind: input, shape index: {}]
  %s10 = inlined_call_operand.vmem [shape: bf16[128,128], index: 10, kind: input, shape index: {}]
  %s11 = inlined_call_operand.vmem [shape: bf16[128,128], index: 11, kind: input, shape index: {}]
  %s12 = inlined_call_operand.vmem [shape: f32[1,128], index: 12, kind: input, shape index: {}]
  %s13 = inlined_call_operand.vmem [shape: bf16[128,128], index: 13, kind: input, shape index: {}]
  %s14 = inlined_call_operand.vmem [shape: f32[1,128], index: 14, kind: input, shape index: {}]
  %s15 = inlined_call_operand.vmem [shape: bf16[128,128], index: 15, kind: input, shape index: {}]
  %s16 = inlined_call_operand.vmem [shape: f32[1,128], index: 16, kind: input, shape index: {}]
  %s17 = inlined_call_operand.hbm [shape: f32[2,1,128], index: 17, kind: output, shape index: {}]
  %s18 = sld [smem:[#allocation0]]
  $region101: #{abcnn_forward.1} parent=0
    _
  %s20 = ssub.s32 1, %s18
  %s21 = scalar_select 0, %s20, %s18
  $region1: #{abcnn_forward.1} parent=0
    #allocation2 [shape = 'u8[1024]{0}', space=vmem, size = 0x400, scoped, tag = 'output window, operand 0']
    #allocation3 [shape = 's32[2]{0}', space=sflag, size = 0x8, scoped, tag = 'scoped memory for abcnn_forward.1']
    %22 = vsyncpa [#allocation3], 0
    %s23 = scalar_lea.sflag [#allocation3], 1
    %24 = vsyncpa %s23, 0
    loop: start=0, step=1, limit=4
    $region2: #{abcnn_forward.1} parent=1 // loop_pre_header
      _
    $region3: #{abcnn_forward.1} parent=1 // loop_header
      %s26 = sphi 0, %s30
      %p27 = scmp.ge.s32.totalorder %s26, 4
      %s36 = sphi 0, %s38
      %s39 = sphi 0, %s36
      %s40 = sphi 0, %s39
      %s56 = sphi 0, %s40
      %s62 = sphi 0, %s64
      %s65 = sphi 0, %s62
      %s66 = sphi 0, %s65
      %s82 = sphi 0, %s66
      %s88 = sphi 0, %s90
      %s91 = sphi 0, %s88
      %s92 = sphi 0, %s91
      %s108 = sphi 0, %s92
      %s114 = sphi 0, %s116
      %s117 = sphi 0, %s114
      %s118 = sphi 0, %s117
      %s134 = sphi 0, %s118
      %s140 = sphi 0, %s142
      %s143 = sphi 0, %s140
      %s144 = sphi 0, %s143
      %s160 = sphi 0, %s144
      %s166 = sphi 0, %s168
      %s169 = sphi 0, %s166
      %s170 = sphi 0, %s169
      %s186 = sphi 0, %s170
      %s190 = sphi 0, %s190
      %s192 = sphi 0, %s190
      %s193 = sphi 0, %s192
      %s207 = sphi 0, %s193
      %s211 = sphi 0, %s211
      %s213 = sphi 0, %s211
      %s214 = sphi 0, %s213
      %s228 = sphi 0, %s214
      %s232 = sphi 0, %s232
      %s234 = sphi 0, %s232
      %s235 = sphi 0, %s234
      %s249 = sphi 0, %s235
      %s253 = sphi 0, %s253
      %s255 = sphi 0, %s253
      %s256 = sphi 0, %s255
      %s270 = sphi 0, %s256
      %s274 = sphi 0, %s274
      %s276 = sphi 0, %s274
      %s277 = sphi 0, %s276
      %s291 = sphi 0, %s277
      %s295 = sphi 0, %s295
      %s297 = sphi 0, %s295
      %s298 = sphi 0, %s297
      %s312 = sphi 0, %s298
      %s316 = sphi 0, %s316
      %s318 = sphi 0, %s316
      %s319 = sphi 0, %s318
      %s333 = sphi 0, %s319
      %s337 = sphi 0, %s337
      %s339 = sphi 0, %s337
      %s340 = sphi 0, %s339
      %s354 = sphi 0, %s340
      %s358 = sphi 0, %s358
      %s360 = sphi 0, %s358
      %s361 = sphi 0, %s360
      %s375 = sphi 0, %s361
      %s379 = sphi 0, %s379
      %s381 = sphi 0, %s379
      %s382 = sphi 0, %s381
      %s396 = sphi 0, %s382
      %s400 = sphi 0, %s400
      %s402 = sphi 0, %s400
      %s403 = sphi 0, %s402
      %s417 = sphi 0, %s403
      %s423 = sphi 0, %s425
      %s426 = sphi 0, %s423
      %s427 = sphi 0, %s426
      %s443 = sphi 0, %s427
    $region4: #{abcnn_forward.1} parent=1 // loop_header_branch
      %29 = sbr.rel (%p27) target = $region8
    $region5: #{abcnn_forward.1} parent=1 // loop_body
      %s31 = ssub.s32 %s26, 1
      %s32 = ssub.s32 %s26, 2
      %s33 = sadd.s32 %s26, 1
      %s34 = ssub.s32 %s26, %s33
      %p35 = scmp.eq.s32.totalorder %s34, 0
      %s37 = sadd.s32 %s36, 1
      %s38 = scalar_select %p35, %s36, %s37
      %p41 = pneg %p35
      %p42 = scmp.eq.s32.totalorder %s26, 1
      %p43 = por %p41, %p42
      %p44 = scmp.ne.s32.totalorder %s36, %s39
      %p45 = scmp.eq.s32.totalorder %s26, 0
      %p46 = por %p44, %p45
      %p47 = scmp.ne.s32.totalorder %s36, %s39
      %p48 = scmp.eq.s32.totalorder %s31, 1
      %p49 = por %p47, %p48
      %p50 = scmp.ne.s32.totalorder %s39, %s40
      %p51 = scmp.eq.s32.totalorder %s31, 0
      %p52 = por %p50, %p51
      %p53 = scmp.ne.s32.totalorder %s39, %s40
      %p54 = scmp.eq.s32.totalorder %s32, 1
      %p55 = por %p53, %p54
      %p57 = scmp.ne.s32.totalorder %s40, %s56
      %p58 = scmp.eq.s32.totalorder %s32, 0
      %p59 = por %p57, %p58
      %s60 = ssub.s32 %s26, %s33
      %p61 = scmp.eq.s32.totalorder %s60, 0
      %s63 = sadd.s32 %s62, 1
      %s64 = scalar_select %p61, %s62, %s63
      %p67 = pneg %p61
      %p68 = scmp.eq.s32.totalorder %s26, 1
      %p69 = por %p67, %p68
      %p70 = scmp.ne.s32.totalorder %s62, %s65
      %p71 = scmp.eq.s32.totalorder %s26, 0
      %p72 = por %p70, %p71
      %p73 = scmp.ne.s32.totalorder %s62, %s65
      %p74 = scmp.eq.s32.totalorder %s31, 1
      %p75 = por %p73, %p74
      %p76 = scmp.ne.s32.totalorder %s65, %s66
      %p77 = scmp.eq.s32.totalorder %s31, 0
      %p78 = por %p76, %p77
      %p79 = scmp.ne.s32.totalorder %s65, %s66
      %p80 = scmp.eq.s32.totalorder %s32, 1
      %p81 = por %p79, %p80
      %p83 = scmp.ne.s32.totalorder %s66, %s82
      %p84 = scmp.eq.s32.totalorder %s32, 0
      %p85 = por %p83, %p84
      %s86 = ssub.s32 %s26, %s33
      %p87 = scmp.eq.s32.totalorder %s86, 0
      %s89 = sadd.s32 %s88, 1
      %s90 = scalar_select %p87, %s88, %s89
      %p93 = pneg %p87
      %p94 = scmp.eq.s32.totalorder %s26, 1
      %p95 = por %p93, %p94
      %p96 = scmp.ne.s32.totalorder %s88, %s91
      %p97 = scmp.eq.s32.totalorder %s26, 0
      %p98 = por %p96, %p97
      %p99 = scmp.ne.s32.totalorder %s88, %s91
      %p100 = scmp.eq.s32.totalorder %s31, 1
      %p101 = por %p99, %p100
      %p102 = scmp.ne.s32.totalorder %s91, %s92
      %p103 = scmp.eq.s32.totalorder %s31, 0
      %p104 = por %p102, %p103
      %p105 = scmp.ne.s32.totalorder %s91, %s92
      %p106 = scmp.eq.s32.totalorder %s32, 1
      %p107 = por %p105, %p106
      %p109 = scmp.ne.s32.totalorder %s92, %s108
      %p110 = scmp.eq.s32.totalorder %s32, 0
      %p111 = por %p109, %p110
      %s112 = ssub.s32 %s26, %s33
      %p113 = scmp.eq.s32.totalorder %s112, 0
      %s115 = sadd.s32 %s114, 1
      %s116 = scalar_select %p113, %s114, %s115
      %p119 = pneg %p113
      %p120 = scmp.eq.s32.totalorder %s26, 1
      %p121 = por %p119, %p120
      %p122 = scmp.ne.s32.totalorder %s114, %s117
      %p123 = scmp.eq.s32.totalorder %s26, 0
      %p124 = por %p122, %p123
      %p125 = scmp.ne.s32.totalorder %s114, %s117
      %p126 = scmp.eq.s32.totalorder %s31, 1
      %p127 = por %p125, %p126
      %p128 = scmp.ne.s32.totalorder %s117, %s118
      %p129 = scmp.eq.s32.totalorder %s31, 0
      %p130 = por %p128, %p129
      %p131 = scmp.ne.s32.totalorder %s117, %s118
      %p132 = scmp.eq.s32.totalorder %s32, 1
      %p133 = por %p131, %p132
      %p135 = scmp.ne.s32.totalorder %s118, %s134
      %p136 = scmp.eq.s32.totalorder %s32, 0
      %p137 = por %p135, %p136
      %s138 = ssub.s32 %s26, %s33
      %p139 = scmp.eq.s32.totalorder %s138, 0
      %s141 = sadd.s32 %s140, 1
      %s142 = scalar_select %p139, %s140, %s141
      %p145 = pneg %p139
      %p146 = scmp.eq.s32.totalorder %s26, 1
      %p147 = por %p145, %p146
      %p148 = scmp.ne.s32.totalorder %s140, %s143
      %p149 = scmp.eq.s32.totalorder %s26, 0
      %p150 = por %p148, %p149
      %p151 = scmp.ne.s32.totalorder %s140, %s143
      %p152 = scmp.eq.s32.totalorder %s31, 1
      %p153 = por %p151, %p152
      %p154 = scmp.ne.s32.totalorder %s143, %s144
      %p155 = scmp.eq.s32.totalorder %s31, 0
      %p156 = por %p154, %p155
      %p157 = scmp.ne.s32.totalorder %s143, %s144
      %p158 = scmp.eq.s32.totalorder %s32, 1
      %p159 = por %p157, %p158
      %p161 = scmp.ne.s32.totalorder %s144, %s160
      %p162 = scmp.eq.s32.totalorder %s32, 0
      %p163 = por %p161, %p162
      %s164 = ssub.s32 %s26, %s33
      %p165 = scmp.eq.s32.totalorder %s164, 0
      %s167 = sadd.s32 %s166, 1
      %s168 = scalar_select %p165, %s166, %s167
      %p171 = pneg %p165
      %p172 = scmp.eq.s32.totalorder %s26, 1
      %p173 = por %p171, %p172
      %p174 = scmp.ne.s32.totalorder %s166, %s169
      %p175 = scmp.eq.s32.totalorder %s26, 0
      %p176 = por %p174, %p175
      %p177 = scmp.ne.s32.totalorder %s166, %s169
      %p178 = scmp.eq.s32.totalorder %s31, 1
      %p179 = por %p177, %p178
      %p180 = scmp.ne.s32.totalorder %s169, %s170
      %p181 = scmp.eq.s32.totalorder %s31, 0
      %p182 = por %p180, %p181
      %p183 = scmp.ne.s32.totalorder %s169, %s170
      %p184 = scmp.eq.s32.totalorder %s32, 1
      %p185 = por %p183, %p184
      %p187 = scmp.ne.s32.totalorder %s170, %s186
      %p188 = scmp.eq.s32.totalorder %s32, 0
      %p189 = por %p187, %p188
      %s191 = sadd.s32 %s190, 1
      %p194 = scmp.eq.s32.totalorder %s26, 1
      %p195 = scmp.ne.s32.totalorder %s190, %s192
      %p196 = scmp.eq.s32.totalorder %s26, 0
      %p197 = por %p195, %p196
      %p198 = scmp.ne.s32.totalorder %s190, %s192
      %p199 = scmp.eq.s32.totalorder %s31, 1
      %p200 = por %p198, %p199
      %p201 = scmp.ne.s32.totalorder %s192, %s193
      %p202 = scmp.eq.s32.totalorder %s31, 0
      %p203 = por %p201, %p202
      %p204 = scmp.ne.s32.totalorder %s192, %s193
      %p205 = scmp.eq.s32.totalorder %s32, 1
      %p206 = por %p204, %p205
      %p208 = scmp.ne.s32.totalorder %s193, %s207
      %p209 = scmp.eq.s32.totalorder %s32, 0
      %p210 = por %p208, %p209
      %s212 = sadd.s32 %s211, 1
      %p215 = scmp.eq.s32.totalorder %s26, 1
      %p216 = scmp.ne.s32.totalorder %s211, %s213
      %p217 = scmp.eq.s32.totalorder %s26, 0
      %p218 = por %p216, %p217
      %p219 = scmp.ne.s32.totalorder %s211, %s213
      %p220 = scmp.eq.s32.totalorder %s31, 1
      %p221 = por %p219, %p220
      %p222 = scmp.ne.s32.totalorder %s213, %s214
      %p223 = scmp.eq.s32.totalorder %s31, 0
      %p224 = por %p222, %p223
      %p225 = scmp.ne.s32.totalorder %s213, %s214
      %p226 = scmp.eq.s32.totalorder %s32, 1
      %p227 = por %p225, %p226
      %p229 = scmp.ne.s32.totalorder %s214, %s228
      %p230 = scmp.eq.s32.totalorder %s32, 0
      %p231 = por %p229, %p230
      %s233 = sadd.s32 %s232, 1
      %p236 = scmp.eq.s32.totalorder %s26, 1
      %p237 = scmp.ne.s32.totalorder %s232, %s234
      %p238 = scmp.eq.s32.totalorder %s26, 0
      %p239 = por %p237, %p238
      %p240 = scmp.ne.s32.totalorder %s232, %s234
      %p241 = scmp.eq.s32.totalorder %s31, 1
      %p242 = por %p240, %p241
      %p243 = scmp.ne.s32.totalorder %s234, %s235
      %p244 = scmp.eq.s32.totalorder %s31, 0
      %p245 = por %p243, %p244
      %p246 = scmp.ne.s32.totalorder %s234, %s235
      %p247 = scmp.eq.s32.totalorder %s32, 1
      %p248 = por %p246, %p247
      %p250 = scmp.ne.s32.totalorder %s235, %s249
      %p251 = scmp.eq.s32.totalorder %s32, 0
      %p252 = por %p250, %p251
      %s254 = sadd.s32 %s253, 1
      %p257 = scmp.eq.s32.totalorder %s26, 1
      %p258 = scmp.ne.s32.totalorder %s253, %s255
      %p259 = scmp.eq.s32.totalorder %s26, 0
      %p260 = por %p258, %p259
      %p261 = scmp.ne.s32.totalorder %s253, %s255
      %p262 = scmp.eq.s32.totalorder %s31, 1
      %p263 = por %p261, %p262
      %p264 = scmp.ne.s32.totalorder %s255, %s256
      %p265 = scmp.eq.s32.totalorder %s31, 0
      %p266 = por %p264, %p265
      %p267 = scmp.ne.s32.totalorder %s255, %s256
      %p268 = scmp.eq.s32.totalorder %s32, 1
      %p269 = por %p267, %p268
      %p271 = scmp.ne.s32.totalorder %s256, %s270
      %p272 = scmp.eq.s32.totalorder %s32, 0
      %p273 = por %p271, %p272
      %s275 = sadd.s32 %s274, 1
      %p278 = scmp.eq.s32.totalorder %s26, 1
      %p279 = scmp.ne.s32.totalorder %s274, %s276
      %p280 = scmp.eq.s32.totalorder %s26, 0
      %p281 = por %p279, %p280
      %p282 = scmp.ne.s32.totalorder %s274, %s276
      %p283 = scmp.eq.s32.totalorder %s31, 1
      %p284 = por %p282, %p283
      %p285 = scmp.ne.s32.totalorder %s276, %s277
      %p286 = scmp.eq.s32.totalorder %s31, 0
      %p287 = por %p285, %p286
      %p288 = scmp.ne.s32.totalorder %s276, %s277
      %p289 = scmp.eq.s32.totalorder %s32, 1
      %p290 = por %p288, %p289
      %p292 = scmp.ne.s32.totalorder %s277, %s291
      %p293 = scmp.eq.s32.totalorder %s32, 0
      %p294 = por %p292, %p293
      %s296 = sadd.s32 %s295, 1
      %p299 = scmp.eq.s32.totalorder %s26, 1
      %p300 = scmp.ne.s32.totalorder %s295, %s297
      %p301 = scmp.eq.s32.totalorder %s26, 0
      %p302 = por %p300, %p301
      %p303 = scmp.ne.s32.totalorder %s295, %s297
      %p304 = scmp.eq.s32.totalorder %s31, 1
      %p305 = por %p303, %p304
      %p306 = scmp.ne.s32.totalorder %s297, %s298
      %p307 = scmp.eq.s32.totalorder %s31, 0
      %p308 = por %p306, %p307
      %p309 = scmp.ne.s32.totalorder %s297, %s298
      %p310 = scmp.eq.s32.totalorder %s32, 1
      %p311 = por %p309, %p310
      %p313 = scmp.ne.s32.totalorder %s298, %s312
      %p314 = scmp.eq.s32.totalorder %s32, 0
      %p315 = por %p313, %p314
      %s317 = sadd.s32 %s316, 1
      %p320 = scmp.eq.s32.totalorder %s26, 1
      %p321 = scmp.ne.s32.totalorder %s316, %s318
      %p322 = scmp.eq.s32.totalorder %s26, 0
      %p323 = por %p321, %p322
      %p324 = scmp.ne.s32.totalorder %s316, %s318
      %p325 = scmp.eq.s32.totalorder %s31, 1
      %p326 = por %p324, %p325
      %p327 = scmp.ne.s32.totalorder %s318, %s319
      %p328 = scmp.eq.s32.totalorder %s31, 0
      %p329 = por %p327, %p328
      %p330 = scmp.ne.s32.totalorder %s318, %s319
      %p331 = scmp.eq.s32.totalorder %s32, 1
      %p332 = por %p330, %p331
      %p334 = scmp.ne.s32.totalorder %s319, %s333
      %p335 = scmp.eq.s32.totalorder %s32, 0
      %p336 = por %p334, %p335
      %s338 = sadd.s32 %s337, 1
      %p341 = scmp.eq.s32.totalorder %s26, 1
      %p342 = scmp.ne.s32.totalorder %s337, %s339
      %p343 = scmp.eq.s32.totalorder %s26, 0
      %p344 = por %p342, %p343
      %p345 = scmp.ne.s32.totalorder %s337, %s339
      %p346 = scmp.eq.s32.totalorder %s31, 1
      %p347 = por %p345, %p346
      %p348 = scmp.ne.s32.totalorder %s339, %s340
      %p349 = scmp.eq.s32.totalorder %s31, 0
      %p350 = por %p348, %p349
      %p351 = scmp.ne.s32.totalorder %s339, %s340
      %p352 = scmp.eq.s32.totalorder %s32, 1
      %p353 = por %p351, %p352
      %p355 = scmp.ne.s32.totalorder %s340, %s354
      %p356 = scmp.eq.s32.totalorder %s32, 0
      %p357 = por %p355, %p356
      %s359 = sadd.s32 %s358, 1
      %p362 = scmp.eq.s32.totalorder %s26, 1
      %p363 = scmp.ne.s32.totalorder %s358, %s360
      %p364 = scmp.eq.s32.totalorder %s26, 0
      %p365 = por %p363, %p364
      %p366 = scmp.ne.s32.totalorder %s358, %s360
      %p367 = scmp.eq.s32.totalorder %s31, 1
      %p368 = por %p366, %p367
      %p369 = scmp.ne.s32.totalorder %s360, %s361
      %p370 = scmp.eq.s32.totalorder %s31, 0
      %p371 = por %p369, %p370
      %p372 = scmp.ne.s32.totalorder %s360, %s361
      %p373 = scmp.eq.s32.totalorder %s32, 1
      %p374 = por %p372, %p373
      %p376 = scmp.ne.s32.totalorder %s361, %s375
      %p377 = scmp.eq.s32.totalorder %s32, 0
      %p378 = por %p376, %p377
      %s380 = sadd.s32 %s379, 1
      %p383 = scmp.eq.s32.totalorder %s26, 1
      %p384 = scmp.ne.s32.totalorder %s379, %s381
      %p385 = scmp.eq.s32.totalorder %s26, 0
      %p386 = por %p384, %p385
      %p387 = scmp.ne.s32.totalorder %s379, %s381
      %p388 = scmp.eq.s32.totalorder %s31, 1
      %p389 = por %p387, %p388
      %p390 = scmp.ne.s32.totalorder %s381, %s382
      %p391 = scmp.eq.s32.totalorder %s31, 0
      %p392 = por %p390, %p391
      %p393 = scmp.ne.s32.totalorder %s381, %s382
      %p394 = scmp.eq.s32.totalorder %s32, 1
      %p395 = por %p393, %p394
      %p397 = scmp.ne.s32.totalorder %s382, %s396
      %p398 = scmp.eq.s32.totalorder %s32, 0
      %p399 = por %p397, %p398
      %s401 = sadd.s32 %s400, 1
      %p404 = scmp.eq.s32.totalorder %s26, 1
      %p405 = scmp.ne.s32.totalorder %s400, %s402
      %p406 = scmp.eq.s32.totalorder %s26, 0
      %p407 = por %p405, %p406
      %p408 = scmp.ne.s32.totalorder %s400, %s402
      %p409 = scmp.eq.s32.totalorder %s31, 1
      %p410 = por %p408, %p409
      %p411 = scmp.ne.s32.totalorder %s402, %s403
      %p412 = scmp.eq.s32.totalorder %s31, 0
      %p413 = por %p411, %p412
      %p414 = scmp.ne.s32.totalorder %s402, %s403
      %p415 = scmp.eq.s32.totalorder %s32, 1
      %p416 = por %p414, %p415
      %p418 = scmp.ne.s32.totalorder %s403, %s417
      %p419 = scmp.eq.s32.totalorder %s32, 0
      %p420 = por %p418, %p419
      %s421 = ssub.s32 %s26, %s33
      %p422 = scmp.eq.s32.totalorder %s421, 0
      %s424 = sadd.s32 %s423, 1
      %s425 = scalar_select %p422, %s423, %s424
      %p428 = pneg %p422
      %p429 = scmp.eq.s32.totalorder %s26, 1
      %p430 = por %p428, %p429
      %p431 = scmp.ne.s32.totalorder %s423, %s426
      %p432 = scmp.eq.s32.totalorder %s26, 0
      %p433 = por %p431, %p432
      %p434 = scmp.ne.s32.totalorder %s423, %s426
      %p435 = scmp.eq.s32.totalorder %s31, 1
      %p436 = por %p434, %p435
      %p437 = scmp.ne.s32.totalorder %s426, %s427
      %p438 = scmp.eq.s32.totalorder %s31, 0
      %p439 = por %p437, %p438
      %p440 = scmp.ne.s32.totalorder %s426, %s427
      %p441 = scmp.eq.s32.totalorder %s32, 1
      %p442 = por %p440, %p441
      %p444 = scmp.ne.s32.totalorder %s427, %s443
      %p445 = scmp.eq.s32.totalorder %s32, 0
      %p446 = por %p444, %p445
      %p447 = scmp.le.s32.totalorder 1, %s26
      %p448 = scmp.lt.s32.totalorder %s26, 3
      %p449 = pnand %p447, %p448
      %p450 = pneg %p449
      // Predicated region
      $region9: #{abcnn_forward.1} parent=5 // pred_check
        _
      $region10: #{abcnn_forward.1} parent=5 // pred_check_branch
        %452 = sbr.rel (%p449) target = $region12
      $region11: #{abcnn_forward.1} parent=5 // pred_region
        %s453 = ssub.s32 %s26, 1
        // Predicated region
        $region13: #{abcnn_forward.1} parent=11 // pred_check
          %p454 = pneg %p203
        $region14: #{abcnn_forward.1} parent=11 // pred_check_branch
          %456 = sbr.rel (%p454) target = $region16
        $region15: #{abcnn_forward.1} parent=11 // pred_region
          _
        $region16: #{abcnn_forward.1} parent=11 // pred_fallthru
          _
        // Predicated region
        $region17: #{abcnn_forward.1} parent=11 // pred_check
          %p457 = pneg %p224
        $region18: #{abcnn_forward.1} parent=11 // pred_check_branch
          %459 = sbr.rel (%p457) target = $region20
        $region19: #{abcnn_forward.1} parent=11 // pred_region
          _
        $region20: #{abcnn_forward.1} parent=11 // pred_fallthru
          _
        // Predicated region
        $region21: #{abcnn_forward.1} parent=11 // pred_check
          %p460 = pneg %p245
        $region22: #{abcnn_forward.1} parent=11 // pred_check_branch
          %462 = sbr.rel (%p460) target = $region24
        $region23: #{abcnn_forward.1} parent=11 // pred_region
          _
        $region24: #{abcnn_forward.1} parent=11 // pred_fallthru
          _
        // Predicated region
        $region25: #{abcnn_forward.1} parent=11 // pred_check
          %p463 = pneg %p266
        $region26: #{abcnn_forward.1} parent=11 // pred_check_branch
          %465 = sbr.rel (%p463) target = $region28
        $region27: #{abcnn_forward.1} parent=11 // pred_region
          _
        $region28: #{abcnn_forward.1} parent=11 // pred_fallthru
          _
        // Predicated region
        $region29: #{abcnn_forward.1} parent=11 // pred_check
          %p466 = pneg %p287
        $region30: #{abcnn_forward.1} parent=11 // pred_check_branch
          %468 = sbr.rel (%p466) target = $region32
        $region31: #{abcnn_forward.1} parent=11 // pred_region
          _
        $region32: #{abcnn_forward.1} parent=11 // pred_fallthru
          _
        // Predicated region
        $region33: #{abcnn_forward.1} parent=11 // pred_check
          %p469 = pneg %p308
        $region34: #{abcnn_forward.1} parent=11 // pred_check_branch
          %471 = sbr.rel (%p469) target = $region36
        $region35: #{abcnn_forward.1} parent=11 // pred_region
          _
        $region36: #{abcnn_forward.1} parent=11 // pred_fallthru
          _
        // Predicated region
        $region37: #{abcnn_forward.1} parent=11 // pred_check
          %p472 = pneg %p329
        $region38: #{abcnn_forward.1} parent=11 // pred_check_branch
          %474 = sbr.rel (%p472) target = $region40
        $region39: #{abcnn_forward.1} parent=11 // pred_region
          _
        $region40: #{abcnn_forward.1} parent=11 // pred_fallthru
          _
        // Predicated region
        $region41: #{abcnn_forward.1} parent=11 // pred_check
          %p475 = pneg %p350
        $region42: #{abcnn_forward.1} parent=11 // pred_check_branch
          %477 = sbr.rel (%p475) target = $region44
        $region43: #{abcnn_forward.1} parent=11 // pred_region
          _
        $region44: #{abcnn_forward.1} parent=11 // pred_fallthru
          _
        // Predicated region
        $region45: #{abcnn_forward.1} parent=11 // pred_check
          %p478 = pneg %p371
        $region46: #{abcnn_forward.1} parent=11 // pred_check_branch
          %480 = sbr.rel (%p478) target = $region48
        $region47: #{abcnn_forward.1} parent=11 // pred_region
          _
        $region48: #{abcnn_forward.1} parent=11 // pred_fallthru
          _
        // Predicated region
        $region49: #{abcnn_forward.1} parent=11 // pred_check
          %p481 = pneg %p392
        $region50: #{abcnn_forward.1} parent=11 // pred_check_branch
          %483 = sbr.rel (%p481) target = $region52
        $region51: #{abcnn_forward.1} parent=11 // pred_region
          _
        $region52: #{abcnn_forward.1} parent=11 // pred_fallthru
          _
        // Predicated region
        $region53: #{abcnn_forward.1} parent=11 // pred_check
          %p484 = pneg %p413
        $region54: #{abcnn_forward.1} parent=11 // pred_check_branch
          %486 = sbr.rel (%p484) target = $region56
        $region55: #{abcnn_forward.1} parent=11 // pred_region
          _
        $region56: #{abcnn_forward.1} parent=11 // pred_fallthru
          _
      $region12: #{abcnn_forward.1} parent=5 // pred_fallthru
        _
      %p487 = scmp.lt.s32.totalorder %s26, 2
      // Predicated region
      $region57: #{abcnn_forward.1} parent=5 // pred_check
        %p488 = pneg %p487
      $region58: #{abcnn_forward.1} parent=5 // pred_check_branch
        %490 = sbr.rel (%p488) target = $region60
      $region59: #{abcnn_forward.1} parent=5 // pred_region
        // Predicated region
        $region61: #{abcnn_forward.1} parent=59 // pred_check
          %p491 = pneg %p46
        $region62: #{abcnn_forward.1} parent=59 // pred_check_branch
          %493 = sbr.rel (%p491) target = $region64
        $region63: #{abcnn_forward.1} parent=59 // pred_region
          %p494 = scmp.lt.s32.totalorder %s26, 1
          %s495 = scalar_select %p494, %s26, 1
          %s496 = smul.addr %s495, 8
          %s497 = scalar_lea.vmem %s0, %s496
        $region64: #{abcnn_forward.1} parent=59 // pred_fallthru
          _
        // Predicated region
        $region65: #{abcnn_forward.1} parent=59 // pred_check
          %p498 = pneg %p72
        $region66: #{abcnn_forward.1} parent=59 // pred_check_branch
          %500 = sbr.rel (%p498) target = $region68
        $region67: #{abcnn_forward.1} parent=59 // pred_region
          %p501 = scmp.lt.s32.totalorder %s26, 1
          %s502 = scalar_select %p501, %s26, 1
          %s503 = smul.addr %s502, 8
          %s504 = scalar_lea.vmem %s1, %s503
        $region68: #{abcnn_forward.1} parent=59 // pred_fallthru
          _
        // Predicated region
        $region69: #{abcnn_forward.1} parent=59 // pred_check
          %p505 = pneg %p98
        $region70: #{abcnn_forward.1} parent=59 // pred_check_branch
          %507 = sbr.rel (%p505) target = $region72
        $region71: #{abcnn_forward.1} parent=59 // pred_region
          %p508 = scmp.lt.s32.totalorder %s26, 1
          %s509 = scalar_select %p508, %s26, 1
          %s510 = smul.addr %s509, 8
          %s511 = scalar_lea.vmem %s2, %s510
        $region72: #{abcnn_forward.1} parent=59 // pred_fallthru
          _
        // Predicated region
        $region73: #{abcnn_forward.1} parent=59 // pred_check
          %p512 = pneg %p124
        $region74: #{abcnn_forward.1} parent=59 // pred_check_branch
          %514 = sbr.rel (%p512) target = $region76
        $region75: #{abcnn_forward.1} parent=59 // pred_region
          %p515 = scmp.lt.s32.totalorder %s26, 1
          %s516 = scalar_select %p515, %s26, 1
          %s517 = smul.addr %s516, 8
          %s518 = scalar_lea.vmem %s3, %s517
        $region76: #{abcnn_forward.1} parent=59 // pred_fallthru
          _
        // Predicated region
        $region77: #{abcnn_forward.1} parent=59 // pred_check
          %p519 = pneg %p150
        $region78: #{abcnn_forward.1} parent=59 // pred_check_branch
          %521 = sbr.rel (%p519) target = $region80
        $region79: #{abcnn_forward.1} parent=59 // pred_region
          %p522 = scmp.lt.s32.totalorder %s26, 1
          %s523 = scalar_select %p522, %s26, 1
          %s524 = smul.addr %s523, 8
          %s525 = scalar_lea.vmem %s4, %s524
        $region80: #{abcnn_forward.1} parent=59 // pred_fallthru
          _
        // Predicated region
        $region81: #{abcnn_forward.1} parent=59 // pred_check
          %p526 = pneg %p176
        $region82: #{abcnn_forward.1} parent=59 // pred_check_branch
          %528 = sbr.rel (%p526) target = $region84
        $region83: #{abcnn_forward.1} parent=59 // pred_region
          %p529 = scmp.lt.s32.totalorder %s26, 1
          %s530 = scalar_select %p529, %s26, 1
          %s531 = smul.addr %s530, 8
          %s532 = scalar_lea.vmem %s5, %s531
        $region84: #{abcnn_forward.1} parent=59 // pred_fallthru
          _
      $region60: #{abcnn_forward.1} parent=5 // pred_fallthru
        _
      %p533 = scmp.le.s32.totalorder 1, %s26
      %p534 = scmp.lt.s32.totalorder %s26, 3
      %p535 = pnand %p533, %p534
      %p536 = pneg %p535
      // Predicated region
      $region85: #{abcnn_forward.1} parent=5 // pred_check
        _
      $region86: #{abcnn_forward.1} parent=5 // pred_check_branch
        %538 = sbr.rel (%p535) target = $region88
      $region87: #{abcnn_forward.1} parent=5 // pred_region
        %s539 = ssub.s32 %s26, 1
        %p540 = scmp.lt.s32.totalorder %s31, 1
        %s541 = scalar_select %p540, %s31, 1
        %s542 = smul.addr %s541, 8
        %s543 = scalar_lea.vmem %s0, %s542
        %p544 = pneg %p52
        %p545 = pneg %p49
        %p546 = scmp.lt.s32.totalorder %s31, 1
        %s547 = scalar_select %p546, %s31, 1
        %s548 = smul.addr %s547, 8
        %s549 = scalar_lea.vmem %s1, %s548
        %p550 = pneg %p78
        %p551 = pneg %p75
        %p552 = scmp.lt.s32.totalorder %s31, 1
        %s553 = scalar_select %p552, %s31, 1
        %s554 = smul.addr %s553, 8
        %s555 = scalar_lea.vmem %s2, %s554
        %p556 = pneg %p104
        %p557 = pneg %p101
        %p558 = scmp.lt.s32.totalorder %s31, 1
        %s559 = scalar_select %p558, %s31, 1
        %s560 = smul.addr %s559, 8
        %s561 = scalar_lea.vmem %s3, %s560
        %p562 = pneg %p130
        %p563 = pneg %p127
        %p564 = scmp.lt.s32.totalorder %s31, 1
        %s565 = scalar_select %p564, %s31, 1
        %s566 = smul.addr %s565, 8
        %s567 = scalar_lea.vmem %s4, %s566
        %p568 = pneg %p156
        %p569 = pneg %p153
        %p570 = scmp.lt.s32.totalorder %s31, 1
        %s571 = scalar_select %p570, %s31, 1
        %s572 = smul.addr %s571, 8
        %s573 = scalar_lea.vmem %s5, %s572
        %p574 = pneg %p182
        %p575 = pneg %p179
        %p576 = pneg %p203
        %p577 = pneg %p200
        %p578 = pneg %p224
        %p579 = pneg %p221
        %p580 = pneg %p245
        %p581 = pneg %p242
        %p582 = pneg %p266
        %p583 = pneg %p263
        %p584 = pneg %p287
        %p585 = pneg %p284
        %p586 = pneg %p308
        %p587 = pneg %p305
        %p588 = pneg %p329
        %p589 = pneg %p326
        %p590 = pneg %p350
        %p591 = pneg %p347
        %p592 = pneg %p371
        %p593 = pneg %p368
        %p594 = pneg %p392
        %p595 = pneg %p389
        %p596 = pneg %p413
        %p597 = pneg %p410
        %p598 = pneg %p439
        %p599 = pneg %p436
        %s600 = sand.u32 %s426, 1
        %s601 = scalar_lea.sflag [#allocation3], %s600
        %s602 = sand.u32 %s426, 1
        %s603 = scalar_lea.vmem [#allocation2], %s602
        %p604 = scmp.lt.s32.totalorder %s31, 1
        %s605 = scalar_select %p604, %s31, 1
        %s606 = smul.addr %s605, 8
        %s607 = scalar_lea.vmem %s0, %s606
        %p608 = scmp.lt.s32.totalorder %s31, 1
        %s609 = scalar_select %p608, %s31, 1
        %s610 = smul.addr %s609, 8
        %s611 = scalar_lea.vmem %s1, %s610
        %p612 = scmp.lt.s32.totalorder %s31, 1
        %s613 = scalar_select %p612, %s31, 1
        %s614 = smul.addr %s613, 8
        %s615 = scalar_lea.vmem %s2, %s614
        %p616 = scmp.lt.s32.totalorder %s31, 1
        %s617 = scalar_select %p616, %s31, 1
        %s618 = smul.addr %s617, 8
        %s619 = scalar_lea.vmem %s3, %s618
        %p620 = scmp.lt.s32.totalorder %s31, 1
        %s621 = scalar_select %p620, %s31, 1
        %s622 = smul.addr %s621, 8
        %s623 = scalar_lea.vmem %s4, %s622
        %p624 = scmp.lt.s32.totalorder %s31, 1
        %s625 = scalar_select %p624, %s31, 1
        %s626 = smul.addr %s625, 8
        %s627 = scalar_lea.vmem %s5, %s626
        %v629 = vld [vmem:[%s607] sm:$0xff]
        %v630 = vld [vmem:[%s611] sm:$0xff]
        %v631 = vld [vmem:[%s615] sm:$0xff]
        %v632 = vld [vmem:[%s619] sm:$0xff]
        %v634 = vrot.slane %v629, 1
        %v635 = vrot.slane %v629, 2
        %v636 = vrot.slane %v629, 3
        %v637 = vrot.slane %v629, 4
        %v638 = vrot.slane %v629, 5
        %v639 = vrot.slane %v629, 6
        %v640 = vrot.slane %v629, 7
        %v641 = vperm.slane %v629, 0
        %v642 = vperm.slane %v634, 0
        %v643 = vperm.slane %v635, 0
        %v644 = vperm.slane %v636, 0
        %v645 = vperm.slane %v637, 0
        %v646 = vperm.slane %v638, 0
        %v647 = vperm.slane %v639, 0
        %v648 = vperm.slane %v640, 0
        %v657 = vsub.f32 %v641, %v630
        %v658 = vsub.f32 %v642, %v630
        %v659 = vsub.f32 %v643, %v630
        %v660 = vsub.f32 %v644, %v630
        %v661 = vsub.f32 %v645, %v630
        %v662 = vsub.f32 %v646, %v630
        %v663 = vsub.f32 %v647, %v630
        %v664 = vsub.f32 %v648, %v630
        %v665 = vmul.f32 %v657, %v657
        %v666 = vmul.f32 %v658, %v658
        %v667 = vmul.f32 %v659, %v659
        %v668 = vmul.f32 %v660, %v660
        %v669 = vmul.f32 %v661, %v661
        %v670 = vmul.f32 %v662, %v662
        %v671 = vmul.f32 %v663, %v663
        %v672 = vmul.f32 %v664, %v664
        %673 = vadd.xlane.f32.xlu0 %v665
        %v674 = vpop.xlane.xlu0 %673
        %675 = vadd.xlane.f32.xlu0 %v666
        %v676 = vpop.xlane.xlu0 %675
        %677 = vadd.xlane.f32.xlu0 %v667
        %v678 = vpop.xlane.xlu0 %677
        %679 = vadd.xlane.f32.xlu0 %v668
        %v680 = vpop.xlane.xlu0 %679
        %681 = vadd.xlane.f32.xlu0 %v669
        %v682 = vpop.xlane.xlu0 %681
        %683 = vadd.xlane.f32.xlu0 %v670
        %v684 = vpop.xlane.xlu0 %683
        %685 = vadd.xlane.f32.xlu0 %v671
        %v686 = vpop.xlane.xlu0 %685
        %687 = vadd.xlane.f32.xlu0 %v672
        %v688 = vpop.xlane.xlu0 %687
        %v690 = vrot.slane %v630, 1
        %v691 = vrot.slane %v630, 2
        %v692 = vrot.slane %v630, 3
        %v693 = vrot.slane %v630, 4
        %v694 = vrot.slane %v630, 5
        %v695 = vrot.slane %v630, 6
        %v696 = vrot.slane %v630, 7
        %v697 = vperm.slane %v630, 0
        %v698 = vperm.slane %v690, 0
        %v699 = vperm.slane %v691, 0
        %v700 = vperm.slane %v692, 0
        %v701 = vperm.slane %v693, 0
        %v702 = vperm.slane %v694, 0
        %v703 = vperm.slane %v695, 0
        %v704 = vperm.slane %v696, 0
        %v713 = vsub.f32 %v697, %v629
        %v714 = vsub.f32 %v698, %v629
        %v715 = vsub.f32 %v699, %v629
        %v716 = vsub.f32 %v700, %v629
        %v717 = vsub.f32 %v701, %v629
        %v718 = vsub.f32 %v702, %v629
        %v719 = vsub.f32 %v703, %v629
        %v720 = vsub.f32 %v704, %v629
        %v721 = vmul.f32 %v713, %v713
        %v722 = vmul.f32 %v714, %v714
        %v723 = vmul.f32 %v715, %v715
        %v724 = vmul.f32 %v716, %v716
        %v725 = vmul.f32 %v717, %v717
        %v726 = vmul.f32 %v718, %v718
        %v727 = vmul.f32 %v719, %v719
        %v728 = vmul.f32 %v720, %v720
        %729 = vadd.xlane.f32.xlu0 %v721
        %v730 = vpop.xlane.xlu0 %729
        %731 = vadd.xlane.f32.xlu0 %v722
        %v732 = vpop.xlane.xlu0 %731
        %733 = vadd.xlane.f32.xlu0 %v723
        %v734 = vpop.xlane.xlu0 %733
        %735 = vadd.xlane.f32.xlu0 %v724
        %v736 = vpop.xlane.xlu0 %735
        %737 = vadd.xlane.f32.xlu0 %v725
        %v738 = vpop.xlane.xlu0 %737
        %739 = vadd.xlane.f32.xlu0 %v726
        %v740 = vpop.xlane.xlu0 %739
        %741 = vadd.xlane.f32.xlu0 %v727
        %v742 = vpop.xlane.xlu0 %741
        %743 = vadd.xlane.f32.xlu0 %v728
        %v744 = vpop.xlane.xlu0 %743
        %v745 = vrsqrt.pop %v674
        %v746 = vmul.f32 %v745, %v674
        %v747 = vmul.f32 %v746, %v745
        %v748 = vmul.f32 0.5, %v747
        %v749 = vsub.f32 1.5, %v748
        %v750 = vmul.f32 %v745, %v749
        %v751 = vmul.f32 %v674, %v750
        %vm752 = vcmp.eq.f32.partialorder %v674, inf
        %v753 = vsel %vm752, %v674, %v751
        %vm754 = vcmp.eq.f32.partialorder %v674, 0.0
        %v755 = vand.u32 %v674, 2147483648
        %v756 = vsel %vm754, %v755, %v753
        %v757 = vrsqrt.pop %v676
        %v758 = vmul.f32 %v757, %v676
        %v759 = vmul.f32 %v758, %v757
        %v760 = vmul.f32 0.5, %v759
        %v761 = vsub.f32 1.5, %v760
        %v762 = vmul.f32 %v757, %v761
        %v763 = vmul.f32 %v676, %v762
        %vm764 = vcmp.eq.f32.partialorder %v676, inf
        %v765 = vsel %vm764, %v676, %v763
        %vm766 = vcmp.eq.f32.partialorder %v676, 0.0
        %v767 = vand.u32 %v676, 2147483648
        %v768 = vsel %vm766, %v767, %v765
        %v769 = vrsqrt.pop %v678
        %v770 = vmul.f32 %v769, %v678
        %v771 = vmul.f32 %v770, %v769
        %v772 = vmul.f32 0.5, %v771
        %v773 = vsub.f32 1.5, %v772
        %v774 = vmul.f32 %v769, %v773
        %v775 = vmul.f32 %v678, %v774
        %vm776 = vcmp.eq.f32.partialorder %v678, inf
        %v777 = vsel %vm776, %v678, %v775
        %vm778 = vcmp.eq.f32.partialorder %v678, 0.0
        %v779 = vand.u32 %v678, 2147483648
        %v780 = vsel %vm778, %v779, %v777
        %v781 = vrsqrt.pop %v680
        %v782 = vmul.f32 %v781, %v680
        %v783 = vmul.f32 %v782, %v781
        %v784 = vmul.f32 0.5, %v783
        %v785 = vsub.f32 1.5, %v784
        %v786 = vmul.f32 %v781, %v785
        %v787 = vmul.f32 %v680, %v786
        %vm788 = vcmp.eq.f32.partialorder %v680, inf
        %v789 = vsel %vm788, %v680, %v787
        %vm790 = vcmp.eq.f32.partialorder %v680, 0.0
        %v791 = vand.u32 %v680, 2147483648
        %v792 = vsel %vm790, %v791, %v789
        %v793 = vrsqrt.pop %v682
        %v794 = vmul.f32 %v793, %v682
        %v795 = vmul.f32 %v794, %v793
        %v796 = vmul.f32 0.5, %v795
        %v797 = vsub.f32 1.5, %v796
        %v798 = vmul.f32 %v793, %v797
        %v799 = vmul.f32 %v682, %v798
        %vm800 = vcmp.eq.f32.partialorder %v682, inf
        %v801 = vsel %vm800, %v682, %v799
        %vm802 = vcmp.eq.f32.partialorder %v682, 0.0
        %v803 = vand.u32 %v682, 2147483648
        %v804 = vsel %vm802, %v803, %v801
        %v805 = vrsqrt.pop %v684
        %v806 = vmul.f32 %v805, %v684
        %v807 = vmul.f32 %v806, %v805
        %v808 = vmul.f32 0.5, %v807
        %v809 = vsub.f32 1.5, %v808
        %v810 = vmul.f32 %v805, %v809
        %v811 = vmul.f32 %v684, %v810
        %vm812 = vcmp.eq.f32.partialorder %v684, inf
        %v813 = vsel %vm812, %v684, %v811
        %vm814 = vcmp.eq.f32.partialorder %v684, 0.0
        %v815 = vand.u32 %v684, 2147483648
        %v816 = vsel %vm814, %v815, %v813
        %v817 = vrsqrt.pop %v686
        %v818 = vmul.f32 %v817, %v686
        %v819 = vmul.f32 %v818, %v817
        %v820 = vmul.f32 0.5, %v819
        %v821 = vsub.f32 1.5, %v820
        %v822 = vmul.f32 %v817, %v821
        %v823 = vmul.f32 %v686, %v822
        %vm824 = vcmp.eq.f32.partialorder %v686, inf
        %v825 = vsel %vm824, %v686, %v823
        %vm826 = vcmp.eq.f32.partialorder %v686, 0.0
        %v827 = vand.u32 %v686, 2147483648
        %v828 = vsel %vm826, %v827, %v825
        %v829 = vrsqrt.pop %v688
        %v830 = vmul.f32 %v829, %v688
        %v831 = vmul.f32 %v830, %v829
        %v832 = vmul.f32 0.5, %v831
        %v833 = vsub.f32 1.5, %v832
        %v834 = vmul.f32 %v829, %v833
        %v835 = vmul.f32 %v688, %v834
        %vm836 = vcmp.eq.f32.partialorder %v688, inf
        %v837 = vsel %vm836, %v688, %v835
        %vm838 = vcmp.eq.f32.partialorder %v688, 0.0
        %v839 = vand.u32 %v688, 2147483648
        %v840 = vsel %vm838, %v839, %v837
        %v841 = vadd.f32 %v756, 1.0
        %v842 = vadd.f32 %v768, 1.0
        %v843 = vadd.f32 %v780, 1.0
        %v844 = vadd.f32 %v792, 1.0
        %v845 = vadd.f32 %v804, 1.0
        %v846 = vadd.f32 %v816, 1.0
        %v847 = vadd.f32 %v828, 1.0
        %v848 = vadd.f32 %v840, 1.0
        %v857 = vlaneseq
        %v858 = vand.u32 %v857, 127
        %v859 = vperm.slane %v841, %v858
        %v860 = vperm.slane %v842, %v858
        %v861 = vperm.slane %v843, %v858
        %v862 = vperm.slane %v844, %v858
        %v863 = vperm.slane %v845, %v858
        %v864 = vperm.slane %v846, %v858
        %v865 = vperm.slane %v847, %v858
        %v866 = vperm.slane %v848, %v858
        %vm867 = vcmask 1041409
        %v868 = vsel %vm867, %v860, %v859
        %vm869 = vcmask 1042434
        %v870 = vsel %vm869, %v861, %v868
        %vm871 = vcmask 1043459
        %v872 = vsel %vm871, %v862, %v870
        %vm873 = vcmask 1044484
        %v874 = vsel %vm873, %v863, %v872
        %vm875 = vcmask 1045509
        %v876 = vsel %vm875, %v864, %v874
        %vm877 = vcmask 1046534
        %v878 = vsel %vm877, %v865, %v876
        %vm879 = vcmask 1047559
        %v880 = vsel %vm879, %v866, %v878
        %v882 = vrcp.pop %v880
        %v883 = vmul.f32 %v880, %v882
        %v884 = vsub.f32 1.0, %v883
        %v885 = vmul.f32 %v882, %v884
        %v886 = vadd.f32 %v882, %v885
        %vm887 = vweird.f32 %v880
        %vm888 = vweird.f32 %v882
        %vm889 = vmor %vm887, %vm888
        %v890 = vsel %vm889, %v882, %v886
        %v891 = vand.u32 2147483647, %v880
        %vm892 = vcmp.eq.f32.partialorder %v891, 8.507059e+37
        %v893 = vand.u32 %v880, 2147483648
        %v894 = vor.u32 1.1754944e-38, %v893
        %v895 = vsel %vm892, %v894, %v890
        %v896 = vmul.f32 %v631, %v895
        %v897 = vrsqrt.pop %v730
        %v898 = vmul.f32 %v897, %v730
        %v899 = vmul.f32 %v898, %v897
        %v900 = vmul.f32 0.5, %v899
        %v901 = vsub.f32 1.5, %v900
        %v902 = vmul.f32 %v897, %v901
        %v903 = vmul.f32 %v730, %v902
        %vm904 = vcmp.eq.f32.partialorder %v730, inf
        %v905 = vsel %vm904, %v730, %v903
        %vm906 = vcmp.eq.f32.partialorder %v730, 0.0
        %v907 = vand.u32 %v730, 2147483648
        %v908 = vsel %vm906, %v907, %v905
        %v909 = vrsqrt.pop %v732
        %v910 = vmul.f32 %v909, %v732
        %v911 = vmul.f32 %v910, %v909
        %v912 = vmul.f32 0.5, %v911
        %v913 = vsub.f32 1.5, %v912
        %v914 = vmul.f32 %v909, %v913
        %v915 = vmul.f32 %v732, %v914
        %vm916 = vcmp.eq.f32.partialorder %v732, inf
        %v917 = vsel %vm916, %v732, %v915
        %vm918 = vcmp.eq.f32.partialorder %v732, 0.0
        %v919 = vand.u32 %v732, 2147483648
        %v920 = vsel %vm918, %v919, %v917
        %v921 = vrsqrt.pop %v734
        %v922 = vmul.f32 %v921, %v734
        %v923 = vmul.f32 %v922, %v921
        %v924 = vmul.f32 0.5, %v923
        %v925 = vsub.f32 1.5, %v924
        %v926 = vmul.f32 %v921, %v925
        %v927 = vmul.f32 %v734, %v926
        %vm928 = vcmp.eq.f32.partialorder %v734, inf
        %v929 = vsel %vm928, %v734, %v927
        %vm930 = vcmp.eq.f32.partialorder %v734, 0.0
        %v931 = vand.u32 %v734, 2147483648
        %v932 = vsel %vm930, %v931, %v929
        %v933 = vrsqrt.pop %v736
        %v934 = vmul.f32 %v933, %v736
        %v935 = vmul.f32 %v934, %v933
        %v936 = vmul.f32 0.5, %v935
        %v937 = vsub.f32 1.5, %v936
        %v938 = vmul.f32 %v933, %v937
        %v939 = vmul.f32 %v736, %v938
        %vm940 = vcmp.eq.f32.partialorder %v736, inf
        %v941 = vsel %vm940, %v736, %v939
        %vm942 = vcmp.eq.f32.partialorder %v736, 0.0
        %v943 = vand.u32 %v736, 2147483648
        %v944 = vsel %vm942, %v943, %v941
        %v945 = vrsqrt.pop %v738
        %v946 = vmul.f32 %v945, %v738
        %v947 = vmul.f32 %v946, %v945
        %v948 = vmul.f32 0.5, %v947
        %v949 = vsub.f32 1.5, %v948
        %v950 = vmul.f32 %v945, %v949
        %v951 = vmul.f32 %v738, %v950
        %vm952 = vcmp.eq.f32.partialorder %v738, inf
        %v953 = vsel %vm952, %v738, %v951
        %vm954 = vcmp.eq.f32.partialorder %v738, 0.0
        %v955 = vand.u32 %v738, 2147483648
        %v956 = vsel %vm954, %v955, %v953
        %v957 = vrsqrt.pop %v740
        %v958 = vmul.f32 %v957, %v740
        %v959 = vmul.f32 %v958, %v957
        %v960 = vmul.f32 0.5, %v959
        %v961 = vsub.f32 1.5, %v960
        %v962 = vmul.f32 %v957, %v961
        %v963 = vmul.f32 %v740, %v962
        %vm964 = vcmp.eq.f32.partialorder %v740, inf
        %v965 = vsel %vm964, %v740, %v963
        %vm966 = vcmp.eq.f32.partialorder %v740, 0.0
        %v967 = vand.u32 %v740, 2147483648
        %v968 = vsel %vm966, %v967, %v965
        %v969 = vrsqrt.pop %v742
        %v970 = vmul.f32 %v969, %v742
        %v971 = vmul.f32 %v970, %v969
        %v972 = vmul.f32 0.5, %v971
        %v973 = vsub.f32 1.5, %v972
        %v974 = vmul.f32 %v969, %v973
        %v975 = vmul.f32 %v742, %v974
        %vm976 = vcmp.eq.f32.partialorder %v742, inf
        %v977 = vsel %vm976, %v742, %v975
        %vm978 = vcmp.eq.f32.partialorder %v742, 0.0
        %v979 = vand.u32 %v742, 2147483648
        %v980 = vsel %vm978, %v979, %v977
        %v981 = vrsqrt.pop %v744
        %v982 = vmul.f32 %v981, %v744
        %v983 = vmul.f32 %v982, %v981
        %v984 = vmul.f32 0.5, %v983
        %v985 = vsub.f32 1.5, %v984
        %v986 = vmul.f32 %v981, %v985
        %v987 = vmul.f32 %v744, %v986
        %vm988 = vcmp.eq.f32.partialorder %v744, inf
        %v989 = vsel %vm988, %v744, %v987
        %vm990 = vcmp.eq.f32.partialorder %v744, 0.0
        %v991 = vand.u32 %v744, 2147483648
        %v992 = vsel %vm990, %v991, %v989
        %v993 = vadd.f32 %v908, 1.0
        %v994 = vadd.f32 %v920, 1.0
        %v995 = vadd.f32 %v932, 1.0
        %v996 = vadd.f32 %v944, 1.0
        %v997 = vadd.f32 %v956, 1.0
        %v998 = vadd.f32 %v968, 1.0
        %v999 = vadd.f32 %v980, 1.0
        %v1000 = vadd.f32 %v992, 1.0
        %v1009 = vperm.slane %v993, %v858
        %v1010 = vperm.slane %v994, %v858
        %v1011 = vperm.slane %v995, %v858
        %v1012 = vperm.slane %v996, %v858
        %v1013 = vperm.slane %v997, %v858
        %v1014 = vperm.slane %v998, %v858
        %v1015 = vperm.slane %v999, %v858
        %v1016 = vperm.slane %v1000, %v858
        %v1017 = vsel %vm867, %v1010, %v1009
        %v1018 = vsel %vm869, %v1011, %v1017
        %v1019 = vsel %vm871, %v1012, %v1018
        %v1020 = vsel %vm873, %v1013, %v1019
        %v1021 = vsel %vm875, %v1014, %v1020
        %v1022 = vsel %vm877, %v1015, %v1021
        %v1023 = vsel %vm879, %v1016, %v1022
        %v1025 = vrcp.pop %v1023
        %v1026 = vmul.f32 %v1023, %v1025
        %v1027 = vsub.f32 1.0, %v1026
        %v1028 = vmul.f32 %v1025, %v1027
        %v1029 = vadd.f32 %v1025, %v1028
        %vm1030 = vweird.f32 %v1023
        %vm1031 = vweird.f32 %v1025
        %vm1032 = vmor %vm1030, %vm1031
        %v1033 = vsel %vm1032, %v1025, %v1029
        %v1034 = vand.u32 2147483647, %v1023
        %vm1035 = vcmp.eq.f32.partialorder %v1034, 8.507059e+37
        %v1036 = vand.u32 %v1023, 2147483648
        %v1037 = vor.u32 1.1754944e-38, %v1036
        %v1038 = vsel %vm1035, %v1037, %v1033
        %v1039 = vmul.f32 %v632, %v1038
        %v1040 = vld [vmem:[%s6] sm:$0xf]
        %v1041 = vld [vmem:[%s7] sm:$0xf]
        %v1042 = vpack.c.bf16 %v896, %v896
        %vm1043 = vcmask 64512
        %v1045 = vsel %vm1043, %v1042, 0
        %vm1047 = vcmask 1043456
        %v1049 = vsel %vm1047, %v1040, 0
        %1051 = vmatpush.bf16.msra.mxu0 0
        %1052 = vmatpush.bf16.msra.mxu0 0
        %1053 = vmatpush.bf16.msra.mxu0 0
        %1054 = vmatpush.bf16.msra.mxu0 0
        %1055 = vmatpush.bf16.msra.mxu0 0
        %1056 = vmatpush.bf16.msra.mxu0 0
        %1057 = vmatpush.bf16.msra.mxu0 0
        %1058 = vmatpush.bf16.msra.mxu0 %v1049
        %1059 = vmatmul.bf16.gmra.mxu0 %v1045
        %v1060 = vpop.f32.mrf.mxu0
        %v1061 = vadd.f32 0.0, %v1060
        %v1062 = vpop.f32.mrf.mxu0
        %1063 = vdwg.mxu0
        %v1064 = vpack.c.bf16 %v1039, %v1039
        %v1066 = vsel %vm1043, %v1064, 0
        %v1069 = vsel %vm1047, %v1041, 0
        %1071 = vmatpush.bf16.msra.mxu0 0
        %1072 = vmatpush.bf16.msra.mxu0 0
        %1073 = vmatpush.bf16.msra.mxu0 0
        %1074 = vmatpush.bf16.msra.mxu0 0
        %1075 = vmatpush.bf16.msra.mxu0 0
        %1076 = vmatpush.bf16.msra.mxu0 0
        %1077 = vmatpush.bf16.msra.mxu0 0
        %1078 = vmatpush.bf16.msra.mxu0 %v1069
        %1079 = vmatmul.bf16.gmra.mxu0 %v1066
        %v1080 = vpop.f32.mrf.mxu0
        %v1081 = vadd.f32 0.0, %v1080
        %v1082 = vpop.f32.mrf.mxu0
        %1083 = vdwg.mxu0
        %v1084 = vadd.f32 %v629, %v1061
        %v1085 = vadd.f32 %v630, %v1081
        %v1086 = vpack.c.bf16 %v1085, %v1084
        %v1087 = vld [vmem:[%s8] sm:$0xff]
        %v1088 = vld [vmem:[%s8 + $0x8] sm:$0xf]
        %v1089 = vld [vmem:[%s8 + $0xc] sm:$0xff]
        %v1090 = vld [vmem:[%s8 + $0x14] sm:$0xf]
        %v1091 = vld [vmem:[%s8 + $0x18] sm:$0xff]
        %v1092 = vld [vmem:[%s8 + $0x20] sm:$0xf]
        %v1093 = vld [vmem:[%s8 + $0x24] sm:$0xff]
        %v1094 = vld [vmem:[%s8 + $0x2c] sm:$0xf]
        %v1095 = vld [vmem:[%s8 + $0x30] sm:$0xff]
        %v1096 = vld [vmem:[%s8 + $0x38] sm:$0xf]
        %v1097 = vld [vmem:[%s8 + $0x3c] sm:$0xff]
        %v1098 = vld [vmem:[%s8 + $0x44] sm:$0xf]
        %v1099 = vld [vmem:[%s8 + $0x48] sm:$0xff]
        %v1100 = vld [vmem:[%s8 + $0x50] sm:$0xf]
        %v1101 = vld [vmem:[%s8 + $0x54] sm:$0xff]
        %v1102 = vld [vmem:[%s8 + $0x5c] sm:$0xf]
        %v1103 = vld [vmem:[%s8 + $0x60] sm:$0xff]
        %v1104 = vld [vmem:[%s8 + $0x68] sm:$0xf]
        %v1105 = vld [vmem:[%s8 + $0x6c] sm:$0xff]
        %v1106 = vld [vmem:[%s8 + $0x74] sm:$0xf]
        %v1107 = vld [vmem:[%s8 + $0x78] sm:$0xff]
        %v1108 = vld [vmem:[%s8 + $0x80] sm:$0xf]
        %v1109 = vld [vmem:[%s8 + $0x84] sm:$0xff]
        %v1110 = vld [vmem:[%s8 + $0x8c] sm:$0xf]
        %v1111 = vld [vmem:[%s8 + $0x90] sm:$0xff]
        %v1112 = vld [vmem:[%s8 + $0x98] sm:$0xf]
        %v1113 = vld [vmem:[%s8 + $0x9c] sm:$0xff]
        %v1114 = vld [vmem:[%s8 + $0xa4] sm:$0xf]
        %v1115 = vld [vmem:[%s8 + $0xa8] sm:$0xff]
        %v1116 = vld [vmem:[%s8 + $0xb0] sm:$0xf]
        %v1117 = vld [vmem:[%s8 + $0xb4] sm:$0xff]
        %v1118 = vld [vmem:[%s8 + $0xbc] sm:$0xf]
        %v1151 = vunpack.c.l.b16 %v1087
        %v1152 = vunpack.c.h.b16 %v1087
        %v1153 = vunpack.c.l.b16 %v1088
        %v1154 = vunpack.c.l.b16 %v1089
        %v1155 = vunpack.c.h.b16 %v1089
        %v1156 = vunpack.c.l.b16 %v1090
        %v1157 = vunpack.c.l.b16 %v1091
        %v1158 = vunpack.c.h.b16 %v1091
        %v1159 = vunpack.c.l.b16 %v1092
        %v1160 = vunpack.c.l.b16 %v1093
        %v1161 = vunpack.c.h.b16 %v1093
        %v1162 = vunpack.c.l.b16 %v1094
        %v1163 = vunpack.c.l.b16 %v1095
        %v1164 = vunpack.c.h.b16 %v1095
        %v1165 = vunpack.c.l.b16 %v1096
        %v1166 = vunpack.c.l.b16 %v1097
        %v1167 = vunpack.c.h.b16 %v1097
        %v1168 = vunpack.c.l.b16 %v1098
        %v1169 = vunpack.c.l.b16 %v1099
        %v1170 = vunpack.c.h.b16 %v1099
        %v1171 = vunpack.c.l.b16 %v1100
        %v1172 = vunpack.c.l.b16 %v1101
        %v1173 = vunpack.c.h.b16 %v1101
        %v1174 = vunpack.c.l.b16 %v1102
        %v1175 = vunpack.c.l.b16 %v1103
        %v1176 = vunpack.c.h.b16 %v1103
        %v1177 = vunpack.c.l.b16 %v1104
        %v1178 = vunpack.c.l.b16 %v1105
        %v1179 = vunpack.c.h.b16 %v1105
        %v1180 = vunpack.c.l.b16 %v1106
        %v1181 = vunpack.c.l.b16 %v1107
        %v1182 = vunpack.c.h.b16 %v1107
        %v1183 = vunpack.c.l.b16 %v1108
        %v1184 = vunpack.c.l.b16 %v1109
        %v1185 = vunpack.c.h.b16 %v1109
        %v1186 = vunpack.c.l.b16 %v1110
        %v1187 = vunpack.c.l.b16 %v1111
        %v1188 = vunpack.c.h.b16 %v1111
        %v1189 = vunpack.c.l.b16 %v1112
        %v1190 = vunpack.c.l.b16 %v1113
        %v1191 = vunpack.c.h.b16 %v1113
        %v1192 = vunpack.c.l.b16 %v1114
        %v1193 = vunpack.c.l.b16 %v1115
        %v1194 = vunpack.c.h.b16 %v1115
        %v1195 = vunpack.c.l.b16 %v1116
        %v1196 = vunpack.c.l.b16 %v1117
        %v1197 = vunpack.c.h.b16 %v1117
        %v1198 = vunpack.c.l.b16 %v1118
        %v1199 = vpack.c.b16 %v1154, %v1151
        %v1200 = vpack.c.b16 %v1155, %v1152
        %v1201 = vpack.c.b16 %v1156, %v1153
        %v1202 = vpack.c.b16 %v1160, %v1157
        %v1203 = vpack.c.b16 %v1161, %v1158
        %v1204 = vpack.c.b16 %v1162, %v1159
        %v1205 = vpack.c.b16 %v1166, %v1163
        %v1206 = vpack.c.b16 %v1167, %v1164
        %v1207 = vpack.c.b16 %v1168, %v1165
        %v1208 = vpack.c.b16 %v1172, %v1169
        %v1209 = vpack.c.b16 %v1173, %v1170
        %v1210 = vpack.c.b16 %v1174, %v1171
        %v1211 = vpack.c.b16 %v1178, %v1175
        %v1212 = vpack.c.b16 %v1179, %v1176
        %v1213 = vpack.c.b16 %v1180, %v1177
        %v1214 = vpack.c.b16 %v1184, %v1181
        %v1215 = vpack.c.b16 %v1185, %v1182
        %v1216 = vpack.c.b16 %v1186, %v1183
        %v1217 = vpack.c.b16 %v1190, %v1187
        %v1218 = vpack.c.b16 %v1191, %v1188
        %v1219 = vpack.c.b16 %v1192, %v1189
        %v1220 = vpack.c.b16 %v1196, %v1193
        %v1221 = vpack.c.b16 %v1197, %v1194
        %v1222 = vpack.c.b16 %v1198, %v1195
        %1247 = vmatpush.bf16.msra.mxu0 %v1220
        %1248 = vmatpush.bf16.msra.mxu0 %v1217
        %1249 = vmatpush.bf16.msra.mxu0 %v1214
        %1250 = vmatpush.bf16.msra.mxu0 %v1211
        %1251 = vmatpush.bf16.msra.mxu0 %v1208
        %1252 = vmatpush.bf16.msra.mxu0 %v1205
        %1253 = vmatpush.bf16.msra.mxu0 %v1202
        %1254 = vmatpush.bf16.msra.mxu0 %v1199
        %1255 = vmatmul.bf16.gmra.mxu0 %v1086
        %v1256 = vpop.f32.mrf.mxu0
        %v1257 = vadd.f32 0.0, %v1256
        %v1258 = vpop.f32.mrf.mxu0
        %v1259 = vadd.f32 0.0, %v1258
        %1260 = vdwg.mxu0
        %1261 = vmatpush.bf16.msra.mxu0 %v1221
        %1262 = vmatpush.bf16.msra.mxu0 %v1218
        %1263 = vmatpush.bf16.msra.mxu0 %v1215
        %1264 = vmatpush.bf16.msra.mxu0 %v1212
        %1265 = vmatpush.bf16.msra.mxu0 %v1209
        %1266 = vmatpush.bf16.msra.mxu0 %v1206
        %1267 = vmatpush.bf16.msra.mxu0 %v1203
        %1268 = vmatpush.bf16.msra.mxu0 %v1200
        %1269 = vmatmul.bf16.gmra.mxu0 %v1086
        %v1270 = vpop.f32.mrf.mxu0
        %v1271 = vadd.f32 0.0, %v1270
        %v1272 = vpop.f32.mrf.mxu0
        %v1273 = vadd.f32 0.0, %v1272
        %1274 = vdwg.mxu0
        %1275 = vmatpush.bf16.msra.mxu0 %v1222
        %1276 = vmatpush.bf16.msra.mxu0 %v1219
        %1277 = vmatpush.bf16.msra.mxu0 %v1216
        %1278 = vmatpush.bf16.msra.mxu0 %v1213
        %1279 = vmatpush.bf16.msra.mxu0 %v1210
        %1280 = vmatpush.bf16.msra.mxu0 %v1207
        %1281 = vmatpush.bf16.msra.mxu0 %v1204
        %1282 = vmatpush.bf16.msra.mxu0 %v1201
        %1283 = vmatmul.bf16.gmra.mxu0 %v1086
        %v1284 = vpop.f32.mrf.mxu0
        %v1285 = vadd.f32 0.0, %v1284
        %v1286 = vpop.f32.mrf.mxu0
        %v1287 = vadd.f32 0.0, %v1286
        %1288 = vdwg.mxu0
        %v1289 = vadd.f32 %v1257, 0.0
        %v1290 = vadd.f32 %v1259, 0.0
        %vm1294 = vcmask 1046528
        %v1295 = vrot.slane 0.0, 1
        %v1296 = vrot.slane %v1271, 1
        %v1297 = vsel %vm1294, %v1295, %v1296
        %v1298 = vsel %vm1294, %v1296, %v1295
        %v1299 = vrot.slane %v1273, 1
        %v1300 = vsel %vm1294, %v1295, %v1299
        %v1301 = vsel %vm1294, %v1299, %v1295
        %v1306 = vadd.f32 %v1297, 0.0
        %v1307 = vadd.f32 %v1289, %v1298
        %v1308 = vadd.f32 %v1300, 0.0
        %v1309 = vadd.f32 %v1290, %v1301
        %vm1312 = vcmask 1045504
        %v1313 = vrot.slane %v1285, 2
        %v1314 = vrot.slane 0.0, 2
        %v1315 = vsel %vm1312, %v1313, %v1314
        %v1316 = vrot.slane %v1287, 2
        %v1317 = vsel %vm1312, %v1316, %v1314
        %v1322 = vadd.f32 %v1306, %v1313
        %v1323 = vadd.f32 %v1307, %v1315
        %v1324 = vadd.f32 %v1308, %v1316
        %v1325 = vadd.f32 %v1309, %v1317
        %v1326 = vld [vmem:[%s9] sm:$0x1]
        %v1328 = vperm.slane %v1326, 0
        %v1330 = vadd.f32 %v1322, %v1328
        %v1331 = vadd.f32 %v1323, %v1328
        %v1332 = vadd.f32 %v1324, %v1328
        %v1333 = vadd.f32 %v1325, %v1328
        %v1334 = vtanh.pop %v1330
        %v1335 = vtanh.pop %v1331
        %v1336 = vtanh.pop %v1332
        %v1337 = vtanh.pop %v1333
        %v1338 = vadd.f32 %v1334, 0.0
        %v1339 = vadd.f32 %v1335, 0.0
        %v1340 = vadd.f32 %v1336, 0.0
        %v1341 = vadd.f32 %v1337, 0.0
        %v1346 = vrot.slane %v1334, 1
        %v1347 = vrot.slane %v1335, 1
        %v1348 = vsel %vm1294, %v1346, %v1347
        %v1349 = vrot.slane %v1336, 1
        %v1350 = vrot.slane %v1337, 1
        %v1351 = vsel %vm1294, %v1349, %v1350
        %v1356 = vadd.f32 %v1338, %v1348
        %v1357 = vadd.f32 %v1339, %v1347
        %v1358 = vadd.f32 %v1340, %v1351
        %v1359 = vadd.f32 %v1341, %v1350
        %v1360 = vrot.slane %v1335, 2
        %v1361 = vrot.slane %v1337, 2
        %v1364 = vadd.f32 %v1356, %v1360
        %v1365 = vadd.f32 %v1357, %v1360
        %v1366 = vadd.f32 %v1358, %v1361
        %v1367 = vadd.f32 %v1359, %v1361
        %v1368 = vmul.f32 %v1364, 0.33333334
        %v1369 = vmul.f32 %v1365, 0.33333334
        %v1370 = vmul.f32 %v1366, 0.33333334
        %v1371 = vmul.f32 %v1367, 0.33333334
        %1374 = vst [vmem:[#allocation1] sm:$0xff] %v1368
        %s1375 = scalar_lea.vmem [#allocation1], 6
        %v1376 = vld [vmem:[%s1375] ss:$9 sm:$0xff]
        %s1377 = scalar_lea.vmem [#allocation1], 7
        %v1378 = vld [vmem:[%s1377] ss:$9 sm:$0xff]
        %1379 = vst [vmem:[#allocation1] sm:$0xff] %v1369
        %v1380 = vld [vmem:[#allocation1] ss:$9 sm:$0xff]
        %s1381 = scalar_lea.vmem [#allocation1], 1
        %v1382 = vld [vmem:[%s1381] ss:$9 sm:$0xff]
        %s1383 = scalar_lea.vmem [#allocation1], 2
        %v1384 = vld [vmem:[%s1383] ss:$9 sm:$0xff]
        %s1385 = scalar_lea.vmem [#allocation1], 3
        %v1386 = vld [vmem:[%s1385] ss:$9 sm:$0xff]
        %s1387 = scalar_lea.vmem [#allocation1], 4
        %v1388 = vld [vmem:[%s1387] ss:$9 sm:$0xff]
        %s1389 = scalar_lea.vmem [#allocation1], 5
        %v1390 = vld [vmem:[%s1389] ss:$9 sm:$0xff]
        %v1391 = vperm.slane %v1376, 0
        %v1392 = vperm.slane %v1378, 0
        %v1393 = vperm.slane %v1380, 0
        %v1394 = vperm.slane %v1382, 0
        %v1395 = vperm.slane %v1384, 0
        %v1396 = vperm.slane %v1386, 0
        %v1397 = vperm.slane %v1388, 0
        %v1398 = vperm.slane %v1390, 0
        %v1407 = vsub.f32 %v1391, %v1370
        %v1408 = vsub.f32 %v1391, %v1371
        %v1409 = vsub.f32 %v1392, %v1370
        %v1410 = vsub.f32 %v1392, %v1371
        %v1411 = vsub.f32 %v1393, %v1370
        %v1412 = vsub.f32 %v1393, %v1371
        %v1413 = vsub.f32 %v1394, %v1370
        %v1414 = vsub.f32 %v1394, %v1371
        %v1415 = vsub.f32 %v1395, %v1370
        %v1416 = vsub.f32 %v1395, %v1371
        %v1417 = vsub.f32 %v1396, %v1370
        %v1418 = vsub.f32 %v1396, %v1371
        %v1419 = vsub.f32 %v1397, %v1370
        %v1420 = vsub.f32 %v1397, %v1371
        %v1421 = vsub.f32 %v1398, %v1370
        %v1422 = vsub.f32 %v1398, %v1371
        %v1423 = vmul.f32 %v1407, %v1407
        %v1424 = vmul.f32 %v1408, %v1408
        %v1425 = vmul.f32 %v1409, %v1409
        %v1426 = vmul.f32 %v1410, %v1410
        %v1427 = vmul.f32 %v1411, %v1411
        %v1428 = vmul.f32 %v1412, %v1412
        %v1429 = vmul.f32 %v1413, %v1413
        %v1430 = vmul.f32 %v1414, %v1414
        %v1431 = vmul.f32 %v1415, %v1415
        %v1432 = vmul.f32 %v1416, %v1416
        %v1433 = vmul.f32 %v1417, %v1417
        %v1434 = vmul.f32 %v1418, %v1418
        %v1435 = vmul.f32 %v1419, %v1419
        %v1436 = vmul.f32 %v1420, %v1420
        %v1437 = vmul.f32 %v1421, %v1421
        %v1438 = vmul.f32 %v1422, %v1422
        %vm1439 = vcmask 1047558
        %v1440 = vsel %vm1439, %v1423, 0.0
        %1441 = vadd.xlane.f32.xlu0 %v1440
        %v1442 = vpop.xlane.xlu0 %1441
        %v1443 = vsel %vm1312, %v1424, 0.0
        %1444 = vadd.xlane.f32.xlu0 %v1443
        %v1445 = vpop.xlane.xlu0 %1444
        %v1446 = vsel %vm1439, %v1425, 0.0
        %1447 = vadd.xlane.f32.xlu0 %v1446
        %v1448 = vpop.xlane.xlu0 %1447
        %v1449 = vsel %vm1312, %v1426, 0.0
        %1450 = vadd.xlane.f32.xlu0 %v1449
        %v1451 = vpop.xlane.xlu0 %1450
        %v1452 = vsel %vm1439, %v1427, 0.0
        %1453 = vadd.xlane.f32.xlu0 %v1452
        %v1454 = vpop.xlane.xlu0 %1453
        %v1455 = vsel %vm1312, %v1428, 0.0
        %1456 = vadd.xlane.f32.xlu0 %v1455
        %v1457 = vpop.xlane.xlu0 %1456
        %v1458 = vsel %vm1439, %v1429, 0.0
        %1459 = vadd.xlane.f32.xlu0 %v1458
        %v1460 = vpop.xlane.xlu0 %1459
        %v1461 = vsel %vm1312, %v1430, 0.0
        %1462 = vadd.xlane.f32.xlu0 %v1461
        %v1463 = vpop.xlane.xlu0 %1462
        %v1464 = vsel %vm1439, %v1431, 0.0
        %1465 = vadd.xlane.f32.xlu0 %v1464
        %v1466 = vpop.xlane.xlu0 %1465
        %v1467 = vsel %vm1312, %v1432, 0.0
        %1468 = vadd.xlane.f32.xlu0 %v1467
        %v1469 = vpop.xlane.xlu0 %1468
        %v1470 = vsel %vm1439, %v1433, 0.0
        %1471 = vadd.xlane.f32.xlu0 %v1470
        %v1472 = vpop.xlane.xlu0 %1471
        %v1473 = vsel %vm1312, %v1434, 0.0
        %1474 = vadd.xlane.f32.xlu0 %v1473
        %v1475 = vpop.xlane.xlu0 %1474
        %v1476 = vsel %vm1439, %v1435, 0.0
        %1477 = vadd.xlane.f32.xlu0 %v1476
        %v1478 = vpop.xlane.xlu0 %1477
        %v1479 = vsel %vm1312, %v1436, 0.0
        %1480 = vadd.xlane.f32.xlu0 %v1479
        %v1481 = vpop.xlane.xlu0 %1480
        %v1482 = vsel %vm1439, %v1437, 0.0
        %1483 = vadd.xlane.f32.xlu0 %v1482
        %v1484 = vpop.xlane.xlu0 %1483
        %v1485 = vsel %vm1312, %v1438, 0.0
        %1486 = vadd.xlane.f32.xlu0 %v1485
        %v1487 = vpop.xlane.xlu0 %1486
        %1490 = vst [vmem:[#allocation1] sm:$0xff] %v1370
        %s1491 = scalar_lea.vmem [#allocation1], 6
        %v1492 = vld [vmem:[%s1491] ss:$9 sm:$0xff]
        %s1493 = scalar_lea.vmem [#allocation1], 7
        %v1494 = vld [vmem:[%s1493] ss:$9 sm:$0xff]
        %1495 = vst [vmem:[#allocation1] sm:$0xff] %v1371
        %v1496 = vld [vmem:[#allocation1] ss:$9 sm:$0xff]
        %s1497 = scalar_lea.vmem [#allocation1], 1
        %v1498 = vld [vmem:[%s1497] ss:$9 sm:$0xff]
        %s1499 = scalar_lea.vmem [#allocation1], 2
        %v1500 = vld [vmem:[%s1499] ss:$9 sm:$0xff]
        %s1501 = scalar_lea.vmem [#allocation1], 3
        %v1502 = vld [vmem:[%s1501] ss:$9 sm:$0xff]
        %s1503 = scalar_lea.vmem [#allocation1], 4
        %v1504 = vld [vmem:[%s1503] ss:$9 sm:$0xff]
        %s1505 = scalar_lea.vmem [#allocation1], 5
        %v1506 = vld [vmem:[%s1505] ss:$9 sm:$0xff]
        %v1507 = vperm.slane %v1492, 0
        %v1508 = vperm.slane %v1494, 0
        %v1509 = vperm.slane %v1496, 0
        %v1510 = vperm.slane %v1498, 0
        %v1511 = vperm.slane %v1500, 0
        %v1512 = vperm.slane %v1502, 0
        %v1513 = vperm.slane %v1504, 0
        %v1514 = vperm.slane %v1506, 0
        %v1523 = vsub.f32 %v1507, %v1368
        %v1524 = vsub.f32 %v1507, %v1369
        %v1525 = vsub.f32 %v1508, %v1368
        %v1526 = vsub.f32 %v1508, %v1369
        %v1527 = vsub.f32 %v1509, %v1368
        %v1528 = vsub.f32 %v1509, %v1369
        %v1529 = vsub.f32 %v1510, %v1368
        %v1530 = vsub.f32 %v1510, %v1369
        %v1531 = vsub.f32 %v1511, %v1368
        %v1532 = vsub.f32 %v1511, %v1369
        %v1533 = vsub.f32 %v1512, %v1368
        %v1534 = vsub.f32 %v1512, %v1369
        %v1535 = vsub.f32 %v1513, %v1368
        %v1536 = vsub.f32 %v1513, %v1369
        %v1537 = vsub.f32 %v1514, %v1368
        %v1538 = vsub.f32 %v1514, %v1369
        %v1539 = vmul.f32 %v1523, %v1523
        %v1540 = vmul.f32 %v1524, %v1524
        %v1541 = vmul.f32 %v1525, %v1525
        %v1542 = vmul.f32 %v1526, %v1526
        %v1543 = vmul.f32 %v1527, %v1527
        %v1544 = vmul.f32 %v1528, %v1528
        %v1545 = vmul.f32 %v1529, %v1529
        %v1546 = vmul.f32 %v1530, %v1530
        %v1547 = vmul.f32 %v1531, %v1531
        %v1548 = vmul.f32 %v1532, %v1532
        %v1549 = vmul.f32 %v1533, %v1533
        %v1550 = vmul.f32 %v1534, %v1534
        %v1551 = vmul.f32 %v1535, %v1535
        %v1552 = vmul.f32 %v1536, %v1536
        %v1553 = vmul.f32 %v1537, %v1537
        %v1554 = vmul.f32 %v1538, %v1538
        %v1555 = vsel %vm1439, %v1539, 0.0
        %1556 = vadd.xlane.f32.xlu0 %v1555
        %v1557 = vpop.xlane.xlu0 %1556
        %v1558 = vsel %vm1312, %v1540, 0.0
        %1559 = vadd.xlane.f32.xlu0 %v1558
        %v1560 = vpop.xlane.xlu0 %1559
        %v1561 = vsel %vm1439, %v1541, 0.0
        %1562 = vadd.xlane.f32.xlu0 %v1561
        %v1563 = vpop.xlane.xlu0 %1562
        %v1564 = vsel %vm1312, %v1542, 0.0
        %1565 = vadd.xlane.f32.xlu0 %v1564
        %v1566 = vpop.xlane.xlu0 %1565
        %v1567 = vsel %vm1439, %v1543, 0.0
        %1568 = vadd.xlane.f32.xlu0 %v1567
        %v1569 = vpop.xlane.xlu0 %1568
        %v1570 = vsel %vm1312, %v1544, 0.0
        %1571 = vadd.xlane.f32.xlu0 %v1570
        %v1572 = vpop.xlane.xlu0 %1571
        %v1573 = vsel %vm1439, %v1545, 0.0
        %1574 = vadd.xlane.f32.xlu0 %v1573
        %v1575 = vpop.xlane.xlu0 %1574
        %v1576 = vsel %vm1312, %v1546, 0.0
        %1577 = vadd.xlane.f32.xlu0 %v1576
        %v1578 = vpop.xlane.xlu0 %1577
        %v1579 = vsel %vm1439, %v1547, 0.0
        %1580 = vadd.xlane.f32.xlu0 %v1579
        %v1581 = vpop.xlane.xlu0 %1580
        %v1582 = vsel %vm1312, %v1548, 0.0
        %1583 = vadd.xlane.f32.xlu0 %v1582
        %v1584 = vpop.xlane.xlu0 %1583
        %v1585 = vsel %vm1439, %v1549, 0.0
        %1586 = vadd.xlane.f32.xlu0 %v1585
        %v1587 = vpop.xlane.xlu0 %1586
        %v1588 = vsel %vm1312, %v1550, 0.0
        %1589 = vadd.xlane.f32.xlu0 %v1588
        %v1590 = vpop.xlane.xlu0 %1589
        %v1591 = vsel %vm1439, %v1551, 0.0
        %1592 = vadd.xlane.f32.xlu0 %v1591
        %v1593 = vpop.xlane.xlu0 %1592
        %v1594 = vsel %vm1312, %v1552, 0.0
        %1595 = vadd.xlane.f32.xlu0 %v1594
        %v1596 = vpop.xlane.xlu0 %1595
        %v1597 = vsel %vm1439, %v1553, 0.0
        %1598 = vadd.xlane.f32.xlu0 %v1597
        %v1599 = vpop.xlane.xlu0 %1598
        %v1600 = vsel %vm1312, %v1554, 0.0
        %1601 = vadd.xlane.f32.xlu0 %v1600
        %v1602 = vpop.xlane.xlu0 %1601
        %v1603 = vrsqrt.pop %v1442
        %v1604 = vmul.f32 %v1603, %v1442
        %v1605 = vmul.f32 %v1604, %v1603
        %v1606 = vmul.f32 0.5, %v1605
        %v1607 = vsub.f32 1.5, %v1606
        %v1608 = vmul.f32 %v1603, %v1607
        %v1609 = vmul.f32 %v1442, %v1608
        %vm1610 = vcmp.eq.f32.partialorder %v1442, inf
        %v1611 = vsel %vm1610, %v1442, %v1609
        %vm1612 = vcmp.eq.f32.partialorder %v1442, 0.0
        %v1613 = vand.u32 %v1442, 2147483648
        %v1614 = vsel %vm1612, %v1613, %v1611
        %v1615 = vrsqrt.pop %v1445
        %v1616 = vmul.f32 %v1615, %v1445
        %v1617 = vmul.f32 %v1616, %v1615
        %v1618 = vmul.f32 0.5, %v1617
        %v1619 = vsub.f32 1.5, %v1618
        %v1620 = vmul.f32 %v1615, %v1619
        %v1621 = vmul.f32 %v1445, %v1620
        %vm1622 = vcmp.eq.f32.partialorder %v1445, inf
        %v1623 = vsel %vm1622, %v1445, %v1621
        %vm1624 = vcmp.eq.f32.partialorder %v1445, 0.0
        %v1625 = vand.u32 %v1445, 2147483648
        %v1626 = vsel %vm1624, %v1625, %v1623
        %v1627 = vrsqrt.pop %v1448
        %v1628 = vmul.f32 %v1627, %v1448
        %v1629 = vmul.f32 %v1628, %v1627
        %v1630 = vmul.f32 0.5, %v1629
        %v1631 = vsub.f32 1.5, %v1630
        %v1632 = vmul.f32 %v1627, %v1631
        %v1633 = vmul.f32 %v1448, %v1632
        %vm1634 = vcmp.eq.f32.partialorder %v1448, inf
        %v1635 = vsel %vm1634, %v1448, %v1633
        %vm1636 = vcmp.eq.f32.partialorder %v1448, 0.0
        %v1637 = vand.u32 %v1448, 2147483648
        %v1638 = vsel %vm1636, %v1637, %v1635
        %v1639 = vrsqrt.pop %v1451
        %v1640 = vmul.f32 %v1639, %v1451
        %v1641 = vmul.f32 %v1640, %v1639
        %v1642 = vmul.f32 0.5, %v1641
        %v1643 = vsub.f32 1.5, %v1642
        %v1644 = vmul.f32 %v1639, %v1643
        %v1645 = vmul.f32 %v1451, %v1644
        %vm1646 = vcmp.eq.f32.partialorder %v1451, inf
        %v1647 = vsel %vm1646, %v1451, %v1645
        %vm1648 = vcmp.eq.f32.partialorder %v1451, 0.0
        %v1649 = vand.u32 %v1451, 2147483648
        %v1650 = vsel %vm1648, %v1649, %v1647
        %v1651 = vrsqrt.pop %v1454
        %v1652 = vmul.f32 %v1651, %v1454
        %v1653 = vmul.f32 %v1652, %v1651
        %v1654 = vmul.f32 0.5, %v1653
        %v1655 = vsub.f32 1.5, %v1654
        %v1656 = vmul.f32 %v1651, %v1655
        %v1657 = vmul.f32 %v1454, %v1656
        %vm1658 = vcmp.eq.f32.partialorder %v1454, inf
        %v1659 = vsel %vm1658, %v1454, %v1657
        %vm1660 = vcmp.eq.f32.partialorder %v1454, 0.0
        %v1661 = vand.u32 %v1454, 2147483648
        %v1662 = vsel %vm1660, %v1661, %v1659
        %v1663 = vrsqrt.pop %v1457
        %v1664 = vmul.f32 %v1663, %v1457
        %v1665 = vmul.f32 %v1664, %v1663
        %v1666 = vmul.f32 0.5, %v1665
        %v1667 = vsub.f32 1.5, %v1666
        %v1668 = vmul.f32 %v1663, %v1667
        %v1669 = vmul.f32 %v1457, %v1668
        %vm1670 = vcmp.eq.f32.partialorder %v1457, inf
        %v1671 = vsel %vm1670, %v1457, %v1669
        %vm1672 = vcmp.eq.f32.partialorder %v1457, 0.0
        %v1673 = vand.u32 %v1457, 2147483648
        %v1674 = vsel %vm1672, %v1673, %v1671
        %v1675 = vrsqrt.pop %v1460
        %v1676 = vmul.f32 %v1675, %v1460
        %v1677 = vmul.f32 %v1676, %v1675
        %v1678 = vmul.f32 0.5, %v1677
        %v1679 = vsub.f32 1.5, %v1678
        %v1680 = vmul.f32 %v1675, %v1679
        %v1681 = vmul.f32 %v1460, %v1680
        %vm1682 = vcmp.eq.f32.partialorder %v1460, inf
        %v1683 = vsel %vm1682, %v1460, %v1681
        %vm1684 = vcmp.eq.f32.partialorder %v1460, 0.0
        %v1685 = vand.u32 %v1460, 2147483648
        %v1686 = vsel %vm1684, %v1685, %v1683
        %v1687 = vrsqrt.pop %v1463
        %v1688 = vmul.f32 %v1687, %v1463
        %v1689 = vmul.f32 %v1688, %v1687
        %v1690 = vmul.f32 0.5, %v1689
        %v1691 = vsub.f32 1.5, %v1690
        %v1692 = vmul.f32 %v1687, %v1691
        %v1693 = vmul.f32 %v1463, %v1692
        %vm1694 = vcmp.eq.f32.partialorder %v1463, inf
        %v1695 = vsel %vm1694, %v1463, %v1693
        %vm1696 = vcmp.eq.f32.partialorder %v1463, 0.0
        %v1697 = vand.u32 %v1463, 2147483648
        %v1698 = vsel %vm1696, %v1697, %v1695
        %v1699 = vrsqrt.pop %v1466
        %v1700 = vmul.f32 %v1699, %v1466
        %v1701 = vmul.f32 %v1700, %v1699
        %v1702 = vmul.f32 0.5, %v1701
        %v1703 = vsub.f32 1.5, %v1702
        %v1704 = vmul.f32 %v1699, %v1703
        %v1705 = vmul.f32 %v1466, %v1704
        %vm1706 = vcmp.eq.f32.partialorder %v1466, inf
        %v1707 = vsel %vm1706, %v1466, %v1705
        %vm1708 = vcmp.eq.f32.partialorder %v1466, 0.0
        %v1709 = vand.u32 %v1466, 2147483648
        %v1710 = vsel %vm1708, %v1709, %v1707
        %v1711 = vrsqrt.pop %v1469
        %v1712 = vmul.f32 %v1711, %v1469
        %v1713 = vmul.f32 %v1712, %v1711
        %v1714 = vmul.f32 0.5, %v1713
        %v1715 = vsub.f32 1.5, %v1714
        %v1716 = vmul.f32 %v1711, %v1715
        %v1717 = vmul.f32 %v1469, %v1716
        %vm1718 = vcmp.eq.f32.partialorder %v1469, inf
        %v1719 = vsel %vm1718, %v1469, %v1717
        %vm1720 = vcmp.eq.f32.partialorder %v1469, 0.0
        %v1721 = vand.u32 %v1469, 2147483648
        %v1722 = vsel %vm1720, %v1721, %v1719
        %v1723 = vrsqrt.pop %v1472
        %v1724 = vmul.f32 %v1723, %v1472
        %v1725 = vmul.f32 %v1724, %v1723
        %v1726 = vmul.f32 0.5, %v1725
        %v1727 = vsub.f32 1.5, %v1726
        %v1728 = vmul.f32 %v1723, %v1727
        %v1729 = vmul.f32 %v1472, %v1728
        %vm1730 = vcmp.eq.f32.partialorder %v1472, inf
        %v1731 = vsel %vm1730, %v1472, %v1729
        %vm1732 = vcmp.eq.f32.partialorder %v1472, 0.0
        %v1733 = vand.u32 %v1472, 2147483648
        %v1734 = vsel %vm1732, %v1733, %v1731
        %v1735 = vrsqrt.pop %v1475
        %v1736 = vmul.f32 %v1735, %v1475
        %v1737 = vmul.f32 %v1736, %v1735
        %v1738 = vmul.f32 0.5, %v1737
        %v1739 = vsub.f32 1.5, %v1738
        %v1740 = vmul.f32 %v1735, %v1739
        %v1741 = vmul.f32 %v1475, %v1740
        %vm1742 = vcmp.eq.f32.partialorder %v1475, inf
        %v1743 = vsel %vm1742, %v1475, %v1741
        %vm1744 = vcmp.eq.f32.partialorder %v1475, 0.0
        %v1745 = vand.u32 %v1475, 2147483648
        %v1746 = vsel %vm1744, %v1745, %v1743
        %v1747 = vrsqrt.pop %v1478
        %v1748 = vmul.f32 %v1747, %v1478
        %v1749 = vmul.f32 %v1748, %v1747
        %v1750 = vmul.f32 0.5, %v1749
        %v1751 = vsub.f32 1.5, %v1750
        %v1752 = vmul.f32 %v1747, %v1751
        %v1753 = vmul.f32 %v1478, %v1752
        %vm1754 = vcmp.eq.f32.partialorder %v1478, inf
        %v1755 = vsel %vm1754, %v1478, %v1753
        %vm1756 = vcmp.eq.f32.partialorder %v1478, 0.0
        %v1757 = vand.u32 %v1478, 2147483648
        %v1758 = vsel %vm1756, %v1757, %v1755
        %v1759 = vrsqrt.pop %v1481
        %v1760 = vmul.f32 %v1759, %v1481
        %v1761 = vmul.f32 %v1760, %v1759
        %v1762 = vmul.f32 0.5, %v1761
        %v1763 = vsub.f32 1.5, %v1762
        %v1764 = vmul.f32 %v1759, %v1763
        %v1765 = vmul.f32 %v1481, %v1764
        %vm1766 = vcmp.eq.f32.partialorder %v1481, inf
        %v1767 = vsel %vm1766, %v1481, %v1765
        %vm1768 = vcmp.eq.f32.partialorder %v1481, 0.0
        %v1769 = vand.u32 %v1481, 2147483648
        %v1770 = vsel %vm1768, %v1769, %v1767
        %v1771 = vrsqrt.pop %v1484
        %v1772 = vmul.f32 %v1771, %v1484
        %v1773 = vmul.f32 %v1772, %v1771
        %v1774 = vmul.f32 0.5, %v1773
        %v1775 = vsub.f32 1.5, %v1774
        %v1776 = vmul.f32 %v1771, %v1775
        %v1777 = vmul.f32 %v1484, %v1776
        %vm1778 = vcmp.eq.f32.partialorder %v1484, inf
        %v1779 = vsel %vm1778, %v1484, %v1777
        %vm1780 = vcmp.eq.f32.partialorder %v1484, 0.0
        %v1781 = vand.u32 %v1484, 2147483648
        %v1782 = vsel %vm1780, %v1781, %v1779
        %v1783 = vrsqrt.pop %v1487
        %v1784 = vmul.f32 %v1783, %v1487
        %v1785 = vmul.f32 %v1784, %v1783
        %v1786 = vmul.f32 0.5, %v1785
        %v1787 = vsub.f32 1.5, %v1786
        %v1788 = vmul.f32 %v1783, %v1787
        %v1789 = vmul.f32 %v1487, %v1788
        %vm1790 = vcmp.eq.f32.partialorder %v1487, inf
        %v1791 = vsel %vm1790, %v1487, %v1789
        %vm1792 = vcmp.eq.f32.partialorder %v1487, 0.0
        %v1793 = vand.u32 %v1487, 2147483648
        %v1794 = vsel %vm1792, %v1793, %v1791
        %v1795 = vadd.f32 %v1614, 1.0
        %v1796 = vadd.f32 %v1626, 1.0
        %v1797 = vadd.f32 %v1638, 1.0
        %v1798 = vadd.f32 %v1650, 1.0
        %v1799 = vadd.f32 %v1662, 1.0
        %v1800 = vadd.f32 %v1674, 1.0
        %v1801 = vadd.f32 %v1686, 1.0
        %v1802 = vadd.f32 %v1698, 1.0
        %v1803 = vadd.f32 %v1710, 1.0
        %v1804 = vadd.f32 %v1722, 1.0
        %v1805 = vadd.f32 %v1734, 1.0
        %v1806 = vadd.f32 %v1746, 1.0
        %v1807 = vadd.f32 %v1758, 1.0
        %v1808 = vadd.f32 %v1770, 1.0
        %v1809 = vadd.f32 %v1782, 1.0
        %v1810 = vadd.f32 %v1794, 1.0
        %v1827 = vadd.s32 %v858, 6
        %v1828 = vperm.slane %v1795, %v1827
        %v1829 = vadd.s32 %v858, 4294967294
        %v1830 = vperm.slane %v1796, %v1829
        %vm1831 = vcmask 80912
        %v1832 = vsel %vm1831, %v1830, %v1828
        %v1833 = vperm.slane %v1797, %v1827
        %v1834 = vperm.slane %v1798, %v1829
        %v1835 = vsel %vm1831, %v1834, %v1833
        %v1836 = vperm.slane %v1799, %v1827
        %v1837 = vperm.slane %v1800, %v1829
        %v1838 = vsel %vm1831, %v1837, %v1836
        %v1839 = vperm.slane %v1801, %v1827
        %v1840 = vperm.slane %v1802, %v1829
        %v1841 = vsel %vm1831, %v1840, %v1839
        %v1842 = vperm.slane %v1803, %v1827
        %v1843 = vperm.slane %v1804, %v1829
        %v1844 = vsel %vm1831, %v1843, %v1842
        %v1845 = vperm.slane %v1805, %v1827
        %v1846 = vperm.slane %v1806, %v1829
        %v1847 = vsel %vm1831, %v1846, %v1845
        %v1848 = vperm.slane %v1807, %v1827
        %v1849 = vperm.slane %v1808, %v1829
        %v1850 = vsel %vm1831, %v1849, %v1848
        %v1851 = vperm.slane %v1809, %v1827
        %v1852 = vperm.slane %v1810, %v1829
        %v1853 = vsel %vm1831, %v1852, %v1851
        %v1854 = vsel %vm867, %v1835, %v1832
        %v1855 = vsel %vm869, %v1838, %v1854
        %v1856 = vsel %vm871, %v1841, %v1855
        %v1857 = vsel %vm873, %v1844, %v1856
        %v1858 = vsel %vm875, %v1847, %v1857
        %v1859 = vsel %vm877, %v1850, %v1858
        %v1860 = vsel %vm879, %v1853, %v1859
        %v1862 = vrcp.pop %v1860
        %v1863 = vmul.f32 %v1860, %v1862
        %v1864 = vsub.f32 1.0, %v1863
        %v1865 = vmul.f32 %v1862, %v1864
        %v1866 = vadd.f32 %v1862, %v1865
        %vm1867 = vweird.f32 %v1860
        %vm1868 = vweird.f32 %v1862
        %vm1869 = vmor %vm1867, %vm1868
        %v1870 = vsel %vm1869, %v1862, %v1866
        %v1871 = vand.u32 2147483647, %v1860
        %vm1872 = vcmp.eq.f32.partialorder %v1871, 8.507059e+37
        %v1873 = vand.u32 %v1860, 2147483648
        %v1874 = vor.u32 1.1754944e-38, %v1873
        %v1875 = vsel %vm1872, %v1874, %v1870
        %v1876 = vmul.f32 %v631, %v1875
        %v1877 = vrsqrt.pop %v1557
        %v1878 = vmul.f32 %v1877, %v1557
        %v1879 = vmul.f32 %v1878, %v1877
        %v1880 = vmul.f32 0.5, %v1879
        %v1881 = vsub.f32 1.5, %v1880
        %v1882 = vmul.f32 %v1877, %v1881
        %v1883 = vmul.f32 %v1557, %v1882
        %vm1884 = vcmp.eq.f32.partialorder %v1557, inf
        %v1885 = vsel %vm1884, %v1557, %v1883
        %vm1886 = vcmp.eq.f32.partialorder %v1557, 0.0
        %v1887 = vand.u32 %v1557, 2147483648
        %v1888 = vsel %vm1886, %v1887, %v1885
        %v1889 = vrsqrt.pop %v1560
        %v1890 = vmul.f32 %v1889, %v1560
        %v1891 = vmul.f32 %v1890, %v1889
        %v1892 = vmul.f32 0.5, %v1891
        %v1893 = vsub.f32 1.5, %v1892
        %v1894 = vmul.f32 %v1889, %v1893
        %v1895 = vmul.f32 %v1560, %v1894
        %vm1896 = vcmp.eq.f32.partialorder %v1560, inf
        %v1897 = vsel %vm1896, %v1560, %v1895
        %vm1898 = vcmp.eq.f32.partialorder %v1560, 0.0
        %v1899 = vand.u32 %v1560, 2147483648
        %v1900 = vsel %vm1898, %v1899, %v1897
        %v1901 = vrsqrt.pop %v1563
        %v1902 = vmul.f32 %v1901, %v1563
        %v1903 = vmul.f32 %v1902, %v1901
        %v1904 = vmul.f32 0.5, %v1903
        %v1905 = vsub.f32 1.5, %v1904
        %v1906 = vmul.f32 %v1901, %v1905
        %v1907 = vmul.f32 %v1563, %v1906
        %vm1908 = vcmp.eq.f32.partialorder %v1563, inf
        %v1909 = vsel %vm1908, %v1563, %v1907
        %vm1910 = vcmp.eq.f32.partialorder %v1563, 0.0
        %v1911 = vand.u32 %v1563, 2147483648
        %v1912 = vsel %vm1910, %v1911, %v1909
        %v1913 = vrsqrt.pop %v1566
        %v1914 = vmul.f32 %v1913, %v1566
        %v1915 = vmul.f32 %v1914, %v1913
        %v1916 = vmul.f32 0.5, %v1915
        %v1917 = vsub.f32 1.5, %v1916
        %v1918 = vmul.f32 %v1913, %v1917
        %v1919 = vmul.f32 %v1566, %v1918
        %vm1920 = vcmp.eq.f32.partialorder %v1566, inf
        %v1921 = vsel %vm1920, %v1566, %v1919
        %vm1922 = vcmp.eq.f32.partialorder %v1566, 0.0
        %v1923 = vand.u32 %v1566, 2147483648
        %v1924 = vsel %vm1922, %v1923, %v1921
        %v1925 = vrsqrt.pop %v1569
        %v1926 = vmul.f32 %v1925, %v1569
        %v1927 = vmul.f32 %v1926, %v1925
        %v1928 = vmul.f32 0.5, %v1927
        %v1929 = vsub.f32 1.5, %v1928
        %v1930 = vmul.f32 %v1925, %v1929
        %v1931 = vmul.f32 %v1569, %v1930
        %vm1932 = vcmp.eq.f32.partialorder %v1569, inf
        %v1933 = vsel %vm1932, %v1569, %v1931
        %vm1934 = vcmp.eq.f32.partialorder %v1569, 0.0
        %v1935 = vand.u32 %v1569, 2147483648
        %v1936 = vsel %vm1934, %v1935, %v1933
        %v1937 = vrsqrt.pop %v1572
        %v1938 = vmul.f32 %v1937, %v1572
        %v1939 = vmul.f32 %v1938, %v1937
        %v1940 = vmul.f32 0.5, %v1939
        %v1941 = vsub.f32 1.5, %v1940
        %v1942 = vmul.f32 %v1937, %v1941
        %v1943 = vmul.f32 %v1572, %v1942
        %vm1944 = vcmp.eq.f32.partialorder %v1572, inf
        %v1945 = vsel %vm1944, %v1572, %v1943
        %vm1946 = vcmp.eq.f32.partialorder %v1572, 0.0
        %v1947 = vand.u32 %v1572, 2147483648
        %v1948 = vsel %vm1946, %v1947, %v1945
        %v1949 = vrsqrt.pop %v1575
        %v1950 = vmul.f32 %v1949, %v1575
        %v1951 = vmul.f32 %v1950, %v1949
        %v1952 = vmul.f32 0.5, %v1951
        %v1953 = vsub.f32 1.5, %v1952
        %v1954 = vmul.f32 %v1949, %v1953
        %v1955 = vmul.f32 %v1575, %v1954
        %vm1956 = vcmp.eq.f32.partialorder %v1575, inf
        %v1957 = vsel %vm1956, %v1575, %v1955
        %vm1958 = vcmp.eq.f32.partialorder %v1575, 0.0
        %v1959 = vand.u32 %v1575, 2147483648
        %v1960 = vsel %vm1958, %v1959, %v1957
        %v1961 = vrsqrt.pop %v1578
        %v1962 = vmul.f32 %v1961, %v1578
        %v1963 = vmul.f32 %v1962, %v1961
        %v1964 = vmul.f32 0.5, %v1963
        %v1965 = vsub.f32 1.5, %v1964
        %v1966 = vmul.f32 %v1961, %v1965
        %v1967 = vmul.f32 %v1578, %v1966
        %vm1968 = vcmp.eq.f32.partialorder %v1578, inf
        %v1969 = vsel %vm1968, %v1578, %v1967
        %vm1970 = vcmp.eq.f32.partialorder %v1578, 0.0
        %v1971 = vand.u32 %v1578, 2147483648
        %v1972 = vsel %vm1970, %v1971, %v1969
        %v1973 = vrsqrt.pop %v1581
        %v1974 = vmul.f32 %v1973, %v1581
        %v1975 = vmul.f32 %v1974, %v1973
        %v1976 = vmul.f32 0.5, %v1975
        %v1977 = vsub.f32 1.5, %v1976
        %v1978 = vmul.f32 %v1973, %v1977
        %v1979 = vmul.f32 %v1581, %v1978
        %vm1980 = vcmp.eq.f32.partialorder %v1581, inf
        %v1981 = vsel %vm1980, %v1581, %v1979
        %vm1982 = vcmp.eq.f32.partialorder %v1581, 0.0
        %v1983 = vand.u32 %v1581, 2147483648
        %v1984 = vsel %vm1982, %v1983, %v1981
        %v1985 = vrsqrt.pop %v1584
        %v1986 = vmul.f32 %v1985, %v1584
        %v1987 = vmul.f32 %v1986, %v1985
        %v1988 = vmul.f32 0.5, %v1987
        %v1989 = vsub.f32 1.5, %v1988
        %v1990 = vmul.f32 %v1985, %v1989
        %v1991 = vmul.f32 %v1584, %v1990
        %vm1992 = vcmp.eq.f32.partialorder %v1584, inf
        %v1993 = vsel %vm1992, %v1584, %v1991
        %vm1994 = vcmp.eq.f32.partialorder %v1584, 0.0
        %v1995 = vand.u32 %v1584, 2147483648
        %v1996 = vsel %vm1994, %v1995, %v1993
        %v1997 = vrsqrt.pop %v1587
        %v1998 = vmul.f32 %v1997, %v1587
        %v1999 = vmul.f32 %v1998, %v1997
        %v2000 = vmul.f32 0.5, %v1999
        %v2001 = vsub.f32 1.5, %v2000
        %v2002 = vmul.f32 %v1997, %v2001
        %v2003 = vmul.f32 %v1587, %v2002
        %vm2004 = vcmp.eq.f32.partialorder %v1587, inf
        %v2005 = vsel %vm2004, %v1587, %v2003
        %vm2006 = vcmp.eq.f32.partialorder %v1587, 0.0
        %v2007 = vand.u32 %v1587, 2147483648
        %v2008 = vsel %vm2006, %v2007, %v2005
        %v2009 = vrsqrt.pop %v1590
        %v2010 = vmul.f32 %v2009, %v1590
        %v2011 = vmul.f32 %v2010, %v2009
        %v2012 = vmul.f32 0.5, %v2011
        %v2013 = vsub.f32 1.5, %v2012
        %v2014 = vmul.f32 %v2009, %v2013
        %v2015 = vmul.f32 %v1590, %v2014
        %vm2016 = vcmp.eq.f32.partialorder %v1590, inf
        %v2017 = vsel %vm2016, %v1590, %v2015
        %vm2018 = vcmp.eq.f32.partialorder %v1590, 0.0
        %v2019 = vand.u32 %v1590, 2147483648
        %v2020 = vsel %vm2018, %v2019, %v2017
        %v2021 = vrsqrt.pop %v1593
        %v2022 = vmul.f32 %v2021, %v1593
        %v2023 = vmul.f32 %v2022, %v2021
        %v2024 = vmul.f32 0.5, %v2023
        %v2025 = vsub.f32 1.5, %v2024
        %v2026 = vmul.f32 %v2021, %v2025
        %v2027 = vmul.f32 %v1593, %v2026
        %vm2028 = vcmp.eq.f32.partialorder %v1593, inf
        %v2029 = vsel %vm2028, %v1593, %v2027
        %vm2030 = vcmp.eq.f32.partialorder %v1593, 0.0
        %v2031 = vand.u32 %v1593, 2147483648
        %v2032 = vsel %vm2030, %v2031, %v2029
        %v2033 = vrsqrt.pop %v1596
        %v2034 = vmul.f32 %v2033, %v1596
        %v2035 = vmul.f32 %v2034, %v2033
        %v2036 = vmul.f32 0.5, %v2035
        %v2037 = vsub.f32 1.5, %v2036
        %v2038 = vmul.f32 %v2033, %v2037
        %v2039 = vmul.f32 %v1596, %v2038
        %vm2040 = vcmp.eq.f32.partialorder %v1596, inf
        %v2041 = vsel %vm2040, %v1596, %v2039
        %vm2042 = vcmp.eq.f32.partialorder %v1596, 0.0
        %v2043 = vand.u32 %v1596, 2147483648
        %v2044 = vsel %vm2042, %v2043, %v2041
        %v2045 = vrsqrt.pop %v1599
        %v2046 = vmul.f32 %v2045, %v1599
        %v2047 = vmul.f32 %v2046, %v2045
        %v2048 = vmul.f32 0.5, %v2047
        %v2049 = vsub.f32 1.5, %v2048
        %v2050 = vmul.f32 %v2045, %v2049
        %v2051 = vmul.f32 %v1599, %v2050
        %vm2052 = vcmp.eq.f32.partialorder %v1599, inf
        %v2053 = vsel %vm2052, %v1599, %v2051
        %vm2054 = vcmp.eq.f32.partialorder %v1599, 0.0
        %v2055 = vand.u32 %v1599, 2147483648
        %v2056 = vsel %vm2054, %v2055, %v2053
        %v2057 = vrsqrt.pop %v1602
        %v2058 = vmul.f32 %v2057, %v1602
        %v2059 = vmul.f32 %v2058, %v2057
        %v2060 = vmul.f32 0.5, %v2059
        %v2061 = vsub.f32 1.5, %v2060
        %v2062 = vmul.f32 %v2057, %v2061
        %v2063 = vmul.f32 %v1602, %v2062
        %vm2064 = vcmp.eq.f32.partialorder %v1602, inf
        %v2065 = vsel %vm2064, %v1602, %v2063
        %vm2066 = vcmp.eq.f32.partialorder %v1602, 0.0
        %v2067 = vand.u32 %v1602, 2147483648
        %v2068 = vsel %vm2066, %v2067, %v2065
        %v2069 = vadd.f32 %v1888, 1.0
        %v2070 = vadd.f32 %v1900, 1.0
        %v2071 = vadd.f32 %v1912, 1.0
        %v2072 = vadd.f32 %v1924, 1.0
        %v2073 = vadd.f32 %v1936, 1.0
        %v2074 = vadd.f32 %v1948, 1.0
        %v2075 = vadd.f32 %v1960, 1.0
        %v2076 = vadd.f32 %v1972, 1.0
        %v2077 = vadd.f32 %v1984, 1.0
        %v2078 = vadd.f32 %v1996, 1.0
        %v2079 = vadd.f32 %v2008, 1.0
        %v2080 = vadd.f32 %v2020, 1.0
        %v2081 = vadd.f32 %v2032, 1.0
        %v2082 = vadd.f32 %v2044, 1.0
        %v2083 = vadd.f32 %v2056, 1.0
        %v2084 = vadd.f32 %v2068, 1.0
        %v2101 = vperm.slane %v2069, %v1827
        %v2102 = vperm.slane %v2070, %v1829
        %v2103 = vsel %vm1831, %v2102, %v2101
        %v2104 = vperm.slane %v2071, %v1827
        %v2105 = vperm.slane %v2072, %v1829
        %v2106 = vsel %vm1831, %v2105, %v2104
        %v2107 = vperm.slane %v2073, %v1827
        %v2108 = vperm.slane %v2074, %v1829
        %v2109 = vsel %vm1831, %v2108, %v2107
        %v2110 = vperm.slane %v2075, %v1827
        %v2111 = vperm.slane %v2076, %v1829
        %v2112 = vsel %vm1831, %v2111, %v2110
        %v2113 = vperm.slane %v2077, %v1827
        %v2114 = vperm.slane %v2078, %v1829
        %v2115 = vsel %vm1831, %v2114, %v2113
        %v2116 = vperm.slane %v2079, %v1827
        %v2117 = vperm.slane %v2080, %v1829
        %v2118 = vsel %vm1831, %v2117, %v2116
        %v2119 = vperm.slane %v2081, %v1827
        %v2120 = vperm.slane %v2082, %v1829
        %v2121 = vsel %vm1831, %v2120, %v2119
        %v2122 = vperm.slane %v2083, %v1827
        %v2123 = vperm.slane %v2084, %v1829
        %v2124 = vsel %vm1831, %v2123, %v2122
        %v2125 = vsel %vm867, %v2106, %v2103
        %v2126 = vsel %vm869, %v2109, %v2125
        %v2127 = vsel %vm871, %v2112, %v2126
        %v2128 = vsel %vm873, %v2115, %v2127
        %v2129 = vsel %vm875, %v2118, %v2128
        %v2130 = vsel %vm877, %v2121, %v2129
        %v2131 = vsel %vm879, %v2124, %v2130
        %v2133 = vrcp.pop %v2131
        %v2134 = vmul.f32 %v2131, %v2133
        %v2135 = vsub.f32 1.0, %v2134
        %v2136 = vmul.f32 %v2133, %v2135
        %v2137 = vadd.f32 %v2133, %v2136
        %vm2138 = vweird.f32 %v2131
        %vm2139 = vweird.f32 %v2133
        %vm2140 = vmor %vm2138, %vm2139
        %v2141 = vsel %vm2140, %v2133, %v2137
        %v2142 = vand.u32 2147483647, %v2131
        %vm2143 = vcmp.eq.f32.partialorder %v2142, 8.507059e+37
        %v2144 = vand.u32 %v2131, 2147483648
        %v2145 = vor.u32 1.1754944e-38, %v2144
        %v2146 = vsel %vm2143, %v2145, %v2141
        %v2147 = vmul.f32 %v632, %v2146
        %s2148 = scalar_lea.vmem %s6, 4
        %v2149 = vld [vmem:[%s2148] sm:$0xf]
        %s2150 = scalar_lea.vmem %s7, 4
        %v2151 = vld [vmem:[%s2150] sm:$0xf]
        %v2152 = vpack.c.bf16 %v1876, %v1876
        %v2154 = vsel %vm1043, %v2152, 0
        %v2157 = vsel %vm1047, %v2149, 0
        %2159 = vmatpush.bf16.msra.mxu0 0
        %2160 = vmatpush.bf16.msra.mxu0 0
        %2161 = vmatpush.bf16.msra.mxu0 0
        %2162 = vmatpush.bf16.msra.mxu0 0
        %2163 = vmatpush.bf16.msra.mxu0 0
        %2164 = vmatpush.bf16.msra.mxu0 0
        %2165 = vmatpush.bf16.msra.mxu0 0
        %2166 = vmatpush.bf16.msra.mxu0 %v2157
        %2167 = vmatmul.bf16.gmra.mxu0 %v2154
        %v2168 = vpop.f32.mrf.mxu0
        %v2169 = vadd.f32 0.0, %v2168
        %v2170 = vpop.f32.mrf.mxu0
        %2171 = vdwg.mxu0
        %v2172 = vpack.c.bf16 %v2147, %v2147
        %v2174 = vsel %vm1043, %v2172, 0
        %v2177 = vsel %vm1047, %v2151, 0
        %2179 = vmatpush.bf16.msra.mxu0 0
        %2180 = vmatpush.bf16.msra.mxu0 0
        %2181 = vmatpush.bf16.msra.mxu0 0
        %2182 = vmatpush.bf16.msra.mxu0 0
        %2183 = vmatpush.bf16.msra.mxu0 0
        %2184 = vmatpush.bf16.msra.mxu0 0
        %2185 = vmatpush.bf16.msra.mxu0 0
        %2186 = vmatpush.bf16.msra.mxu0 %v2177
        %2187 = vmatmul.bf16.gmra.mxu0 %v2174
        %v2188 = vpop.f32.mrf.mxu0
        %v2189 = vadd.f32 0.0, %v2188
        %v2190 = vpop.f32.mrf.mxu0
        %2191 = vdwg.mxu0
        %v2193 = vrot.slane %v2169, 2
        %v2195 = vadd.f32 %v1368, %v2193
        %v2196 = vadd.f32 %v1369, %v2193
        %v2198 = vrot.slane %v2189, 2
        %v2200 = vadd.f32 %v1370, %v2198
        %v2201 = vadd.f32 %v1371, %v2198
        %vm2206 = vcmask 1041408
        %v2207 = vrot.slane %v2195, 6
        %v2208 = vrot.slane %v2196, 6
        %v2209 = vsel %vm2206, %v2207, %v2208
        %v2210 = vrot.slane %v2200, 6
        %v2211 = vrot.slane %v2201, 6
        %v2212 = vsel %vm2206, %v2210, %v2211
        %v2215 = vpack.c.bf16 %v2212, %v2209
        %s2216 = scalar_lea.vmem %s8, 192
        %v2217 = vld [vmem:[%s2216] sm:$0xff]
        %v2218 = vld [vmem:[%s2216 + $0x8] sm:$0xf]
        %v2219 = vld [vmem:[%s2216 + $0xc] sm:$0xff]
        %v2220 = vld [vmem:[%s2216 + $0x14] sm:$0xf]
        %v2221 = vld [vmem:[%s2216 + $0x18] sm:$0xff]
        %v2222 = vld [vmem:[%s2216 + $0x20] sm:$0xf]
        %v2223 = vld [vmem:[%s2216 + $0x24] sm:$0xff]
        %v2224 = vld [vmem:[%s2216 + $0x2c] sm:$0xf]
        %v2225 = vld [vmem:[%s2216 + $0x30] sm:$0xff]
        %v2226 = vld [vmem:[%s2216 + $0x38] sm:$0xf]
        %v2227 = vld [vmem:[%s2216 + $0x3c] sm:$0xff]
        %v2228 = vld [vmem:[%s2216 + $0x44] sm:$0xf]
        %v2229 = vld [vmem:[%s2216 + $0x48] sm:$0xff]
        %v2230 = vld [vmem:[%s2216 + $0x50] sm:$0xf]
        %v2231 = vld [vmem:[%s2216 + $0x54] sm:$0xff]
        %v2232 = vld [vmem:[%s2216 + $0x5c] sm:$0xf]
        %v2233 = vld [vmem:[%s2216 + $0x60] sm:$0xff]
        %v2234 = vld [vmem:[%s2216 + $0x68] sm:$0xf]
        %v2235 = vld [vmem:[%s2216 + $0x6c] sm:$0xff]
        %v2236 = vld [vmem:[%s2216 + $0x74] sm:$0xf]
        %v2237 = vld [vmem:[%s2216 + $0x78] sm:$0xff]
        %v2238 = vld [vmem:[%s2216 + $0x80] sm:$0xf]
        %v2239 = vld [vmem:[%s2216 + $0x84] sm:$0xff]
        %v2240 = vld [vmem:[%s2216 + $0x8c] sm:$0xf]
        %v2241 = vld [vmem:[%s2216 + $0x90] sm:$0xff]
        %v2242 = vld [vmem:[%s2216 + $0x98] sm:$0xf]
        %v2243 = vld [vmem:[%s2216 + $0x9c] sm:$0xff]
        %v2244 = vld [vmem:[%s2216 + $0xa4] sm:$0xf]
        %v2245 = vld [vmem:[%s2216 + $0xa8] sm:$0xff]
        %v2246 = vld [vmem:[%s2216 + $0xb0] sm:$0xf]
        %v2247 = vld [vmem:[%s2216 + $0xb4] sm:$0xff]
        %v2248 = vld [vmem:[%s2216 + $0xbc] sm:$0xf]
        %v2281 = vunpack.c.l.b16 %v2217
        %v2282 = vunpack.c.h.b16 %v2217
        %v2283 = vunpack.c.l.b16 %v2218
        %v2284 = vunpack.c.l.b16 %v2219
        %v2285 = vunpack.c.h.b16 %v2219
        %v2286 = vunpack.c.l.b16 %v2220
        %v2287 = vunpack.c.l.b16 %v2221
        %v2288 = vunpack.c.h.b16 %v2221
        %v2289 = vunpack.c.l.b16 %v2222
        %v2290 = vunpack.c.l.b16 %v2223
        %v2291 = vunpack.c.h.b16 %v2223
        %v2292 = vunpack.c.l.b16 %v2224
        %v2293 = vunpack.c.l.b16 %v2225
        %v2294 = vunpack.c.h.b16 %v2225
        %v2295 = vunpack.c.l.b16 %v2226
        %v2296 = vunpack.c.l.b16 %v2227
        %v2297 = vunpack.c.h.b16 %v2227
        %v2298 = vunpack.c.l.b16 %v2228
        %v2299 = vunpack.c.l.b16 %v2229
        %v2300 = vunpack.c.h.b16 %v2229
        %v2301 = vunpack.c.l.b16 %v2230
        %v2302 = vunpack.c.l.b16 %v2231
        %v2303 = vunpack.c.h.b16 %v2231
        %v2304 = vunpack.c.l.b16 %v2232
        %v2305 = vunpack.c.l.b16 %v2233
        %v2306 = vunpack.c.h.b16 %v2233
        %v2307 = vunpack.c.l.b16 %v2234
        %v2308 = vunpack.c.l.b16 %v2235
        %v2309 = vunpack.c.h.b16 %v2235
        %v2310 = vunpack.c.l.b16 %v2236
        %v2311 = vunpack.c.l.b16 %v2237
        %v2312 = vunpack.c.h.b16 %v2237
        %v2313 = vunpack.c.l.b16 %v2238
        %v2314 = vunpack.c.l.b16 %v2239
        %v2315 = vunpack.c.h.b16 %v2239
        %v2316 = vunpack.c.l.b16 %v2240
        %v2317 = vunpack.c.l.b16 %v2241
        %v2318 = vunpack.c.h.b16 %v2241
        %v2319 = vunpack.c.l.b16 %v2242
        %v2320 = vunpack.c.l.b16 %v2243
        %v2321 = vunpack.c.h.b16 %v2243
        %v2322 = vunpack.c.l.b16 %v2244
        %v2323 = vunpack.c.l.b16 %v2245
        %v2324 = vunpack.c.h.b16 %v2245
        %v2325 = vunpack.c.l.b16 %v2246
        %v2326 = vunpack.c.l.b16 %v2247
        %v2327 = vunpack.c.h.b16 %v2247
        %v2328 = vunpack.c.l.b16 %v2248
        %v2329 = vpack.c.b16 %v2284, %v2281
        %v2330 = vpack.c.b16 %v2285, %v2282
        %v2331 = vpack.c.b16 %v2286, %v2283
        %v2332 = vpack.c.b16 %v2290, %v2287
        %v2333 = vpack.c.b16 %v2291, %v2288
        %v2334 = vpack.c.b16 %v2292, %v2289
        %v2335 = vpack.c.b16 %v2296, %v2293
        %v2336 = vpack.c.b16 %v2297, %v2294
        %v2337 = vpack.c.b16 %v2298, %v2295
        %v2338 = vpack.c.b16 %v2302, %v2299
        %v2339 = vpack.c.b16 %v2303, %v2300
        %v2340 = vpack.c.b16 %v2304, %v2301
        %v2341 = vpack.c.b16 %v2308, %v2305
        %v2342 = vpack.c.b16 %v2309, %v2306
        %v2343 = vpack.c.b16 %v2310, %v2307
        %v2344 = vpack.c.b16 %v2314, %v2311
        %v2345 = vpack.c.b16 %v2315, %v2312
        %v2346 = vpack.c.b16 %v2316, %v2313
        %v2347 = vpack.c.b16 %v2320, %v2317
        %v2348 = vpack.c.b16 %v2321, %v2318
        %v2349 = vpack.c.b16 %v2322, %v2319
        %v2350 = vpack.c.b16 %v2326, %v2323
        %v2351 = vpack.c.b16 %v2327, %v2324
        %v2352 = vpack.c.b16 %v2328, %v2325
        %2377 = vmatpush.bf16.msra.mxu0 %v2350
        %2378 = vmatpush.bf16.msra.mxu0 %v2347
        %2379 = vmatpush.bf16.msra.mxu0 %v2344
        %2380 = vmatpush.bf16.msra.mxu0 %v2341
        %2381 = vmatpush.bf16.msra.mxu0 %v2338
        %2382 = vmatpush.bf16.msra.mxu0 %v2335
        %2383 = vmatpush.bf16.msra.mxu0 %v2332
        %2384 = vmatpush.bf16.msra.mxu0 %v2329
        %2385 = vmatmul.bf16.gmra.mxu0 %v2215
        %v2386 = vpop.f32.mrf.mxu0
        %v2387 = vadd.f32 0.0, %v2386
        %v2388 = vpop.f32.mrf.mxu0
        %v2389 = vadd.f32 0.0, %v2388
        %2390 = vdwg.mxu0
        %2391 = vmatpush.bf16.msra.mxu0 %v2351
        %2392 = vmatpush.bf16.msra.mxu0 %v2348
        %2393 = vmatpush.bf16.msra.mxu0 %v2345
        %2394 = vmatpush.bf16.msra.mxu0 %v2342
        %2395 = vmatpush.bf16.msra.mxu0 %v2339
        %2396 = vmatpush.bf16.msra.mxu0 %v2336
        %2397 = vmatpush.bf16.msra.mxu0 %v2333
        %2398 = vmatpush.bf16.msra.mxu0 %v2330
        %2399 = vmatmul.bf16.gmra.mxu0 %v2215
        %v2400 = vpop.f32.mrf.mxu0
        %v2401 = vadd.f32 0.0, %v2400
        %v2402 = vpop.f32.mrf.mxu0
        %v2403 = vadd.f32 0.0, %v2402
        %2404 = vdwg.mxu0
        %2405 = vmatpush.bf16.msra.mxu0 %v2352
        %2406 = vmatpush.bf16.msra.mxu0 %v2349
        %2407 = vmatpush.bf16.msra.mxu0 %v2346
        %2408 = vmatpush.bf16.msra.mxu0 %v2343
        %2409 = vmatpush.bf16.msra.mxu0 %v2340
        %2410 = vmatpush.bf16.msra.mxu0 %v2337
        %2411 = vmatpush.bf16.msra.mxu0 %v2334
        %2412 = vmatpush.bf16.msra.mxu0 %v2331
        %2413 = vmatmul.bf16.gmra.mxu0 %v2215
        %v2414 = vpop.f32.mrf.mxu0
        %v2415 = vadd.f32 0.0, %v2414
        %v2416 = vpop.f32.mrf.mxu0
        %v2417 = vadd.f32 0.0, %v2416
        %2418 = vdwg.mxu0
        %v2419 = vadd.f32 %v2387, 0.0
        %v2420 = vadd.f32 %v2389, 0.0
        %v2423 = vrot.slane %v2401, 1
        %v2424 = vsel %vm1294, %v1295, %v2423
        %v2425 = vsel %vm1294, %v2423, %v1295
        %v2426 = vrot.slane %v2403, 1
        %v2427 = vsel %vm1294, %v1295, %v2426
        %v2428 = vsel %vm1294, %v2426, %v1295
        %v2433 = vadd.f32 %v2424, 0.0
        %v2434 = vadd.f32 %v2419, %v2425
        %v2435 = vadd.f32 %v2427, 0.0
        %v2436 = vadd.f32 %v2420, %v2428
        %v2439 = vrot.slane %v2415, 2
        %v2440 = vsel %vm1312, %v2439, %v1314
        %v2441 = vrot.slane %v2417, 2
        %v2442 = vsel %vm1312, %v2441, %v1314
        %v2447 = vadd.f32 %v2433, %v2439
        %v2448 = vadd.f32 %v2434, %v2440
        %v2449 = vadd.f32 %v2435, %v2441
        %v2450 = vadd.f32 %v2436, %v2442
        %s2451 = scalar_lea.vmem %s9, 1
        %v2452 = vld [vmem:[%s2451] sm:$0x1]
        %v2454 = vperm.slane %v2452, 0
        %v2456 = vadd.f32 %v2447, %v2454
        %v2457 = vadd.f32 %v2448, %v2454
        %v2458 = vadd.f32 %v2449, %v2454
        %v2459 = vadd.f32 %v2450, %v2454
        %v2460 = vtanh.pop %v2456
        %v2461 = vtanh.pop %v2457
        %v2462 = vtanh.pop %v2458
        %v2463 = vtanh.pop %v2459
        %v2464 = vadd.f32 %v2460, 0.0
        %v2465 = vadd.f32 %v2461, 0.0
        %v2466 = vadd.f32 %v2462, 0.0
        %v2467 = vadd.f32 %v2463, 0.0
        %v2472 = vrot.slane %v2460, 1
        %v2473 = vrot.slane %v2461, 1
        %v2474 = vsel %vm1294, %v2472, %v2473
        %v2475 = vrot.slane %v2462, 1
        %v2476 = vrot.slane %v2463, 1
        %v2477 = vsel %vm1294, %v2475, %v2476
        %v2482 = vadd.f32 %v2464, %v2474
        %v2483 = vadd.f32 %v2465, %v2473
        %v2484 = vadd.f32 %v2466, %v2477
        %v2485 = vadd.f32 %v2467, %v2476
        %v2486 = vrot.slane %v2461, 2
        %v2487 = vrot.slane %v2463, 2
        %v2490 = vadd.f32 %v2482, %v2486
        %v2491 = vadd.f32 %v2483, %v2486
        %v2492 = vadd.f32 %v2484, %v2487
        %v2493 = vadd.f32 %v2485, %v2487
        %v2494 = vmul.f32 %v2490, 0.33333334
        %v2495 = vmul.f32 %v2491, 0.33333334
        %v2496 = vmul.f32 %v2492, 0.33333334
        %v2497 = vmul.f32 %v2493, 0.33333334
        %v2498 = vld [vmem:[%s623] sm:$0xff]
        %v2499 = vld [vmem:[%s627] sm:$0xff]
        %vm2500 = vcmask 7168
        %v2501 = vsel %vm2500, %v2498, 0.0
        %v2502 = vrot.slane %v2501, 4
        %v2503 = vadd.f32 %v2501, %v2502
        %v2504 = vrot.slane %v2503, 2
        %v2505 = vadd.f32 %v2503, %v2504
        %v2506 = vrot.slane %v2505, 1
        %v2507 = vadd.f32 %v2505, %v2506
        %v2508 = vmax.f32 %v2507, 1.0
        %v2509 = vsel %vm2500, %v2499, 0.0
        %v2510 = vrot.slane %v2509, 4
        %v2511 = vadd.f32 %v2509, %v2510
        %v2512 = vrot.slane %v2511, 2
        %v2513 = vadd.f32 %v2511, %v2512
        %v2514 = vrot.slane %v2513, 1
        %v2515 = vadd.f32 %v2513, %v2514
        %v2516 = vmax.f32 %v2515, 1.0
        %2518 = vset.pattern.permute.xlu0 0
        %2519 = vperm.xlu0 %2518, %v2498
        %v2520 = vpop.permute.xlu0 %2519
        %v2521 = vrot.slane %v2520, 2
        %v2523 = vmul.f32 %v2494, %v2521
        %v2524 = vmul.f32 %v2495, %v2521
        %v2527 = vrot.slane %v2523, 6
        %v2528 = vrot.slane %v2524, 6
        %v2529 = vsel %vm2206, %v2527, %v2528
        %v2531 = vrot.slane %v2529, 4
        %v2532 = vadd.f32 %v2529, %v2531
        %v2533 = vrot.slane %v2532, 2
        %v2534 = vadd.f32 %v2532, %v2533
        %v2535 = vrot.slane %v2534, 1
        %v2536 = vadd.f32 %v2534, %v2535
        %2538 = vset.pattern.permute.xlu0 0
        %2539 = vperm.xlu0 %2538, %v2508
        %v2540 = vpop.permute.xlu0 %2539
        %v2542 = vrcp.pop %v2540
        %v2543 = vmul.f32 %v2540, %v2542
        %v2544 = vsub.f32 1.0, %v2543
        %v2545 = vmul.f32 %v2542, %v2544
        %v2546 = vadd.f32 %v2542, %v2545
        %vm2547 = vweird.f32 %v2540
        %vm2548 = vweird.f32 %v2542
        %vm2549 = vmor %vm2547, %vm2548
        %v2550 = vsel %vm2549, %v2542, %v2546
        %v2551 = vand.u32 2147483647, %v2540
        %vm2552 = vcmp.eq.f32.partialorder %v2551, 8.507059e+37
        %v2553 = vand.u32 %v2540, 2147483648
        %v2554 = vor.u32 1.1754944e-38, %v2553
        %v2555 = vsel %vm2552, %v2554, %v2550
        %v2556 = vmul.f32 %v2536, %v2555
        %2558 = vset.pattern.permute.xlu0 0
        %2559 = vperm.xlu0 %2558, %v2499
        %v2560 = vpop.permute.xlu0 %2559
        %v2561 = vrot.slane %v2560, 2
        %v2563 = vmul.f32 %v2496, %v2561
        %v2564 = vmul.f32 %v2497, %v2561
        %v2567 = vrot.slane %v2563, 6
        %v2568 = vrot.slane %v2564, 6
        %v2569 = vsel %vm2206, %v2567, %v2568
        %v2571 = vrot.slane %v2569, 4
        %v2572 = vadd.f32 %v2569, %v2571
        %v2573 = vrot.slane %v2572, 2
        %v2574 = vadd.f32 %v2572, %v2573
        %v2575 = vrot.slane %v2574, 1
        %v2576 = vadd.f32 %v2574, %v2575
        %2578 = vset.pattern.permute.xlu0 0
        %2579 = vperm.xlu0 %2578, %v2516
        %v2580 = vpop.permute.xlu0 %2579
        %v2582 = vrcp.pop %v2580
        %v2583 = vmul.f32 %v2580, %v2582
        %v2584 = vsub.f32 1.0, %v2583
        %v2585 = vmul.f32 %v2582, %v2584
        %v2586 = vadd.f32 %v2582, %v2585
        %vm2587 = vweird.f32 %v2580
        %vm2588 = vweird.f32 %v2582
        %vm2589 = vmor %vm2587, %vm2588
        %v2590 = vsel %vm2589, %v2582, %v2586
        %v2591 = vand.u32 2147483647, %v2580
        %vm2592 = vcmp.eq.f32.partialorder %v2591, 8.507059e+37
        %v2593 = vand.u32 %v2580, 2147483648
        %v2594 = vor.u32 1.1754944e-38, %v2593
        %v2595 = vsel %vm2592, %v2594, %v2590
        %v2596 = vmul.f32 %v2576, %v2595
        %v2597 = vpack.c.bf16 %v2556, %v2556
        %v2598 = vld [vmem:[%s10] sm:$0xf]
        %v2599 = vld [vmem:[%s10 + $0x4] sm:$0xf]
        %v2600 = vld [vmem:[%s10 + $0x8] sm:$0xf]
        %v2601 = vld [vmem:[%s10 + $0xc] sm:$0xf]
        %v2602 = vld [vmem:[%s10 + $0x10] sm:$0xf]
        %v2603 = vld [vmem:[%s10 + $0x14] sm:$0xf]
        %v2604 = vld [vmem:[%s10 + $0x18] sm:$0xf]
        %v2605 = vld [vmem:[%s10 + $0x1c] sm:$0xf]
        %v2606 = vld [vmem:[%s10 + $0x20] sm:$0xf]
        %v2607 = vld [vmem:[%s10 + $0x24] sm:$0xf]
        %v2608 = vld [vmem:[%s10 + $0x28] sm:$0xf]
        %v2609 = vld [vmem:[%s10 + $0x2c] sm:$0xf]
        %v2610 = vld [vmem:[%s10 + $0x30] sm:$0xf]
        %v2611 = vld [vmem:[%s10 + $0x34] sm:$0xf]
        %v2612 = vld [vmem:[%s10 + $0x38] sm:$0xf]
        %v2613 = vld [vmem:[%s10 + $0x3c] sm:$0xf]
        %v2614 = vpack.c.bf16 %v2596, %v2596
        %v2615 = vld [vmem:[%s11] sm:$0xf]
        %v2616 = vld [vmem:[%s11 + $0x4] sm:$0xf]
        %v2617 = vld [vmem:[%s11 + $0x8] sm:$0xf]
        %v2618 = vld [vmem:[%s11 + $0xc] sm:$0xf]
        %v2619 = vld [vmem:[%s11 + $0x10] sm:$0xf]
        %v2620 = vld [vmem:[%s11 + $0x14] sm:$0xf]
        %v2621 = vld [vmem:[%s11 + $0x18] sm:$0xf]
        %v2622 = vld [vmem:[%s11 + $0x1c] sm:$0xf]
        %v2623 = vld [vmem:[%s11 + $0x20] sm:$0xf]
        %v2624 = vld [vmem:[%s11 + $0x24] sm:$0xf]
        %v2625 = vld [vmem:[%s11 + $0x28] sm:$0xf]
        %v2626 = vld [vmem:[%s11 + $0x2c] sm:$0xf]
        %v2627 = vld [vmem:[%s11 + $0x30] sm:$0xf]
        %v2628 = vld [vmem:[%s11 + $0x34] sm:$0xf]
        %v2629 = vld [vmem:[%s11 + $0x38] sm:$0xf]
        %v2630 = vld [vmem:[%s11 + $0x3c] sm:$0xf]
        %v2647 = vunpack.c.l.b16 %v2615
        %v2648 = vunpack.c.l.b16 %v2616
        %v2649 = vunpack.c.l.b16 %v2617
        %v2650 = vunpack.c.l.b16 %v2618
        %v2651 = vunpack.c.l.b16 %v2619
        %v2652 = vunpack.c.l.b16 %v2620
        %v2653 = vunpack.c.l.b16 %v2621
        %v2654 = vunpack.c.l.b16 %v2622
        %v2655 = vunpack.c.l.b16 %v2623
        %v2656 = vunpack.c.l.b16 %v2624
        %v2657 = vunpack.c.l.b16 %v2625
        %v2658 = vunpack.c.l.b16 %v2626
        %v2659 = vunpack.c.l.b16 %v2627
        %v2660 = vunpack.c.l.b16 %v2628
        %v2661 = vunpack.c.l.b16 %v2629
        %v2662 = vunpack.c.l.b16 %v2630
        %v2663 = vpack.c.b16 %v2648, %v2647
        %v2664 = vpack.c.b16 %v2650, %v2649
        %v2665 = vpack.c.b16 %v2652, %v2651
        %v2666 = vpack.c.b16 %v2654, %v2653
        %v2667 = vpack.c.b16 %v2656, %v2655
        %v2668 = vpack.c.b16 %v2658, %v2657
        %v2669 = vpack.c.b16 %v2660, %v2659
        %v2670 = vpack.c.b16 %v2662, %v2661
        %2679 = vmatpush.bf16.msra.mxu0 %v2670
        %2680 = vmatpush.bf16.msra.mxu0 %v2669
        %2681 = vmatpush.bf16.msra.mxu0 %v2668
        %2682 = vmatpush.bf16.msra.mxu0 %v2667
        %2683 = vmatpush.bf16.msra.mxu0 %v2666
        %2684 = vmatpush.bf16.msra.mxu0 %v2665
        %2685 = vmatpush.bf16.msra.mxu0 %v2664
        %2686 = vmatpush.bf16.msra.mxu0 %v2663
        %2687 = vmatmul.bf16.gmra.mxu0 %v2614
        %v2688 = vpop.f32.mrf.mxu0
        %v2689 = vadd.f32 0.0, %v2688
        %v2690 = vpop.f32.mrf.mxu0
        %2691 = vdwg.mxu0
        %v2708 = vunpack.c.l.b16 %v2598
        %v2709 = vunpack.c.l.b16 %v2599
        %v2710 = vunpack.c.l.b16 %v2600
        %v2711 = vunpack.c.l.b16 %v2601
        %v2712 = vunpack.c.l.b16 %v2602
        %v2713 = vunpack.c.l.b16 %v2603
        %v2714 = vunpack.c.l.b16 %v2604
        %v2715 = vunpack.c.l.b16 %v2605
        %v2716 = vunpack.c.l.b16 %v2606
        %v2717 = vunpack.c.l.b16 %v2607
        %v2718 = vunpack.c.l.b16 %v2608
        %v2719 = vunpack.c.l.b16 %v2609
        %v2720 = vunpack.c.l.b16 %v2610
        %v2721 = vunpack.c.l.b16 %v2611
        %v2722 = vunpack.c.l.b16 %v2612
        %v2723 = vunpack.c.l.b16 %v2613
        %v2724 = vpack.c.b16 %v2709, %v2708
        %v2725 = vpack.c.b16 %v2711, %v2710
        %v2726 = vpack.c.b16 %v2713, %v2712
        %v2727 = vpack.c.b16 %v2715, %v2714
        %v2728 = vpack.c.b16 %v2717, %v2716
        %v2729 = vpack.c.b16 %v2719, %v2718
        %v2730 = vpack.c.b16 %v2721, %v2720
        %v2731 = vpack.c.b16 %v2723, %v2722
        %2740 = vmatpush.bf16.msra.mxu0 %v2731
        %2741 = vmatpush.bf16.msra.mxu0 %v2730
        %2742 = vmatpush.bf16.msra.mxu0 %v2729
        %2743 = vmatpush.bf16.msra.mxu0 %v2728
        %2744 = vmatpush.bf16.msra.mxu0 %v2727
        %2745 = vmatpush.bf16.msra.mxu0 %v2726
        %2746 = vmatpush.bf16.msra.mxu0 %v2725
        %2747 = vmatpush.bf16.msra.mxu0 %v2724
        %2748 = vmatmul.bf16.gmra.mxu0 %v2597
        %v2749 = vpop.f32.mrf.mxu0
        %v2750 = vadd.f32 %v2689, %v2749
        %v2751 = vpop.f32.mrf.mxu0
        %2752 = vdwg.mxu0
        %v2753 = vld [vmem:[%s12] sm:$0x1]
        %v2754 = vadd.f32 %v2750, %v2753
        %v2755 = vmax.f32 %v2754, 0.0
        %v2756 = vpack.c.bf16 %v2755, %v2755
        %v2757 = vld [vmem:[%s13] sm:$0xf]
        %v2758 = vld [vmem:[%s13 + $0x4] sm:$0xf]
        %v2759 = vld [vmem:[%s13 + $0x8] sm:$0xf]
        %v2760 = vld [vmem:[%s13 + $0xc] sm:$0xf]
        %v2761 = vld [vmem:[%s13 + $0x10] sm:$0xf]
        %v2762 = vld [vmem:[%s13 + $0x14] sm:$0xf]
        %v2763 = vld [vmem:[%s13 + $0x18] sm:$0xf]
        %v2764 = vld [vmem:[%s13 + $0x1c] sm:$0xf]
        %v2765 = vld [vmem:[%s13 + $0x20] sm:$0xf]
        %v2766 = vld [vmem:[%s13 + $0x24] sm:$0xf]
        %v2767 = vld [vmem:[%s13 + $0x28] sm:$0xf]
        %v2768 = vld [vmem:[%s13 + $0x2c] sm:$0xf]
        %v2769 = vld [vmem:[%s13 + $0x30] sm:$0xf]
        %v2770 = vld [vmem:[%s13 + $0x34] sm:$0xf]
        %v2771 = vld [vmem:[%s13 + $0x38] sm:$0xf]
        %v2772 = vld [vmem:[%s13 + $0x3c] sm:$0xf]
        %v2773 = vld [vmem:[%s14] sm:$0x1]
        %v2790 = vunpack.c.l.b16 %v2757
        %v2791 = vunpack.c.l.b16 %v2758
        %v2792 = vunpack.c.l.b16 %v2759
        %v2793 = vunpack.c.l.b16 %v2760
        %v2794 = vunpack.c.l.b16 %v2761
        %v2795 = vunpack.c.l.b16 %v2762
        %v2796 = vunpack.c.l.b16 %v2763
        %v2797 = vunpack.c.l.b16 %v2764
        %v2798 = vunpack.c.l.b16 %v2765
        %v2799 = vunpack.c.l.b16 %v2766
        %v2800 = vunpack.c.l.b16 %v2767
        %v2801 = vunpack.c.l.b16 %v2768
        %v2802 = vunpack.c.l.b16 %v2769
        %v2803 = vunpack.c.l.b16 %v2770
        %v2804 = vunpack.c.l.b16 %v2771
        %v2805 = vunpack.c.l.b16 %v2772
        %v2806 = vpack.c.b16 %v2791, %v2790
        %v2807 = vpack.c.b16 %v2793, %v2792
        %v2808 = vpack.c.b16 %v2795, %v2794
        %v2809 = vpack.c.b16 %v2797, %v2796
        %v2810 = vpack.c.b16 %v2799, %v2798
        %v2811 = vpack.c.b16 %v2801, %v2800
        %v2812 = vpack.c.b16 %v2803, %v2802
        %v2813 = vpack.c.b16 %v2805, %v2804
        %2822 = vmatpush.bf16.msra.mxu0 %v2813
        %2823 = vmatpush.bf16.msra.mxu0 %v2812
        %2824 = vmatpush.bf16.msra.mxu0 %v2811
        %2825 = vmatpush.bf16.msra.mxu0 %v2810
        %2826 = vmatpush.bf16.msra.mxu0 %v2809
        %2827 = vmatpush.bf16.msra.mxu0 %v2808
        %2828 = vmatpush.bf16.msra.mxu0 %v2807
        %2829 = vmatpush.bf16.msra.mxu0 %v2806
        %2830 = vmatmul.bf16.gmra.mxu0 %v2756
        %v2831 = vpop.f32.mrf.mxu0
        %v2832 = vadd.f32 %v2773, %v2831
        %v2833 = vpop.f32.mrf.mxu0
        %2834 = vdwg.mxu0
        %v2835 = vmax.f32 %v2832, 0.0
        %v2836 = vpack.c.bf16 %v2835, %v2835
        %v2837 = vld [vmem:[%s15] sm:$0xf]
        %v2838 = vld [vmem:[%s15 + $0x4] sm:$0xf]
        %v2839 = vld [vmem:[%s15 + $0x8] sm:$0xf]
        %v2840 = vld [vmem:[%s15 + $0xc] sm:$0xf]
        %v2841 = vld [vmem:[%s15 + $0x10] sm:$0xf]
        %v2842 = vld [vmem:[%s15 + $0x14] sm:$0xf]
        %v2843 = vld [vmem:[%s15 + $0x18] sm:$0xf]
        %v2844 = vld [vmem:[%s15 + $0x1c] sm:$0xf]
        %v2845 = vld [vmem:[%s15 + $0x20] sm:$0xf]
        %v2846 = vld [vmem:[%s15 + $0x24] sm:$0xf]
        %v2847 = vld [vmem:[%s15 + $0x28] sm:$0xf]
        %v2848 = vld [vmem:[%s15 + $0x2c] sm:$0xf]
        %v2849 = vld [vmem:[%s15 + $0x30] sm:$0xf]
        %v2850 = vld [vmem:[%s15 + $0x34] sm:$0xf]
        %v2851 = vld [vmem:[%s15 + $0x38] sm:$0xf]
        %v2852 = vld [vmem:[%s15 + $0x3c] sm:$0xf]
        %v2853 = vld [vmem:[%s16] sm:$0x1]
        %v2870 = vunpack.c.l.b16 %v2837
        %v2871 = vunpack.c.l.b16 %v2838
        %v2872 = vunpack.c.l.b16 %v2839
        %v2873 = vunpack.c.l.b16 %v2840
        %v2874 = vunpack.c.l.b16 %v2841
        %v2875 = vunpack.c.l.b16 %v2842
        %v2876 = vunpack.c.l.b16 %v2843
        %v2877 = vunpack.c.l.b16 %v2844
        %v2878 = vunpack.c.l.b16 %v2845
        %v2879 = vunpack.c.l.b16 %v2846
        %v2880 = vunpack.c.l.b16 %v2847
        %v2881 = vunpack.c.l.b16 %v2848
        %v2882 = vunpack.c.l.b16 %v2849
        %v2883 = vunpack.c.l.b16 %v2850
        %v2884 = vunpack.c.l.b16 %v2851
        %v2885 = vunpack.c.l.b16 %v2852
        %v2886 = vpack.c.b16 %v2871, %v2870
        %v2887 = vpack.c.b16 %v2873, %v2872
        %v2888 = vpack.c.b16 %v2875, %v2874
        %v2889 = vpack.c.b16 %v2877, %v2876
        %v2890 = vpack.c.b16 %v2879, %v2878
        %v2891 = vpack.c.b16 %v2881, %v2880
        %v2892 = vpack.c.b16 %v2883, %v2882
        %v2893 = vpack.c.b16 %v2885, %v2884
        %2902 = vmatpush.bf16.msra.mxu0 %v2893
        %2903 = vmatpush.bf16.msra.mxu0 %v2892
        %2904 = vmatpush.bf16.msra.mxu0 %v2891
        %2905 = vmatpush.bf16.msra.mxu0 %v2890
        %2906 = vmatpush.bf16.msra.mxu0 %v2889
        %2907 = vmatpush.bf16.msra.mxu0 %v2888
        %2908 = vmatpush.bf16.msra.mxu0 %v2887
        %2909 = vmatpush.bf16.msra.mxu0 %v2886
        %2910 = vmatmul.bf16.gmra.mxu0 %v2836
        %v2911 = vpop.f32.mrf.mxu0
        %v2912 = vadd.f32 %v2853, %v2911
        %v2913 = vpop.f32.mrf.mxu0
        %2914 = vdwg.mxu0
        %2915 = vst [vmem:[%s603] sm:$0x1] %v2912
        %s2916 = sand.u32 %s426, 1
        %s2917 = scalar_lea.sflag [#allocation3], %s2916
        %s2918 = sand.u32 %s426, 1
        %s2919 = scalar_lea.vmem [#allocation2], %s2918
        // Predicated region
        $region89: #{abcnn_forward.1} parent=87 // pred_check
          %p2920 = pneg %p436
        $region90: #{abcnn_forward.1} parent=87 // pred_check_branch
          %2922 = sbr.rel (%p2920) target = $region92
        $region91: #{abcnn_forward.1} parent=87 // pred_region
          %2924 = vsyncadd %s2917, 0
          %s2925 = scalar_lea.hbm %s17, %s31
          %s2927 = sshll.u32 %s2919, 4
          %s2928 = int_to_ptr.vmem [resolvable:$true] %s2927
          %s2929 = sshll.u32 %s2925, 4
          %s2930 = int_to_ptr.hbm [resolvable:$true] %s2929
          %2932 = dma.vmem_to_hbm [thread:$0]  %s2928, 16, %s2930, %s2917
        $region92: #{abcnn_forward.1} parent=87 // pred_fallthru
          _
      $region88: #{abcnn_forward.1} parent=5 // pred_fallthru
        _
      %p2933 = scmp.le.s32.totalorder 2, %s26
      // Predicated region
      $region93: #{abcnn_forward.1} parent=5 // pred_check
        %p2934 = pneg %p2933
      $region94: #{abcnn_forward.1} parent=5 // pred_check_branch
        %2936 = sbr.rel (%p2934) target = $region96
      $region95: #{abcnn_forward.1} parent=5 // pred_region
        %s2937 = ssub.s32 %s26, 2
        // Predicated region
        $region97: #{abcnn_forward.1} parent=95 // pred_check
          %p2938 = pneg %p442
        $region98: #{abcnn_forward.1} parent=95 // pred_check_branch
          %2940 = sbr.rel (%p2938) target = $region100
        $region99: #{abcnn_forward.1} parent=95 // pred_region
          %s2941 = sand.u32 %s427, 1
          %s2942 = scalar_lea.sflag [#allocation3], %s2941
          %s2943 = sand.u32 %s427, 1
          %s2944 = scalar_lea.vmem [#allocation2], %s2943
          %2946 = dma.done %s2942, 16
        $region100: #{abcnn_forward.1} parent=95 // pred_fallthru
          _
      $region96: #{abcnn_forward.1} parent=5 // pred_fallthru
        _
    $region6: #{abcnn_forward.1} parent=1 // loop_footer
      %s30 = sadd.s32 1, %s26
    $region7: #{abcnn_forward.1} parent=1 // loop_footer_branch
      %25 = sbr.rel target = $region3
    $region8: #{abcnn_forward.1} parent=1 // loop_exit
      _
    %2947 = vsyncpa [#allocation3], 1
    %s2948 = scalar_lea.sflag [#allocation3], 1
    %2949 = vsyncpa %s2948, 1

</llo_original>
